<compile_context>
chip_gen: v6e
topology: v6e:2x2x1
jax: 0.10.0
libtpu: 0.0.40
codegen_flags: <defaults>
</compile_context>

<pallas_src>
import jax
import jax.numpy as jnp
from jax.experimental import pallas as pl
from jax.experimental.pallas import tpu as pltpu

CLIP_DIM = 768     # CLIP-L hidden size (hard-coded by Flux1ClipL padding)
T5_DIM = 4096      # Flux cross-attention width (hard-coded pad target)
EMB_DIM = 256      # synthetic token-embedding width (lane-aligned)
TILE_M = 256       # target MXU rows per branch matmul per grid step


def flux_cond_kernel(l_ref, t5_ref, wl_ref, bl_ref, wt5_ref, bt5_ref,
                     cross_ref):
    """Fused FluxCond forward for one batch-tile (NB batch elements).

    l_ref    : (NB*T_l,  EMB_DIM)  bf16   flattened CLIP token embeddings
    t5_ref   : (NB*T_t5, EMB_DIM)  bf16   flattened T5 token embeddings
    wl_ref   : (EMB_DIM, 768)      bf16   synthetic CLIP-L projection
    bl_ref   : (1, 768)            f32
    wt5_ref  : (EMB_DIM, 4096)     bf16   synthetic T5-XXL projection
    bt5_ref  : (1, 4096)           f32
    cross_ref: (NB, T_l+T_t5, 4096) out_dtype  output 'crossattn' tile
    """
    nb = cross_ref.shape[0]
    m_l, _ = l_ref.shape
    m_t5 = t5_ref.shape[0]
    t_l = m_l // nb
    t_t5 = m_t5 // nb
    out_dtype = cross_ref.dtype

    # --- CLIP-L branch: bf16 operands on the MXU, f32 accumulation ---------
    h_l = jnp.tanh(
        jnp.dot(l_ref[...], wl_ref[...], preferred_element_type=jnp.float32)
        + bl_ref[...])                                    # (NB*T_l, 768) f32
    # f32 reshape (sublane-tile aligned: 8-row slices), then cast for store.
    h_l3 = h_l.reshape(nb, t_l, CLIP_DIM).astype(out_dtype)
    # Build the zero-padded 4096-wide slab in registers -> one full-width
    # (unmasked-lane) store per CLIP region instead of two partial stores.
    pad = jnp.zeros((nb, t_l, T5_DIM - CLIP_DIM), out_dtype)
    cross_ref[:, :t_l, :] = jnp.concatenate([h_l3, pad], axis=-1)

    # --- T5-XXL branch ------------------------------------------------------
    h_t5 = jnp.tanh(
        jnp.dot(t5_ref[...], wt5_ref[...], preferred_element_type=jnp.float32)
        + bt5_ref[...])                                   # (NB*T_t5, 4096) f32
    cross_ref[:, t_l:, :] = h_t5.reshape(nb, t_t5, T5_DIM).astype(out_dtype)


def _batch_tile(b, t_l, t_t5):
    """Largest NB <= B with NB*T ~ TILE_M rows and B % NB == 0."""
    nb = max(1, TILE_M // max(t_l, t_t5))
    nb = min(nb, b)
    while b % nb:
        nb -= 1
    return nb


def flux_cond_forward(l_emb, t5_emb, w_l, b_l, w_t5, b_t5,
                      out_dtype=jnp.bfloat16):
    """Wrapper: grid over batch tiles, batch folded into the matmul M dim."""
    B, T_l, D = l_emb.shape
    _, T_t5, _ = t5_emb.shape
    T_total = T_l + T_t5
    NB = _batch_tile(B, T_l, T_t5)

    # bf16 operands for the MXU; the (free, HBM-side) flatten folds batch
    # into full-height MXU tiles. Biases stay f32 for the post-matmul add.
    l_flat = l_emb.reshape(B * T_l, D).astype(jnp.bfloat16)
    t5_flat = t5_emb.reshape(B * T_t5, D).astype(jnp.bfloat16)
    wl_bf = w_l.astype(jnp.bfloat16)
    wt5_bf = w_t5.astype(jnp.bfloat16)
    bl_f32 = b_l.astype(jnp.float32)
    bt5_f32 = b_t5.astype(jnp.float32)

    grid_spec = pltpu.PrefetchScalarGridSpec(
        num_scalar_prefetch=0,
        grid=(B // NB,),
        in_specs=[
            pl.BlockSpec((NB * T_l, D), lambda i: (i, 0)),
            pl.BlockSpec((NB * T_t5, D), lambda i: (i, 0)),
            # grid-invariant weights / biases (same block every step; the
            # pipeline re-uses them without re-fetching)
            pl.BlockSpec((D, CLIP_DIM), lambda i: (0, 0)),
            pl.BlockSpec((1, CLIP_DIM), lambda i: (0, 0)),
            pl.BlockSpec((D, T5_DIM), lambda i: (0, 0)),
            pl.BlockSpec((1, T5_DIM), lambda i: (0, 0)),
        ],
        out_specs=pl.BlockSpec((NB, T_total, T5_DIM), lambda i: (i, 0, 0)),
    )

    crossattn = pl.pallas_call(
        flux_cond_kernel,
        out_shape=jax.ShapeDtypeStruct((B, T_total, T5_DIM), out_dtype),
        grid_spec=grid_spec,
        compiler_params=pltpu.CompilerParams(
            dimension_semantics=("parallel",)),
    )(l_flat, t5_flat, wl_bf, bl_f32, wt5_bf, bt5_f32)

    # Pooled 'vector' = last CLIP-position hidden state. Columns >= 768 of
    # that crossattn row are the zero pad, so slicing the first 768 lanes of
    # crossattn is exact and removes a separate tiny output DMA stream.
    # TODO(synk): real CLIP pooling uses the EOS-token position; here we pool
    # the last sequence position of the synthetic encoder.
    vector = crossattn[:, T_l - 1, :CLIP_DIM]
    return {"crossattn": crossattn, "vector": vector}


def reference_forward(l_emb, t5_emb, w_l, b_l, w_t5, b_t5):
    """Pure-JAX f32 reference of the same semantics (correctness check)."""
    h_l = jnp.tanh(jnp.einsum("btd,de->bte", l_emb, w_l) + b_l)       # (B,T_l,768)
    h_t5 = jnp.tanh(jnp.einsum("btd,de->bte", t5_emb, w_t5) + b_t5)   # (B,T_t5,4096)
    l_padded = jnp.pad(h_l, ((0, 0), (0, 0), (0, T5_DIM - CLIP_DIM)))
    crossattn = jnp.concatenate([l_padded, h_t5], axis=-2)
    vector = h_l[:, -1, :]
    return {"crossattn": crossattn, "vector": vector}


if __name__ == "__main__":
    key = jax.random.PRNGKey(0)
    k_tok_l, k_tok_t5, k_emb, k_wl, k_bl, k_wt5, k_bt5 = jax.random.split(key, 7)

    B = 2          # batch (number of prompts)
    T_L = 8        # CLIP-L token count (drives t5 token_count in forward)
    T_T5 = 8       # T5 token count
    VOCAB = 64

    # --- glue: "tokenization" + embedding lookup (untranslatable tokenizer) ---
    tok_l = jax.random.randint(k_tok_l, (B, T_L), 0, VOCAB)
    tok_t5 = jax.random.randint(k_tok_t5, (B, T_T5), 0, VOCAB)
    emb_table = jax.random.normal(k_emb, (VOCAB, EMB_DIM), jnp.float32) * 0.02
    l_emb = jnp.take(emb_table, tok_l, axis=0)     # (B, T_L, EMB_DIM)
    t5_emb = jnp.take(emb_table, tok_t5, axis=0)   # (B, T_T5, EMB_DIM)

    # --- deterministic synthetic encoder parameters ---
    w_l = jax.random.normal(k_wl, (EMB_DIM, CLIP_DIM), jnp.float32) * 0.05
    b_l = jax.random.normal(k_bl, (1, CLIP_DIM), jnp.float32) * 0.01
    w_t5 = jax.random.normal(k_wt5, (EMB_DIM, T5_DIM), jnp.float32) * 0.05
    b_t5 = jax.random.normal(k_bt5, (1, T5_DIM), jnp.float32) * 0.01

    out = flux_cond_forward(l_emb, t5_emb, w_l, b_l, w_t5, b_t5)
    jax.block_until_ready(out)

    ref = reference_forward(l_emb, t5_emb, w_l, b_l, w_t5, b_t5)
    assert out["crossattn"].shape == (B, T_L + T_T5, T5_DIM)
    assert out["vector"].shape == (B, CLIP_DIM)
    # bf16 operands + bf16 outputs vs. an f32 reference -> loosened tolerance.
    assert jnp.allclose(out["crossattn"].astype(jnp.float32), ref["crossattn"],
                        atol=2e-2, rtol=2e-2)
    assert jnp.allclose(out["vector"].astype(jnp.float32), ref["vector"],
                        atol=2e-2, rtol=2e-2)

    print("KERNEL_OK")
</pallas_src>

<mosaic_0001>
module attributes {stable_mosaic.version = 11 : i64} {
  func.func @flux_cond_kernel(%arg0: i32, %arg1: memref<16x256xbf16, #tpu.memory_space<vmem>>, %arg2: memref<16x256xbf16, #tpu.memory_space<vmem>>, %arg3: memref<256x768xbf16, #tpu.memory_space<vmem>>, %arg4: memref<1x768xf32, #tpu.memory_space<vmem>>, %arg5: memref<256x4096xbf16, #tpu.memory_space<vmem>>, %arg6: memref<1x4096xf32, #tpu.memory_space<vmem>>, %arg7: memref<2x16x4096xbf16, #tpu.memory_space<vmem>>) attributes {dimension_semantics = [#tpu.dimension_semantics<parallel>], iteration_bounds = array<i64: 1>, scalar_prefetch = 0 : i64, scratch_operands = 0 : i64, tpu.core_type = #tpu.core_type<tc>, window_params = [{transform_indices = @transform_0, window_bounds = array<i64: 16, 256>}, {transform_indices = @transform_1, window_bounds = array<i64: 16, 256>}, {pipeline_mode = #tpu.pipeline_mode<synchronous>, transform_indices = @transform_2, window_bounds = array<i64: 256, 768>}, {pipeline_mode = #tpu.pipeline_mode<synchronous>, transform_indices = @transform_3, window_bounds = array<i64: 1, 768>}, {pipeline_mode = #tpu.pipeline_mode<synchronous>, transform_indices = @transform_4, window_bounds = array<i64: 256, 4096>}, {pipeline_mode = #tpu.pipeline_mode<synchronous>, transform_indices = @transform_5, window_bounds = array<i64: 1, 4096>}, {transform_indices = @transform_6, window_bounds = array<i64: 2, 16, 4096>}]} {
    %c0 = arith.constant 0 : index
    %c0_0 = arith.constant 0 : index
    %0 = vector.load %arg1[%c0, %c0_0] : memref<16x256xbf16, #tpu.memory_space<vmem>>, vector<16x256xbf16>
    %c0_1 = arith.constant 0 : index
    %c0_2 = arith.constant 0 : index
    %1 = vector.load %arg3[%c0_1, %c0_2] : memref<256x768xbf16, #tpu.memory_space<vmem>>, vector<256x768xbf16>
    %cst = arith.constant dense<0.000000e+00> : vector<16x768xf32>
    %2 = tpu.matmul %0, %1, %cst {dimension_numbers = #tpu.dot_dimension_numbers<[1], [0], [0], [1], [0, 0, 1, 1], [], []>} : vector<16x256xbf16>, vector<256x768xbf16>, vector<16x768xf32> -> vector<16x768xf32>
    %c0_3 = arith.constant 0 : index
    %c0_4 = arith.constant 0 : index
    %3 = vector.load %arg4[%c0_3, %c0_4] : memref<1x768xf32, #tpu.memory_space<vmem>>, vector<1x768xf32>
    %4 = vector.broadcast %3 : vector<1x768xf32> to vector<16x768xf32>
    %5 = arith.addf %2, %4 : vector<16x768xf32>
    %6 = math.tanh %5 : vector<16x768xf32>
    %7 = vector.shape_cast %6 : vector<16x768xf32> to vector<2x8x768xf32>
    %8 = arith.truncf %7 : vector<2x8x768xf32> to vector<2x8x768xbf16>
    %cst_5 = arith.constant 0.000000e+00 : bf16
    %9 = vector.broadcast %cst_5 : bf16 to vector<2x8x3328xbf16>
    %10 = tpu.concatenate %8, %9 in 2 : vector<2x8x768xbf16>, vector<2x8x3328xbf16> -> vector<2x8x4096xbf16>
    %c0_6 = arith.constant 0 : index
    %c0_7 = arith.constant 0 : index
    %c0_8 = arith.constant 0 : index
    %11 = vector.load %arg7[%c0_6, %c0_7, %c0_8] : memref<2x16x4096xbf16, #tpu.memory_space<vmem>>, vector<2x8x4096xbf16>
    tpu.vector_store %arg7[%c0_6, %c0_7, %c0_8], %10 {strides = array<i32>} : memref<2x16x4096xbf16, #tpu.memory_space<vmem>>, vector<2x8x4096xbf16>,
    %c0_9 = arith.constant 0 : index
    %c0_10 = arith.constant 0 : index
    %12 = vector.load %arg2[%c0_9, %c0_10] : memref<16x256xbf16, #tpu.memory_space<vmem>>, vector<16x256xbf16>
    %c0_11 = arith.constant 0 : index
    %c0_12 = arith.constant 0 : index
    %13 = vector.load %arg5[%c0_11, %c0_12] : memref<256x4096xbf16, #tpu.memory_space<vmem>>, vector<256x4096xbf16>
    %cst_13 = arith.constant dense<0.000000e+00> : vector<16x4096xf32>
    %14 = tpu.matmul %12, %13, %cst_13 {dimension_numbers = #tpu.dot_dimension_numbers<[1], [0], [0], [1], [0, 0, 1, 1], [], []>} : vector<16x256xbf16>, vector<256x4096xbf16>, vector<16x4096xf32> -> vector<16x4096xf32>
    %c0_14 = arith.constant 0 : index
    %c0_15 = arith.constant 0 : index
    %15 = vector.load %arg6[%c0_14, %c0_15] : memref<1x4096xf32, #tpu.memory_space<vmem>>, vector<1x4096xf32>
    %16 = vector.broadcast %15 : vector<1x4096xf32> to vector<16x4096xf32>
    %17 = arith.addf %14, %16 : vector<16x4096xf32>
    %18 = math.tanh %17 : vector<16x4096xf32>
    %19 = vector.shape_cast %18 : vector<16x4096xf32> to vector<2x8x4096xf32>
    %20 = arith.truncf %19 : vector<2x8x4096xf32> to vector<2x8x4096xbf16>
    %c0_16 = arith.constant 0 : index
    %c8 = arith.constant 8 : index
    %c0_17 = arith.constant 0 : index
    %21 = vector.load %arg7[%c0_16, %c8, %c0_17] : memref<2x16x4096xbf16, #tpu.memory_space<vmem>>, vector<2x8x4096xbf16>
    tpu.vector_store %arg7[%c0_16, %c8, %c0_17], %20 {strides = array<i32>} : memref<2x16x4096xbf16, #tpu.memory_space<vmem>>, vector<2x8x4096xbf16>,
    return
  }
  func.func @transform_0(%arg0: i32) -> (i32, i32) {
    %c0_i32 = arith.constant 0 : i32
    %c0_i32_0 = arith.constant 0 : i32
    return %arg0, %c0_i32 : i32, i32
  }
  func.func @transform_1(%arg0: i32) -> (i32, i32) {
    %c0_i32 = arith.constant 0 : i32
    %c0_i32_0 = arith.constant 0 : i32
    return %arg0, %c0_i32 : i32, i32
  }
  func.func @transform_2(%arg0: i32) -> (i32, i32) {
    %c0_i32 = arith.constant 0 : i32
    %c0_i32_0 = arith.constant 0 : i32
    %c0_i32_1 = arith.constant 0 : i32
    return %c0_i32, %c0_i32_0 : i32, i32
  }
  func.func @transform_3(%arg0: i32) -> (i32, i32) {
    %c0_i32 = arith.constant 0 : i32
    %c0_i32_0 = arith.constant 0 : i32
    %c0_i32_1 = arith.constant 0 : i32
    return %c0_i32, %c0_i32_0 : i32, i32
  }
  func.func @transform_4(%arg0: i32) -> (i32, i32) {
    %c0_i32 = arith.constant 0 : i32
    %c0_i32_0 = arith.constant 0 : i32
    %c0_i32_1 = arith.constant 0 : i32
    return %c0_i32, %c0_i32_0 : i32, i32
  }
  func.func @transform_5(%arg0: i32) -> (i32, i32) {
    %c0_i32 = arith.constant 0 : i32
    %c0_i32_0 = arith.constant 0 : i32
    %c0_i32_1 = arith.constant 0 : i32
    return %c0_i32, %c0_i32_0 : i32, i32
  }
  func.func @transform_6(%arg0: i32) -> (i32, i32, i32) {
    %c0_i32 = arith.constant 0 : i32
    %c0_i32_0 = arith.constant 0 : i32
    %c0_i32_1 = arith.constant 0 : i32
    return %arg0, %c0_i32, %c0_i32_0 : i32, i32, i32
  }
}

</mosaic_0001>

<llo_original>
// kernel: tpu_custom_call.1
$region0: #{tpu_custom_call.1}
  #allocation0 [shape = 'u32[]', space=smem, size = 0x4, offset = 0x4, fixed_abs, tag = 'smem constant byte address 0x4 - core index']
  #allocation1 [shape = 'u32[144,128]{1,0:T(1,128)}', space=vmem, size = 0x12000, scoped, tag = 'internal scratch']
  %s0 = inlined_call_operand.hbm [shape: bf16[16,256], index: 0, kind: input, shape index: {}]
  %s1 = inlined_call_operand.hbm [shape: bf16[16,256], index: 1, kind: input, shape index: {}]
  %s2 = inlined_call_operand.hbm [shape: bf16[256,768], index: 2, kind: input, shape index: {}]
  %s3 = inlined_call_operand.hbm [shape: f32[1,768], index: 3, kind: input, shape index: {}]
  %s4 = inlined_call_operand.hbm [shape: bf16[256,4096], index: 4, kind: input, shape index: {}]
  %s5 = inlined_call_operand.hbm [shape: f32[1,4096], index: 5, kind: input, shape index: {}]
  %s6 = inlined_call_operand.hbm [shape: bf16[2,16,4096], index: 6, kind: output, shape index: {}]
  %s7 = sld [smem:[#allocation0]]
  $region58: #{tpu_custom_call.1} parent=0
    _
  %s9 = ssub.s32 1, %s7
  %s10 = scalar_select 0, %s9, %s7
  $region1: #{tpu_custom_call.1} parent=0
    #allocation2 [shape = 'u8[8192]{0}', space=vmem, size = 0x2000, scoped, tag = 'input window, operand 0, single buffered']
    #allocation3 [shape = 's32[1]{0}', space=sflag, size = 0x4, scoped, tag = 'scoped memory for tpu_custom_call.1']
    #allocation4 [shape = 's32[1]{0}', space=sflag, size = 0x4, scoped, tag = 'scoped memory for tpu_custom_call.1']
    #allocation5 [shape = 'u8[8192]{0}', space=vmem, size = 0x2000, scoped, tag = 'input window, operand 1, single buffered']
    #allocation6 [shape = 's32[1]{0}', space=sflag, size = 0x4, scoped, tag = 'scoped memory for tpu_custom_call.1']
    #allocation7 [shape = 'u8[393216]{0}', space=vmem, size = 0x60000, scoped, tag = 'input window, operand 2, single buffered']
    #allocation8 [shape = 'u8[3072]{0}', space=vmem, size = 0xc00, scoped, tag = 'input window, operand 3, single buffered']
    #allocation9 [shape = 's32[1]{0}', space=sflag, size = 0x4, scoped, tag = 'scoped memory for tpu_custom_call.1']
    #allocation10 [shape = 'u8[2097152]{0}', space=vmem, size = 0x200000, scoped, tag = 'input window, operand 4, single buffered']
    #allocation11 [shape = 'u8[16384]{0}', space=vmem, size = 0x4000, scoped, tag = 'input window, operand 5, single buffered']
    #allocation12 [shape = 's32[1]{0}', space=sflag, size = 0x4, scoped, tag = 'scoped memory for tpu_custom_call.1']
    #allocation13 [shape = 'u8[262144]{0}', space=vmem, size = 0x40000, scoped, tag = 'output window, operand 0, single buffered']
    %11 = vsyncpa [#allocation3], 0
    %12 = vsyncpa [#allocation6], 0
    %13 = vsyncpa [#allocation9], 0
    %14 = vsyncpa [#allocation12], 0
    %15 = vsyncpa [#allocation4], 0
    // Predicated region
    $region2: #{tpu_custom_call.1} parent=1 // pred_check
      _
    $region3: #{tpu_custom_call.1} parent=1 // pred_check_branch
      %17 = sbr.rel (0) target = $region5
    $region4: #{tpu_custom_call.1} parent=1 // pred_region
      %s19 = ssub.s32 256, 256
      %20 = vsyncadd [#allocation3], %s19
      %s21 = sshll.u32 [#allocation2], 4
      %s22 = int_to_ptr.vmem [resolvable:$true] %s21
      %27 = dma.hbm_to_vmem [thread:$0]  %s0, 256, %s22, [#allocation3], 128, 128, 8
    $region5: #{tpu_custom_call.1} parent=1 // pred_fallthru
      _
    // Predicated region
    $region6: #{tpu_custom_call.1} parent=1 // pred_check
      _
    $region7: #{tpu_custom_call.1} parent=1 // pred_check_branch
      %29 = sbr.rel (0) target = $region9
    $region8: #{tpu_custom_call.1} parent=1 // pred_region
      %s31 = ssub.s32 256, 256
      %32 = vsyncadd [#allocation6], %s31
      %s33 = sshll.u32 [#allocation5], 4
      %s34 = int_to_ptr.vmem [resolvable:$true] %s33
      %39 = dma.hbm_to_vmem [thread:$0]  %s1, 256, %s34, [#allocation6], 128, 128, 8
    $region9: #{tpu_custom_call.1} parent=1 // pred_fallthru
      _
    // Predicated region
    $region10: #{tpu_custom_call.1} parent=1 // pred_check
      _
    $region11: #{tpu_custom_call.1} parent=1 // pred_check_branch
      %41 = sbr.rel (0) target = $region13
    $region12: #{tpu_custom_call.1} parent=1 // pred_region
      %s43 = ssub.s32 12288, 12288
      %44 = vsyncadd [#allocation6], %s43
      %s45 = sshll.u32 [#allocation7], 4
      %s46 = int_to_ptr.vmem [resolvable:$true] %s45
      %51 = dma.hbm_to_vmem [thread:$0]  %s2, 12288, %s46, [#allocation6], 384, 384, 24
    $region13: #{tpu_custom_call.1} parent=1 // pred_fallthru
      _
    // Predicated region
    $region14: #{tpu_custom_call.1} parent=1 // pred_check
      _
    $region15: #{tpu_custom_call.1} parent=1 // pred_check_branch
      %53 = sbr.rel (0) target = $region17
    $region16: #{tpu_custom_call.1} parent=1 // pred_region
      %s55 = ssub.s32 96, 96
      %56 = vsyncadd [#allocation9], %s55
      %s58 = sshll.u32 [#allocation8], 4
      %s59 = int_to_ptr.vmem [resolvable:$true] %s58
      %61 = dma.hbm_to_vmem [thread:$0]  %s3, 96, %s59, [#allocation9]
    $region17: #{tpu_custom_call.1} parent=1 // pred_fallthru
      _
    // Predicated region
    $region18: #{tpu_custom_call.1} parent=1 // pred_check
      _
    $region19: #{tpu_custom_call.1} parent=1 // pred_check_branch
      %63 = sbr.rel (0) target = $region21
    $region20: #{tpu_custom_call.1} parent=1 // pred_region
      %s65 = ssub.s32 65536, 65536
      %66 = vsyncadd [#allocation9], %s65
      %s67 = sshll.u32 [#allocation10], 4
      %s68 = int_to_ptr.vmem [resolvable:$true] %s67
      %73 = dma.hbm_to_vmem [thread:$0]  %s4, 65536, %s68, [#allocation9], 2048, 2048, 128
    $region21: #{tpu_custom_call.1} parent=1 // pred_fallthru
      _
    // Predicated region
    $region22: #{tpu_custom_call.1} parent=1 // pred_check
      _
    $region23: #{tpu_custom_call.1} parent=1 // pred_check_branch
      %75 = sbr.rel (0) target = $region25
    $region24: #{tpu_custom_call.1} parent=1 // pred_region
      %s77 = ssub.s32 512, 512
      %78 = vsyncadd [#allocation12], %s77
      %s80 = sshll.u32 [#allocation11], 4
      %s81 = int_to_ptr.vmem [resolvable:$true] %s80
      %83 = dma.hbm_to_vmem [thread:$0]  %s5, 512, %s81, [#allocation12]
    $region25: #{tpu_custom_call.1} parent=1 // pred_fallthru
      _
    // Predicated region
    $region26: #{tpu_custom_call.1} parent=1 // pred_check
      _
    $region27: #{tpu_custom_call.1} parent=1 // pred_check_branch
      %85 = sbr.rel (0) target = $region29
    $region28: #{tpu_custom_call.1} parent=1 // pred_region
      %86 = dma.done [#allocation3], 256
    $region29: #{tpu_custom_call.1} parent=1 // pred_fallthru
      _
    // Predicated region
    $region30: #{tpu_custom_call.1} parent=1 // pred_check
      _
    $region31: #{tpu_custom_call.1} parent=1 // pred_check_branch
      %88 = sbr.rel (0) target = $region33
    $region32: #{tpu_custom_call.1} parent=1 // pred_region
      %89 = dma.done [#allocation6], 256
    $region33: #{tpu_custom_call.1} parent=1 // pred_fallthru
      _
    // Predicated region
    $region34: #{tpu_custom_call.1} parent=1 // pred_check
      _
    $region35: #{tpu_custom_call.1} parent=1 // pred_check_branch
      %91 = sbr.rel (0) target = $region37
    $region36: #{tpu_custom_call.1} parent=1 // pred_region
      %92 = dma.done [#allocation6], 12288
    $region37: #{tpu_custom_call.1} parent=1 // pred_fallthru
      _
    // Predicated region
    $region38: #{tpu_custom_call.1} parent=1 // pred_check
      _
    $region39: #{tpu_custom_call.1} parent=1 // pred_check_branch
      %94 = sbr.rel (0) target = $region41
    $region40: #{tpu_custom_call.1} parent=1 // pred_region
      %95 = dma.done [#allocation9], 96
    $region41: #{tpu_custom_call.1} parent=1 // pred_fallthru
      _
    // Predicated region
    $region42: #{tpu_custom_call.1} parent=1 // pred_check
      _
    $region43: #{tpu_custom_call.1} parent=1 // pred_check_branch
      %97 = sbr.rel (0) target = $region45
    $region44: #{tpu_custom_call.1} parent=1 // pred_region
      %98 = dma.done [#allocation9], 65536
    $region45: #{tpu_custom_call.1} parent=1 // pred_fallthru
      _
    // Predicated region
    $region46: #{tpu_custom_call.1} parent=1 // pred_check
      _
    $region47: #{tpu_custom_call.1} parent=1 // pred_check_branch
      %100 = sbr.rel (0) target = $region49
    $region48: #{tpu_custom_call.1} parent=1 // pred_region
      %101 = dma.done [#allocation12], 512
    $region49: #{tpu_custom_call.1} parent=1 // pred_fallthru
      _
    %v103 = vld [vmem:[#allocation2] sm:$0xff]
    %v104 = vld [vmem:[#allocation2 + $0x8] sm:$0xff]
    %v105 = vld [vmem:[#allocation7] sm:$0xff]
    %v106 = vld [vmem:[#allocation7 + $0x8] sm:$0xff]
    %v107 = vld [vmem:[#allocation7 + $0x10] sm:$0xff]
    %v108 = vld [vmem:[#allocation7 + $0x18] sm:$0xff]
    %v109 = vld [vmem:[#allocation7 + $0x20] sm:$0xff]
    %v110 = vld [vmem:[#allocation7 + $0x28] sm:$0xff]
    %v111 = vld [vmem:[#allocation7 + $0x30] sm:$0xff]
    %v112 = vld [vmem:[#allocation7 + $0x38] sm:$0xff]
    %v113 = vld [vmem:[#allocation7 + $0x40] sm:$0xff]
    %v114 = vld [vmem:[#allocation7 + $0x48] sm:$0xff]
    %v115 = vld [vmem:[#allocation7 + $0x50] sm:$0xff]
    %v116 = vld [vmem:[#allocation7 + $0x58] sm:$0xff]
    %v117 = vld [vmem:[#allocation7 + $0x60] sm:$0xff]
    %v118 = vld [vmem:[#allocation7 + $0x68] sm:$0xff]
    %v119 = vld [vmem:[#allocation7 + $0x70] sm:$0xff]
    %v120 = vld [vmem:[#allocation7 + $0x78] sm:$0xff]
    %v121 = vld [vmem:[#allocation7 + $0x80] sm:$0xff]
    %v122 = vld [vmem:[#allocation7 + $0x88] sm:$0xff]
    %v123 = vld [vmem:[#allocation7 + $0x90] sm:$0xff]
    %v124 = vld [vmem:[#allocation7 + $0x98] sm:$0xff]
    %v125 = vld [vmem:[#allocation7 + $0xa0] sm:$0xff]
    %v126 = vld [vmem:[#allocation7 + $0xa8] sm:$0xff]
    %v127 = vld [vmem:[#allocation7 + $0xb0] sm:$0xff]
    %v128 = vld [vmem:[#allocation7 + $0xb8] sm:$0xff]
    %v129 = vld [vmem:[#allocation7 + $0xc0] sm:$0xff]
    %v130 = vld [vmem:[#allocation7 + $0xc8] sm:$0xff]
    %v131 = vld [vmem:[#allocation7 + $0xd0] sm:$0xff]
    %v132 = vld [vmem:[#allocation7 + $0xd8] sm:$0xff]
    %v133 = vld [vmem:[#allocation7 + $0xe0] sm:$0xff]
    %v134 = vld [vmem:[#allocation7 + $0xe8] sm:$0xff]
    %v135 = vld [vmem:[#allocation7 + $0xf0] sm:$0xff]
    %v136 = vld [vmem:[#allocation7 + $0xf8] sm:$0xff]
    %v137 = vld [vmem:[#allocation7 + $0x100] sm:$0xff]
    %v138 = vld [vmem:[#allocation7 + $0x108] sm:$0xff]
    %v139 = vld [vmem:[#allocation7 + $0x110] sm:$0xff]
    %v140 = vld [vmem:[#allocation7 + $0x118] sm:$0xff]
    %v141 = vld [vmem:[#allocation7 + $0x120] sm:$0xff]
    %v142 = vld [vmem:[#allocation7 + $0x128] sm:$0xff]
    %v143 = vld [vmem:[#allocation7 + $0x130] sm:$0xff]
    %v144 = vld [vmem:[#allocation7 + $0x138] sm:$0xff]
    %v145 = vld [vmem:[#allocation7 + $0x140] sm:$0xff]
    %v146 = vld [vmem:[#allocation7 + $0x148] sm:$0xff]
    %v147 = vld [vmem:[#allocation7 + $0x150] sm:$0xff]
    %v148 = vld [vmem:[#allocation7 + $0x158] sm:$0xff]
    %v149 = vld [vmem:[#allocation7 + $0x160] sm:$0xff]
    %v150 = vld [vmem:[#allocation7 + $0x168] sm:$0xff]
    %v151 = vld [vmem:[#allocation7 + $0x170] sm:$0xff]
    %v152 = vld [vmem:[#allocation7 + $0x178] sm:$0xff]
    %v153 = vld [vmem:[#allocation7 + $0x180] sm:$0xff]
    %v154 = vld [vmem:[#allocation7 + $0x188] sm:$0xff]
    %v155 = vld [vmem:[#allocation7 + $0x190] sm:$0xff]
    %v156 = vld [vmem:[#allocation7 + $0x198] sm:$0xff]
    %v157 = vld [vmem:[#allocation7 + $0x1a0] sm:$0xff]
    %v158 = vld [vmem:[#allocation7 + $0x1a8] sm:$0xff]
    %v159 = vld [vmem:[#allocation7 + $0x1b0] sm:$0xff]
    %v160 = vld [vmem:[#allocation7 + $0x1b8] sm:$0xff]
    %v161 = vld [vmem:[#allocation7 + $0x1c0] sm:$0xff]
    %v162 = vld [vmem:[#allocation7 + $0x1c8] sm:$0xff]
    %v163 = vld [vmem:[#allocation7 + $0x1d0] sm:$0xff]
    %v164 = vld [vmem:[#allocation7 + $0x1d8] sm:$0xff]
    %v165 = vld [vmem:[#allocation7 + $0x1e0] sm:$0xff]
    %v166 = vld [vmem:[#allocation7 + $0x1e8] sm:$0xff]
    %v167 = vld [vmem:[#allocation7 + $0x1f0] sm:$0xff]
    %v168 = vld [vmem:[#allocation7 + $0x1f8] sm:$0xff]
    %v169 = vld [vmem:[#allocation7 + $0x200] sm:$0xff]
    %v170 = vld [vmem:[#allocation7 + $0x208] sm:$0xff]
    %v171 = vld [vmem:[#allocation7 + $0x210] sm:$0xff]
    %v172 = vld [vmem:[#allocation7 + $0x218] sm:$0xff]
    %v173 = vld [vmem:[#allocation7 + $0x220] sm:$0xff]
    %v174 = vld [vmem:[#allocation7 + $0x228] sm:$0xff]
    %v175 = vld [vmem:[#allocation7 + $0x230] sm:$0xff]
    %v176 = vld [vmem:[#allocation7 + $0x238] sm:$0xff]
    %v177 = vld [vmem:[#allocation7 + $0x240] sm:$0xff]
    %v178 = vld [vmem:[#allocation7 + $0x248] sm:$0xff]
    %v179 = vld [vmem:[#allocation7 + $0x250] sm:$0xff]
    %v180 = vld [vmem:[#allocation7 + $0x258] sm:$0xff]
    %v181 = vld [vmem:[#allocation7 + $0x260] sm:$0xff]
    %v182 = vld [vmem:[#allocation7 + $0x268] sm:$0xff]
    %v183 = vld [vmem:[#allocation7 + $0x270] sm:$0xff]
    %v184 = vld [vmem:[#allocation7 + $0x278] sm:$0xff]
    %v185 = vld [vmem:[#allocation7 + $0x280] sm:$0xff]
    %v186 = vld [vmem:[#allocation7 + $0x288] sm:$0xff]
    %v187 = vld [vmem:[#allocation7 + $0x290] sm:$0xff]
    %v188 = vld [vmem:[#allocation7 + $0x298] sm:$0xff]
    %v189 = vld [vmem:[#allocation7 + $0x2a0] sm:$0xff]
    %v190 = vld [vmem:[#allocation7 + $0x2a8] sm:$0xff]
    %v191 = vld [vmem:[#allocation7 + $0x2b0] sm:$0xff]
    %v192 = vld [vmem:[#allocation7 + $0x2b8] sm:$0xff]
    %v193 = vld [vmem:[#allocation7 + $0x2c0] sm:$0xff]
    %v194 = vld [vmem:[#allocation7 + $0x2c8] sm:$0xff]
    %v195 = vld [vmem:[#allocation7 + $0x2d0] sm:$0xff]
    %v196 = vld [vmem:[#allocation7 + $0x2d8] sm:$0xff]
    %v197 = vld [vmem:[#allocation7 + $0x2e0] sm:$0xff]
    %v198 = vld [vmem:[#allocation7 + $0x2e8] sm:$0xff]
    %v199 = vld [vmem:[#allocation7 + $0x2f0] sm:$0xff]
    %v200 = vld [vmem:[#allocation7 + $0x2f8] sm:$0xff]
    %v201 = vld [vmem:[#allocation8] sm:$0x3f]
    %v203 = vlaneseq
    %v204 = vshrl.u32 %v203, 7
    %v205 = vsub.s32 0, %v204
    %v206 = vrot.slane %v201, %v205
    %v207 = vlaneseq
    %v208 = vshrl.u32 %v207, 7
    %v209 = vsub.s32 1, %v208
    %v210 = vrot.slane %v201, %v209
    %v211 = vlaneseq
    %v212 = vshrl.u32 %v211, 7
    %v213 = vsub.s32 2, %v212
    %v214 = vrot.slane %v201, %v213
    %v215 = vlaneseq
    %v216 = vshrl.u32 %v215, 7
    %v217 = vsub.s32 3, %v216
    %v218 = vrot.slane %v201, %v217
    %v219 = vlaneseq
    %v220 = vshrl.u32 %v219, 7
    %v221 = vsub.s32 4, %v220
    %v222 = vrot.slane %v201, %v221
    %v223 = vlaneseq
    %v224 = vshrl.u32 %v223, 7
    %v225 = vsub.s32 5, %v224
    %v226 = vrot.slane %v201, %v225
    %v235 = vunpack.c.l.b16 %v103
    %v236 = vunpack.c.h.b16 %v103
    %v237 = vunpack.c.l.b16 %v104
    %v238 = vunpack.c.h.b16 %v104
    %v239 = vpack.c.b16 %v237, %v235
    %v240 = vpack.c.b16 %v238, %v236
    %v339 = vunpack.c.l.b16 %v105
    %v340 = vunpack.c.h.b16 %v105
    %v341 = vunpack.c.l.b16 %v106
    %v342 = vunpack.c.h.b16 %v106
    %v343 = vunpack.c.l.b16 %v107
    %v344 = vunpack.c.h.b16 %v107
    %v345 = vunpack.c.l.b16 %v108
    %v346 = vunpack.c.h.b16 %v108
    %v347 = vunpack.c.l.b16 %v109
    %v348 = vunpack.c.h.b16 %v109
    %v349 = vunpack.c.l.b16 %v110
    %v350 = vunpack.c.h.b16 %v110
    %v351 = vunpack.c.l.b16 %v111
    %v352 = vunpack.c.h.b16 %v111
    %v353 = vunpack.c.l.b16 %v112
    %v354 = vunpack.c.h.b16 %v112
    %v355 = vunpack.c.l.b16 %v113
    %v356 = vunpack.c.h.b16 %v113
    %v357 = vunpack.c.l.b16 %v114
    %v358 = vunpack.c.h.b16 %v114
    %v359 = vunpack.c.l.b16 %v115
    %v360 = vunpack.c.h.b16 %v115
    %v361 = vunpack.c.l.b16 %v116
    %v362 = vunpack.c.h.b16 %v116
    %v363 = vunpack.c.l.b16 %v117
    %v364 = vunpack.c.h.b16 %v117
    %v365 = vunpack.c.l.b16 %v118
    %v366 = vunpack.c.h.b16 %v118
    %v367 = vunpack.c.l.b16 %v119
    %v368 = vunpack.c.h.b16 %v119
    %v369 = vunpack.c.l.b16 %v120
    %v370 = vunpack.c.h.b16 %v120
    %v371 = vunpack.c.l.b16 %v121
    %v372 = vunpack.c.h.b16 %v121
    %v373 = vunpack.c.l.b16 %v122
    %v374 = vunpack.c.h.b16 %v122
    %v375 = vunpack.c.l.b16 %v123
    %v376 = vunpack.c.h.b16 %v123
    %v377 = vunpack.c.l.b16 %v124
    %v378 = vunpack.c.h.b16 %v124
    %v379 = vunpack.c.l.b16 %v125
    %v380 = vunpack.c.h.b16 %v125
    %v381 = vunpack.c.l.b16 %v126
    %v382 = vunpack.c.h.b16 %v126
    %v383 = vunpack.c.l.b16 %v127
    %v384 = vunpack.c.h.b16 %v127
    %v385 = vunpack.c.l.b16 %v128
    %v386 = vunpack.c.h.b16 %v128
    %v387 = vunpack.c.l.b16 %v129
    %v388 = vunpack.c.h.b16 %v129
    %v389 = vunpack.c.l.b16 %v130
    %v390 = vunpack.c.h.b16 %v130
    %v391 = vunpack.c.l.b16 %v131
    %v392 = vunpack.c.h.b16 %v131
    %v393 = vunpack.c.l.b16 %v132
    %v394 = vunpack.c.h.b16 %v132
    %v395 = vunpack.c.l.b16 %v133
    %v396 = vunpack.c.h.b16 %v133
    %v397 = vunpack.c.l.b16 %v134
    %v398 = vunpack.c.h.b16 %v134
    %v399 = vunpack.c.l.b16 %v135
    %v400 = vunpack.c.h.b16 %v135
    %v401 = vunpack.c.l.b16 %v136
    %v402 = vunpack.c.h.b16 %v136
    %v403 = vunpack.c.l.b16 %v137
    %v404 = vunpack.c.h.b16 %v137
    %v405 = vunpack.c.l.b16 %v138
    %v406 = vunpack.c.h.b16 %v138
    %v407 = vunpack.c.l.b16 %v139
    %v408 = vunpack.c.h.b16 %v139
    %v409 = vunpack.c.l.b16 %v140
    %v410 = vunpack.c.h.b16 %v140
    %v411 = vunpack.c.l.b16 %v141
    %v412 = vunpack.c.h.b16 %v141
    %v413 = vunpack.c.l.b16 %v142
    %v414 = vunpack.c.h.b16 %v142
    %v415 = vunpack.c.l.b16 %v143
    %v416 = vunpack.c.h.b16 %v143
    %v417 = vunpack.c.l.b16 %v144
    %v418 = vunpack.c.h.b16 %v144
    %v419 = vunpack.c.l.b16 %v145
    %v420 = vunpack.c.h.b16 %v145
    %v421 = vunpack.c.l.b16 %v146
    %v422 = vunpack.c.h.b16 %v146
    %v423 = vunpack.c.l.b16 %v147
    %v424 = vunpack.c.h.b16 %v147
    %v425 = vunpack.c.l.b16 %v148
    %v426 = vunpack.c.h.b16 %v148
    %v427 = vunpack.c.l.b16 %v149
    %v428 = vunpack.c.h.b16 %v149
    %v429 = vunpack.c.l.b16 %v150
    %v430 = vunpack.c.h.b16 %v150
    %v431 = vunpack.c.l.b16 %v151
    %v432 = vunpack.c.h.b16 %v151
    %v433 = vunpack.c.l.b16 %v152
    %v434 = vunpack.c.h.b16 %v152
    %v435 = vunpack.c.l.b16 %v153
    %v436 = vunpack.c.h.b16 %v153
    %v437 = vunpack.c.l.b16 %v154
    %v438 = vunpack.c.h.b16 %v154
    %v439 = vunpack.c.l.b16 %v155
    %v440 = vunpack.c.h.b16 %v155
    %v441 = vunpack.c.l.b16 %v156
    %v442 = vunpack.c.h.b16 %v156
    %v443 = vunpack.c.l.b16 %v157
    %v444 = vunpack.c.h.b16 %v157
    %v445 = vunpack.c.l.b16 %v158
    %v446 = vunpack.c.h.b16 %v158
    %v447 = vunpack.c.l.b16 %v159
    %v448 = vunpack.c.h.b16 %v159
    %v449 = vunpack.c.l.b16 %v160
    %v450 = vunpack.c.h.b16 %v160
    %v451 = vunpack.c.l.b16 %v161
    %v452 = vunpack.c.h.b16 %v161
    %v453 = vunpack.c.l.b16 %v162
    %v454 = vunpack.c.h.b16 %v162
    %v455 = vunpack.c.l.b16 %v163
    %v456 = vunpack.c.h.b16 %v163
    %v457 = vunpack.c.l.b16 %v164
    %v458 = vunpack.c.h.b16 %v164
    %v459 = vunpack.c.l.b16 %v165
    %v460 = vunpack.c.h.b16 %v165
    %v461 = vunpack.c.l.b16 %v166
    %v462 = vunpack.c.h.b16 %v166
    %v463 = vunpack.c.l.b16 %v167
    %v464 = vunpack.c.h.b16 %v167
    %v465 = vunpack.c.l.b16 %v168
    %v466 = vunpack.c.h.b16 %v168
    %v467 = vunpack.c.l.b16 %v169
    %v468 = vunpack.c.h.b16 %v169
    %v469 = vunpack.c.l.b16 %v170
    %v470 = vunpack.c.h.b16 %v170
    %v471 = vunpack.c.l.b16 %v171
    %v472 = vunpack.c.h.b16 %v171
    %v473 = vunpack.c.l.b16 %v172
    %v474 = vunpack.c.h.b16 %v172
    %v475 = vunpack.c.l.b16 %v173
    %v476 = vunpack.c.h.b16 %v173
    %v477 = vunpack.c.l.b16 %v174
    %v478 = vunpack.c.h.b16 %v174
    %v479 = vunpack.c.l.b16 %v175
    %v480 = vunpack.c.h.b16 %v175
    %v481 = vunpack.c.l.b16 %v176
    %v482 = vunpack.c.h.b16 %v176
    %v483 = vunpack.c.l.b16 %v177
    %v484 = vunpack.c.h.b16 %v177
    %v485 = vunpack.c.l.b16 %v178
    %v486 = vunpack.c.h.b16 %v178
    %v487 = vunpack.c.l.b16 %v179
    %v488 = vunpack.c.h.b16 %v179
    %v489 = vunpack.c.l.b16 %v180
    %v490 = vunpack.c.h.b16 %v180
    %v491 = vunpack.c.l.b16 %v181
    %v492 = vunpack.c.h.b16 %v181
    %v493 = vunpack.c.l.b16 %v182
    %v494 = vunpack.c.h.b16 %v182
    %v495 = vunpack.c.l.b16 %v183
    %v496 = vunpack.c.h.b16 %v183
    %v497 = vunpack.c.l.b16 %v184
    %v498 = vunpack.c.h.b16 %v184
    %v499 = vunpack.c.l.b16 %v185
    %v500 = vunpack.c.h.b16 %v185
    %v501 = vunpack.c.l.b16 %v186
    %v502 = vunpack.c.h.b16 %v186
    %v503 = vunpack.c.l.b16 %v187
    %v504 = vunpack.c.h.b16 %v187
    %v505 = vunpack.c.l.b16 %v188
    %v506 = vunpack.c.h.b16 %v188
    %v507 = vunpack.c.l.b16 %v189
    %v508 = vunpack.c.h.b16 %v189
    %v509 = vunpack.c.l.b16 %v190
    %v510 = vunpack.c.h.b16 %v190
    %v511 = vunpack.c.l.b16 %v191
    %v512 = vunpack.c.h.b16 %v191
    %v513 = vunpack.c.l.b16 %v192
    %v514 = vunpack.c.h.b16 %v192
    %v515 = vunpack.c.l.b16 %v193
    %v516 = vunpack.c.h.b16 %v193
    %v517 = vunpack.c.l.b16 %v194
    %v518 = vunpack.c.h.b16 %v194
    %v519 = vunpack.c.l.b16 %v195
    %v520 = vunpack.c.h.b16 %v195
    %v521 = vunpack.c.l.b16 %v196
    %v522 = vunpack.c.h.b16 %v196
    %v523 = vunpack.c.l.b16 %v197
    %v524 = vunpack.c.h.b16 %v197
    %v525 = vunpack.c.l.b16 %v198
    %v526 = vunpack.c.h.b16 %v198
    %v527 = vunpack.c.l.b16 %v199
    %v528 = vunpack.c.h.b16 %v199
    %v529 = vunpack.c.l.b16 %v200
    %v530 = vunpack.c.h.b16 %v200
    %v531 = vpack.c.b16 %v345, %v339
    %v532 = vpack.c.b16 %v346, %v340
    %v533 = vpack.c.b16 %v347, %v341
    %v534 = vpack.c.b16 %v348, %v342
    %v535 = vpack.c.b16 %v349, %v343
    %v536 = vpack.c.b16 %v350, %v344
    %v537 = vpack.c.b16 %v357, %v351
    %v538 = vpack.c.b16 %v358, %v352
    %v539 = vpack.c.b16 %v359, %v353
    %v540 = vpack.c.b16 %v360, %v354
    %v541 = vpack.c.b16 %v361, %v355
    %v542 = vpack.c.b16 %v362, %v356
    %v543 = vpack.c.b16 %v369, %v363
    %v544 = vpack.c.b16 %v370, %v364
    %v545 = vpack.c.b16 %v371, %v365
    %v546 = vpack.c.b16 %v372, %v366
    %v547 = vpack.c.b16 %v373, %v367
    %v548 = vpack.c.b16 %v374, %v368
    %v549 = vpack.c.b16 %v381, %v375
    %v550 = vpack.c.b16 %v382, %v376
    %v551 = vpack.c.b16 %v383, %v377
    %v552 = vpack.c.b16 %v384, %v378
    %v553 = vpack.c.b16 %v385, %v379
    %v554 = vpack.c.b16 %v386, %v380
    %v555 = vpack.c.b16 %v393, %v387
    %v556 = vpack.c.b16 %v394, %v388
    %v557 = vpack.c.b16 %v395, %v389
    %v558 = vpack.c.b16 %v396, %v390
    %v559 = vpack.c.b16 %v397, %v391
    %v560 = vpack.c.b16 %v398, %v392
    %v561 = vpack.c.b16 %v405, %v399
    %v562 = vpack.c.b16 %v406, %v400
    %v563 = vpack.c.b16 %v407, %v401
    %v564 = vpack.c.b16 %v408, %v402
    %v565 = vpack.c.b16 %v409, %v403
    %v566 = vpack.c.b16 %v410, %v404
    %v567 = vpack.c.b16 %v417, %v411
    %v568 = vpack.c.b16 %v418, %v412
    %v569 = vpack.c.b16 %v419, %v413
    %v570 = vpack.c.b16 %v420, %v414
    %v571 = vpack.c.b16 %v421, %v415
    %v572 = vpack.c.b16 %v422, %v416
    %v573 = vpack.c.b16 %v429, %v423
    %v574 = vpack.c.b16 %v430, %v424
    %v575 = vpack.c.b16 %v431, %v425
    %v576 = vpack.c.b16 %v432, %v426
    %v577 = vpack.c.b16 %v433, %v427
    %v578 = vpack.c.b16 %v434, %v428
    %v579 = vpack.c.b16 %v441, %v435
    %v580 = vpack.c.b16 %v442, %v436
    %v581 = vpack.c.b16 %v443, %v437
    %v582 = vpack.c.b16 %v444, %v438
    %v583 = vpack.c.b16 %v445, %v439
    %v584 = vpack.c.b16 %v446, %v440
    %v585 = vpack.c.b16 %v453, %v447
    %v586 = vpack.c.b16 %v454, %v448
    %v587 = vpack.c.b16 %v455, %v449
    %v588 = vpack.c.b16 %v456, %v450
    %v589 = vpack.c.b16 %v457, %v451
    %v590 = vpack.c.b16 %v458, %v452
    %v591 = vpack.c.b16 %v465, %v459
    %v592 = vpack.c.b16 %v466, %v460
    %v593 = vpack.c.b16 %v467, %v461
    %v594 = vpack.c.b16 %v468, %v462
    %v595 = vpack.c.b16 %v469, %v463
    %v596 = vpack.c.b16 %v470, %v464
    %v597 = vpack.c.b16 %v477, %v471
    %v598 = vpack.c.b16 %v478, %v472
    %v599 = vpack.c.b16 %v479, %v473
    %v600 = vpack.c.b16 %v480, %v474
    %v601 = vpack.c.b16 %v481, %v475
    %v602 = vpack.c.b16 %v482, %v476
    %v603 = vpack.c.b16 %v489, %v483
    %v604 = vpack.c.b16 %v490, %v484
    %v605 = vpack.c.b16 %v491, %v485
    %v606 = vpack.c.b16 %v492, %v486
    %v607 = vpack.c.b16 %v493, %v487
    %v608 = vpack.c.b16 %v494, %v488
    %v609 = vpack.c.b16 %v501, %v495
    %v610 = vpack.c.b16 %v502, %v496
    %v611 = vpack.c.b16 %v503, %v497
    %v612 = vpack.c.b16 %v504, %v498
    %v613 = vpack.c.b16 %v505, %v499
    %v614 = vpack.c.b16 %v506, %v500
    %v615 = vpack.c.b16 %v513, %v507
    %v616 = vpack.c.b16 %v514, %v508
    %v617 = vpack.c.b16 %v515, %v509
    %v618 = vpack.c.b16 %v516, %v510
    %v619 = vpack.c.b16 %v517, %v511
    %v620 = vpack.c.b16 %v518, %v512
    %v621 = vpack.c.b16 %v525, %v519
    %v622 = vpack.c.b16 %v526, %v520
    %v623 = vpack.c.b16 %v527, %v521
    %v624 = vpack.c.b16 %v528, %v522
    %v625 = vpack.c.b16 %v529, %v523
    %v626 = vpack.c.b16 %v530, %v524
    %723 = vmatprep.subr.bf16.mxu0 %v574
    %724 = vmatpush1.bf16.msra.mxu0 %v573
    %725 = vmatprep.subr.bf16.mxu0 %v568
    %726 = vmatpush1.bf16.msra.mxu0 %v567
    %727 = vmatprep.subr.bf16.mxu0 %v562
    %728 = vmatpush1.bf16.msra.mxu0 %v561
    %729 = vmatprep.subr.bf16.mxu0 %v556
    %730 = vmatpush1.bf16.msra.mxu0 %v555
    %731 = vmatprep.subr.bf16.mxu0 %v550
    %732 = vmatpush1.bf16.msra.mxu0 %v549
    %733 = vmatprep.subr.bf16.mxu0 %v544
    %734 = vmatpush1.bf16.msra.mxu0 %v543
    %735 = vmatprep.subr.bf16.mxu0 %v538
    %736 = vmatpush1.bf16.msra.mxu0 %v537
    %737 = vmatprep.subr.bf16.mxu0 %v532
    %738 = vmatpush1.bf16.msra.mxu0 %v531
    %739 = vmatprep.subr.bf16.mxu0 %v622
    %740 = vmatpush2.bf16.msra.mxu0 %v621
    %741 = vmatprep.subr.bf16.mxu0 %v616
    %742 = vmatpush2.bf16.msra.mxu0 %v615
    %743 = vmatprep.subr.bf16.mxu0 %v610
    %744 = vmatpush2.bf16.msra.mxu0 %v609
    %745 = vmatprep.subr.bf16.mxu0 %v604
    %746 = vmatpush2.bf16.msra.mxu0 %v603
    %747 = vmatprep.subr.bf16.mxu0 %v598
    %748 = vmatpush2.bf16.msra.mxu0 %v597
    %749 = vmatprep.subr.bf16.mxu0 %v592
    %750 = vmatpush2.bf16.msra.mxu0 %v591
    %751 = vmatprep.subr.bf16.mxu0 %v586
    %752 = vmatpush2.bf16.msra.mxu0 %v585
    %753 = vmatprep.subr.bf16.mxu0 %v580
    %754 = vmatpush2.bf16.msra.mxu0 %v579
    %755 = vmatprep.mubr.bf16.mxu0 %v240
    %756 = vmatmul.mubr.bf16.gmra.mxu0 %v239
    %v757 = vpop.f32.mrf.mxu0
    %v758 = vadd.f32 %v206, %v757
    %v759 = vpop.f32.mrf.mxu0
    %v760 = vadd.f32 %v210, %v759
    %v761 = vpop.f32.mrf.mxu0
    %v762 = vadd.f32 %v206, %v761
    %v763 = vpop.f32.mrf.mxu0
    %v764 = vadd.f32 %v210, %v763
    %765 = vdwg.mxu0
    %766 = vmatprep.subr.bf16.mxu0 %v576
    %767 = vmatpush1.bf16.msra.mxu0 %v575
    %768 = vmatprep.subr.bf16.mxu0 %v570
    %769 = vmatpush1.bf16.msra.mxu0 %v569
    %770 = vmatprep.subr.bf16.mxu0 %v564
    %771 = vmatpush1.bf16.msra.mxu0 %v563
    %772 = vmatprep.subr.bf16.mxu0 %v558
    %773 = vmatpush1.bf16.msra.mxu0 %v557
    %774 = vmatprep.subr.bf16.mxu0 %v552
    %775 = vmatpush1.bf16.msra.mxu0 %v551
    %776 = vmatprep.subr.bf16.mxu0 %v546
    %777 = vmatpush1.bf16.msra.mxu0 %v545
    %778 = vmatprep.subr.bf16.mxu0 %v540
    %779 = vmatpush1.bf16.msra.mxu0 %v539
    %780 = vmatprep.subr.bf16.mxu0 %v534
    %781 = vmatpush1.bf16.msra.mxu0 %v533
    %782 = vmatprep.subr.bf16.mxu0 %v624
    %783 = vmatpush2.bf16.msra.mxu0 %v623
    %784 = vmatprep.subr.bf16.mxu0 %v618
    %785 = vmatpush2.bf16.msra.mxu0 %v617
    %786 = vmatprep.subr.bf16.mxu0 %v612
    %787 = vmatpush2.bf16.msra.mxu0 %v611
    %788 = vmatprep.subr.bf16.mxu0 %v606
    %789 = vmatpush2.bf16.msra.mxu0 %v605
    %790 = vmatprep.subr.bf16.mxu0 %v600
    %791 = vmatpush2.bf16.msra.mxu0 %v599
    %792 = vmatprep.subr.bf16.mxu0 %v594
    %793 = vmatpush2.bf16.msra.mxu0 %v593
    %794 = vmatprep.subr.bf16.mxu0 %v588
    %795 = vmatpush2.bf16.msra.mxu0 %v587
    %796 = vmatprep.subr.bf16.mxu0 %v582
    %797 = vmatpush2.bf16.msra.mxu0 %v581
    %798 = vmatprep.mubr.bf16.mxu0 %v240
    %799 = vmatmul.mubr.bf16.gmra.mxu0 %v239
    %v800 = vpop.f32.mrf.mxu0
    %v801 = vadd.f32 %v214, %v800
    %v802 = vpop.f32.mrf.mxu0
    %v803 = vadd.f32 %v218, %v802
    %v804 = vpop.f32.mrf.mxu0
    %v805 = vadd.f32 %v214, %v804
    %v806 = vpop.f32.mrf.mxu0
    %v807 = vadd.f32 %v218, %v806
    %808 = vdwg.mxu0
    %809 = vmatprep.subr.bf16.mxu0 %v578
    %810 = vmatpush1.bf16.msra.mxu0 %v577
    %811 = vmatprep.subr.bf16.mxu0 %v572
    %812 = vmatpush1.bf16.msra.mxu0 %v571
    %813 = vmatprep.subr.bf16.mxu0 %v566
    %814 = vmatpush1.bf16.msra.mxu0 %v565
    %815 = vmatprep.subr.bf16.mxu0 %v560
    %816 = vmatpush1.bf16.msra.mxu0 %v559
    %817 = vmatprep.subr.bf16.mxu0 %v554
    %818 = vmatpush1.bf16.msra.mxu0 %v553
    %819 = vmatprep.subr.bf16.mxu0 %v548
    %820 = vmatpush1.bf16.msra.mxu0 %v547
    %821 = vmatprep.subr.bf16.mxu0 %v542
    %822 = vmatpush1.bf16.msra.mxu0 %v541
    %823 = vmatprep.subr.bf16.mxu0 %v536
    %824 = vmatpush1.bf16.msra.mxu0 %v535
    %825 = vmatprep.subr.bf16.mxu0 %v626
    %826 = vmatpush2.bf16.msra.mxu0 %v625
    %827 = vmatprep.subr.bf16.mxu0 %v620
    %828 = vmatpush2.bf16.msra.mxu0 %v619
    %829 = vmatprep.subr.bf16.mxu0 %v614
    %830 = vmatpush2.bf16.msra.mxu0 %v613
    %831 = vmatprep.subr.bf16.mxu0 %v608
    %832 = vmatpush2.bf16.msra.mxu0 %v607
    %833 = vmatprep.subr.bf16.mxu0 %v602
    %834 = vmatpush2.bf16.msra.mxu0 %v601
    %835 = vmatprep.subr.bf16.mxu0 %v596
    %836 = vmatpush2.bf16.msra.mxu0 %v595
    %837 = vmatprep.subr.bf16.mxu0 %v590
    %838 = vmatpush2.bf16.msra.mxu0 %v589
    %839 = vmatprep.subr.bf16.mxu0 %v584
    %840 = vmatpush2.bf16.msra.mxu0 %v583
    %841 = vmatprep.mubr.bf16.mxu0 %v240
    %842 = vmatmul.mubr.bf16.gmra.mxu0 %v239
    %v843 = vpop.f32.mrf.mxu0
    %v844 = vadd.f32 %v222, %v843
    %v845 = vpop.f32.mrf.mxu0
    %v846 = vadd.f32 %v226, %v845
    %v847 = vpop.f32.mrf.mxu0
    %v848 = vadd.f32 %v222, %v847
    %v849 = vpop.f32.mrf.mxu0
    %v850 = vadd.f32 %v226, %v849
    %851 = vdwg.mxu0
    %v852 = vtanh.pop %v758
    %v853 = vtanh.pop %v760
    %v854 = vtanh.pop %v801
    %v855 = vtanh.pop %v803
    %v856 = vtanh.pop %v844
    %v857 = vtanh.pop %v846
    %v858 = vtanh.pop %v762
    %v859 = vtanh.pop %v764
    %v860 = vtanh.pop %v805
    %v861 = vtanh.pop %v807
    %v862 = vtanh.pop %v848
    %v863 = vtanh.pop %v850
    %v864 = vpack.c.bf16 %v852, %v852
    %v865 = vpack.c.bf16 %v853, %v853
    %v866 = vpack.c.bf16 %v854, %v854
    %v867 = vpack.c.bf16 %v855, %v855
    %v868 = vpack.c.bf16 %v856, %v856
    %v869 = vpack.c.bf16 %v857, %v857
    %v870 = vpack.c.bf16 %v858, %v858
    %v871 = vpack.c.bf16 %v859, %v859
    %v872 = vpack.c.bf16 %v860, %v860
    %v873 = vpack.c.bf16 %v861, %v861
    %v874 = vpack.c.bf16 %v862, %v862
    %v875 = vpack.c.bf16 %v863, %v863
    %v889 = vunpack.c.l.b16 %v864
    %v890 = vunpack.c.l.b16 %v865
    %v891 = vunpack.c.l.b16 %v866
    %v892 = vunpack.c.l.b16 %v867
    %v893 = vunpack.c.l.b16 %v868
    %v894 = vunpack.c.l.b16 %v869
    %v895 = vunpack.c.l.b16 0
    %v896 = vunpack.c.l.b16 %v870
    %v897 = vunpack.c.l.b16 %v871
    %v898 = vunpack.c.l.b16 %v872
    %v899 = vunpack.c.l.b16 %v873
    %v900 = vunpack.c.l.b16 %v874
    %v901 = vunpack.c.l.b16 %v875
    %v902 = vpack.c.b16 %v890, %v889
    %v903 = vpack.c.b16 %v892, %v891
    %v904 = vpack.c.b16 %v894, %v893
    %v905 = vpack.c.b16 %v895, %v895
    %v906 = vpack.c.b16 %v897, %v896
    %v907 = vpack.c.b16 %v899, %v898
    %v908 = vpack.c.b16 %v901, %v900
    %916 = vst [vmem:[#allocation13] sm:$0xff] %v902
    %917 = vst [vmem:[#allocation13 + $0x8] sm:$0xff] %v903
    %918 = vst [vmem:[#allocation13 + $0x10] sm:$0xff] %v904
    %919 = vst [vmem:[#allocation13 + $0x18] sm:$0xff] %v905
    %920 = vst [vmem:[#allocation13 + $0x20] sm:$0xff] %v905
    %921 = vst [vmem:[#allocation13 + $0x28] sm:$0xff] %v905
    %922 = vst [vmem:[#allocation13 + $0x30] sm:$0xff] %v905
    %923 = vst [vmem:[#allocation13 + $0x38] sm:$0xff] %v905
    %924 = vst [vmem:[#allocation13 + $0x40] sm:$0xff] %v905
    %925 = vst [vmem:[#allocation13 + $0x48] sm:$0xff] %v905
    %926 = vst [vmem:[#allocation13 + $0x50] sm:$0xff] %v905
    %927 = vst [vmem:[#allocation13 + $0x58] sm:$0xff] %v905
    %928 = vst [vmem:[#allocation13 + $0x60] sm:$0xff] %v905
    %929 = vst [vmem:[#allocation13 + $0x68] sm:$0xff] %v905
    %930 = vst [vmem:[#allocation13 + $0x70] sm:$0xff] %v905
    %931 = vst [vmem:[#allocation13 + $0x78] sm:$0xff] %v905
    %932 = vst [vmem:[#allocation13 + $0x100] sm:$0xff] %v906
    %933 = vst [vmem:[#allocation13 + $0x108] sm:$0xff] %v907
    %934 = vst [vmem:[#allocation13 + $0x110] sm:$0xff] %v908
    %935 = vst [vmem:[#allocation13 + $0x118] sm:$0xff] %v905
    %936 = vst [vmem:[#allocation13 + $0x120] sm:$0xff] %v905
    %937 = vst [vmem:[#allocation13 + $0x128] sm:$0xff] %v905
    %938 = vst [vmem:[#allocation13 + $0x130] sm:$0xff] %v905
    %939 = vst [vmem:[#allocation13 + $0x138] sm:$0xff] %v905
    %940 = vst [vmem:[#allocation13 + $0x140] sm:$0xff] %v905
    %941 = vst [vmem:[#allocation13 + $0x148] sm:$0xff] %v905
    %942 = vst [vmem:[#allocation13 + $0x150] sm:$0xff] %v905
    %943 = vst [vmem:[#allocation13 + $0x158] sm:$0xff] %v905
    %944 = vst [vmem:[#allocation13 + $0x160] sm:$0xff] %v905
    %945 = vst [vmem:[#allocation13 + $0x168] sm:$0xff] %v905
    %946 = vst [vmem:[#allocation13 + $0x170] sm:$0xff] %v905
    %947 = vst [vmem:[#allocation13 + $0x178] sm:$0xff] %v905
    %v948 = vld [vmem:[#allocation5] sm:$0xff]
    %v949 = vld [vmem:[#allocation5 + $0x8] sm:$0xff]
    %v950 = vld [vmem:[#allocation10] sm:$0xff]
    %v951 = vld [vmem:[#allocation10 + $0x8] sm:$0xff]
    %v952 = vld [vmem:[#allocation10 + $0x10] sm:$0xff]
    %v953 = vld [vmem:[#allocation10 + $0x18] sm:$0xff]
    %v954 = vld [vmem:[#allocation10 + $0x20] sm:$0xff]
    %v955 = vld [vmem:[#allocation10 + $0x28] sm:$0xff]
    %v956 = vld [vmem:[#allocation10 + $0x30] sm:$0xff]
    %v957 = vld [vmem:[#allocation10 + $0x38] sm:$0xff]
    %v958 = vld [vmem:[#allocation10 + $0x40] sm:$0xff]
    %v959 = vld [vmem:[#allocation10 + $0x48] sm:$0xff]
    %v960 = vld [vmem:[#allocation10 + $0x50] sm:$0xff]
    %v961 = vld [vmem:[#allocation10 + $0x58] sm:$0xff]
    %v962 = vld [vmem:[#allocation10 + $0x60] sm:$0xff]
    %v963 = vld [vmem:[#allocation10 + $0x68] sm:$0xff]
    %v964 = vld [vmem:[#allocation10 + $0x70] sm:$0xff]
    %v965 = vld [vmem:[#allocation10 + $0x78] sm:$0xff]
    %v966 = vld [vmem:[#allocation10 + $0x80] sm:$0xff]
    %v967 = vld [vmem:[#allocation10 + $0x88] sm:$0xff]
    %v968 = vld [vmem:[#allocation10 + $0x90] sm:$0xff]
    %v969 = vld [vmem:[#allocation10 + $0x98] sm:$0xff]
    %v970 = vld [vmem:[#allocation10 + $0xa0] sm:$0xff]
    %v971 = vld [vmem:[#allocation10 + $0xa8] sm:$0xff]
    %v972 = vld [vmem:[#allocation10 + $0xb0] sm:$0xff]
    %v973 = vld [vmem:[#allocation10 + $0xb8] sm:$0xff]
    %v974 = vld [vmem:[#allocation10 + $0xc0] sm:$0xff]
    %v975 = vld [vmem:[#allocation10 + $0xc8] sm:$0xff]
    %v976 = vld [vmem:[#allocation10 + $0xd0] sm:$0xff]
    %v977 = vld [vmem:[#allocation10 + $0xd8] sm:$0xff]
    %v978 = vld [vmem:[#allocation10 + $0xe0] sm:$0xff]
    %v979 = vld [vmem:[#allocation10 + $0xe8] sm:$0xff]
    %v980 = vld [vmem:[#allocation10 + $0xf0] sm:$0xff]
    %v981 = vld [vmem:[#allocation10 + $0xf8] sm:$0xff]
    %v982 = vld [vmem:[#allocation10 + $0x100] sm:$0xff]
    %v983 = vld [vmem:[#allocation10 + $0x108] sm:$0xff]
    %v984 = vld [vmem:[#allocation10 + $0x110] sm:$0xff]
    %v985 = vld [vmem:[#allocation10 + $0x118] sm:$0xff]
    %v986 = vld [vmem:[#allocation10 + $0x120] sm:$0xff]
    %v987 = vld [vmem:[#allocation10 + $0x128] sm:$0xff]
    %v988 = vld [vmem:[#allocation10 + $0x130] sm:$0xff]
    %v989 = vld [vmem:[#allocation10 + $0x138] sm:$0xff]
    %v990 = vld [vmem:[#allocation10 + $0x140] sm:$0xff]
    %v991 = vld [vmem:[#allocation10 + $0x148] sm:$0xff]
    %v992 = vld [vmem:[#allocation10 + $0x150] sm:$0xff]
    %v993 = vld [vmem:[#allocation10 + $0x158] sm:$0xff]
    %v994 = vld [vmem:[#allocation10 + $0x160] sm:$0xff]
    %v995 = vld [vmem:[#allocation10 + $0x168] sm:$0xff]
    %v996 = vld [vmem:[#allocation10 + $0x170] sm:$0xff]
    %v997 = vld [vmem:[#allocation10 + $0x178] sm:$0xff]
    %v998 = vld [vmem:[#allocation10 + $0x180] sm:$0xff]
    %v999 = vld [vmem:[#allocation10 + $0x188] sm:$0xff]
    %v1000 = vld [vmem:[#allocation10 + $0x190] sm:$0xff]
    %v1001 = vld [vmem:[#allocation10 + $0x198] sm:$0xff]
    %v1002 = vld [vmem:[#allocation10 + $0x1a0] sm:$0xff]
    %v1003 = vld [vmem:[#allocation10 + $0x1a8] sm:$0xff]
    %v1004 = vld [vmem:[#allocation10 + $0x1b0] sm:$0xff]
    %v1005 = vld [vmem:[#allocation10 + $0x1b8] sm:$0xff]
    %v1006 = vld [vmem:[#allocation10 + $0x1c0] sm:$0xff]
    %v1007 = vld [vmem:[#allocation10 + $0x1c8] sm:$0xff]
    %v1008 = vld [vmem:[#allocation10 + $0x1d0] sm:$0xff]
    %v1009 = vld [vmem:[#allocation10 + $0x1d8] sm:$0xff]
    %v1010 = vld [vmem:[#allocation10 + $0x1e0] sm:$0xff]
    %v1011 = vld [vmem:[#allocation10 + $0x1e8] sm:$0xff]
    %v1012 = vld [vmem:[#allocation10 + $0x1f0] sm:$0xff]
    %v1013 = vld [vmem:[#allocation10 + $0x1f8] sm:$0xff]
    %v1014 = vld [vmem:[#allocation10 + $0x200] sm:$0xff]
    %v1015 = vld [vmem:[#allocation10 + $0x208] sm:$0xff]
    %v1016 = vld [vmem:[#allocation10 + $0x210] sm:$0xff]
    %v1017 = vld [vmem:[#allocation10 + $0x218] sm:$0xff]
    %v1018 = vld [vmem:[#allocation10 + $0x220] sm:$0xff]
    %v1019 = vld [vmem:[#allocation10 + $0x228] sm:$0xff]
    %v1020 = vld [vmem:[#allocation10 + $0x230] sm:$0xff]
    %v1021 = vld [vmem:[#allocation10 + $0x238] sm:$0xff]
    %v1022 = vld [vmem:[#allocation10 + $0x240] sm:$0xff]
    %v1023 = vld [vmem:[#allocation10 + $0x248] sm:$0xff]
    %v1024 = vld [vmem:[#allocation10 + $0x250] sm:$0xff]
    %v1025 = vld [vmem:[#allocation10 + $0x258] sm:$0xff]
    %v1026 = vld [vmem:[#allocation10 + $0x260] sm:$0xff]
    %v1027 = vld [vmem:[#allocation10 + $0x268] sm:$0xff]
    %v1028 = vld [vmem:[#allocation10 + $0x270] sm:$0xff]
    %v1029 = vld [vmem:[#allocation10 + $0x278] sm:$0xff]
    %v1030 = vld [vmem:[#allocation10 + $0x280] sm:$0xff]
    %v1031 = vld [vmem:[#allocation10 + $0x288] sm:$0xff]
    %v1032 = vld [vmem:[#allocation10 + $0x290] sm:$0xff]
    %v1033 = vld [vmem:[#allocation10 + $0x298] sm:$0xff]
    %v1034 = vld [vmem:[#allocation10 + $0x2a0] sm:$0xff]
    %v1035 = vld [vmem:[#allocation10 + $0x2a8] sm:$0xff]
    %v1036 = vld [vmem:[#allocation10 + $0x2b0] sm:$0xff]
    %v1037 = vld [vmem:[#allocation10 + $0x2b8] sm:$0xff]
    %v1038 = vld [vmem:[#allocation10 + $0x2c0] sm:$0xff]
    %v1039 = vld [vmem:[#allocation10 + $0x2c8] sm:$0xff]
    %v1040 = vld [vmem:[#allocation10 + $0x2d0] sm:$0xff]
    %v1041 = vld [vmem:[#allocation10 + $0x2d8] sm:$0xff]
    %v1042 = vld [vmem:[#allocation10 + $0x2e0] sm:$0xff]
    %v1043 = vld [vmem:[#allocation10 + $0x2e8] sm:$0xff]
    %v1044 = vld [vmem:[#allocation10 + $0x2f0] sm:$0xff]
    %v1045 = vld [vmem:[#allocation10 + $0x2f8] sm:$0xff]
    %v1046 = vld [vmem:[#allocation10 + $0x300] sm:$0xff]
    %v1047 = vld [vmem:[#allocation10 + $0x308] sm:$0xff]
    %v1048 = vld [vmem:[#allocation10 + $0x310] sm:$0xff]
    %v1049 = vld [vmem:[#allocation10 + $0x318] sm:$0xff]
    %v1050 = vld [vmem:[#allocation10 + $0x320] sm:$0xff]
    %v1051 = vld [vmem:[#allocation10 + $0x328] sm:$0xff]
    %v1052 = vld [vmem:[#allocation10 + $0x330] sm:$0xff]
    %v1053 = vld [vmem:[#allocation10 + $0x338] sm:$0xff]
    %v1054 = vld [vmem:[#allocation10 + $0x340] sm:$0xff]
    %v1055 = vld [vmem:[#allocation10 + $0x348] sm:$0xff]
    %v1056 = vld [vmem:[#allocation10 + $0x350] sm:$0xff]
    %v1057 = vld [vmem:[#allocation10 + $0x358] sm:$0xff]
    %v1058 = vld [vmem:[#allocation10 + $0x360] sm:$0xff]
    %v1059 = vld [vmem:[#allocation10 + $0x368] sm:$0xff]
    %v1060 = vld [vmem:[#allocation10 + $0x370] sm:$0xff]
    %v1061 = vld [vmem:[#allocation10 + $0x378] sm:$0xff]
    %v1062 = vld [vmem:[#allocation10 + $0x380] sm:$0xff]
    %v1063 = vld [vmem:[#allocation10 + $0x388] sm:$0xff]
    %v1064 = vld [vmem:[#allocation10 + $0x390] sm:$0xff]
    %v1065 = vld [vmem:[#allocation10 + $0x398] sm:$0xff]
    %v1066 = vld [vmem:[#allocation10 + $0x3a0] sm:$0xff]
    %v1067 = vld [vmem:[#allocation10 + $0x3a8] sm:$0xff]
    %v1068 = vld [vmem:[#allocation10 + $0x3b0] sm:$0xff]
    %v1069 = vld [vmem:[#allocation10 + $0x3b8] sm:$0xff]
    %v1070 = vld [vmem:[#allocation10 + $0x3c0] sm:$0xff]
    %v1071 = vld [vmem:[#allocation10 + $0x3c8] sm:$0xff]
    %v1072 = vld [vmem:[#allocation10 + $0x3d0] sm:$0xff]
    %v1073 = vld [vmem:[#allocation10 + $0x3d8] sm:$0xff]
    %v1074 = vld [vmem:[#allocation10 + $0x3e0] sm:$0xff]
    %v1075 = vld [vmem:[#allocation10 + $0x3e8] sm:$0xff]
    %v1076 = vld [vmem:[#allocation10 + $0x3f0] sm:$0xff]
    %v1077 = vld [vmem:[#allocation10 + $0x3f8] sm:$0xff]
    %v1078 = vld [vmem:[#allocation10 + $0x400] sm:$0xff]
    %v1079 = vld [vmem:[#allocation10 + $0x408] sm:$0xff]
    %v1080 = vld [vmem:[#allocation10 + $0x410] sm:$0xff]
    %v1081 = vld [vmem:[#allocation10 + $0x418] sm:$0xff]
    %v1082 = vld [vmem:[#allocation10 + $0x420] sm:$0xff]
    %v1083 = vld [vmem:[#allocation10 + $0x428] sm:$0xff]
    %v1084 = vld [vmem:[#allocation10 + $0x430] sm:$0xff]
    %v1085 = vld [vmem:[#allocation10 + $0x438] sm:$0xff]
    %v1086 = vld [vmem:[#allocation10 + $0x440] sm:$0xff]
    %v1087 = vld [vmem:[#allocation10 + $0x448] sm:$0xff]
    %v1088 = vld [vmem:[#allocation10 + $0x450] sm:$0xff]
    %v1089 = vld [vmem:[#allocation10 + $0x458] sm:$0xff]
    %v1090 = vld [vmem:[#allocation10 + $0x460] sm:$0xff]
    %v1091 = vld [vmem:[#allocation10 + $0x468] sm:$0xff]
    %v1092 = vld [vmem:[#allocation10 + $0x470] sm:$0xff]
    %v1093 = vld [vmem:[#allocation10 + $0x478] sm:$0xff]
    %v1094 = vld [vmem:[#allocation10 + $0x480] sm:$0xff]
    %v1095 = vld [vmem:[#allocation10 + $0x488] sm:$0xff]
    %v1096 = vld [vmem:[#allocation10 + $0x490] sm:$0xff]
    %v1097 = vld [vmem:[#allocation10 + $0x498] sm:$0xff]
    %v1098 = vld [vmem:[#allocation10 + $0x4a0] sm:$0xff]
    %v1099 = vld [vmem:[#allocation10 + $0x4a8] sm:$0xff]
    %v1100 = vld [vmem:[#allocation10 + $0x4b0] sm:$0xff]
    %v1101 = vld [vmem:[#allocation10 + $0x4b8] sm:$0xff]
    %v1102 = vld [vmem:[#allocation10 + $0x4c0] sm:$0xff]
    %v1103 = vld [vmem:[#allocation10 + $0x4c8] sm:$0xff]
    %v1104 = vld [vmem:[#allocation10 + $0x4d0] sm:$0xff]
    %v1105 = vld [vmem:[#allocation10 + $0x4d8] sm:$0xff]
    %v1106 = vld [vmem:[#allocation10 + $0x4e0] sm:$0xff]
    %v1107 = vld [vmem:[#allocation10 + $0x4e8] sm:$0xff]
    %v1108 = vld [vmem:[#allocation10 + $0x4f0] sm:$0xff]
    %v1109 = vld [vmem:[#allocation10 + $0x4f8] sm:$0xff]
    %v1110 = vld [vmem:[#allocation10 + $0x500] sm:$0xff]
    %v1111 = vld [vmem:[#allocation10 + $0x508] sm:$0xff]
    %v1112 = vld [vmem:[#allocation10 + $0x510] sm:$0xff]
    %v1113 = vld [vmem:[#allocation10 + $0x518] sm:$0xff]
    %v1114 = vld [vmem:[#allocation10 + $0x520] sm:$0xff]
    %v1115 = vld [vmem:[#allocation10 + $0x528] sm:$0xff]
    %v1116 = vld [vmem:[#allocation10 + $0x530] sm:$0xff]
    %v1117 = vld [vmem:[#allocation10 + $0x538] sm:$0xff]
    %v1118 = vld [vmem:[#allocation10 + $0x540] sm:$0xff]
    %v1119 = vld [vmem:[#allocation10 + $0x548] sm:$0xff]
    %v1120 = vld [vmem:[#allocation10 + $0x550] sm:$0xff]
    %v1121 = vld [vmem:[#allocation10 + $0x558] sm:$0xff]
    %v1122 = vld [vmem:[#allocation10 + $0x560] sm:$0xff]
    %v1123 = vld [vmem:[#allocation10 + $0x568] sm:$0xff]
    %v1124 = vld [vmem:[#allocation10 + $0x570] sm:$0xff]
    %v1125 = vld [vmem:[#allocation10 + $0x578] sm:$0xff]
    %v1126 = vld [vmem:[#allocation10 + $0x580] sm:$0xff]
    %v1127 = vld [vmem:[#allocation10 + $0x588] sm:$0xff]
    %v1128 = vld [vmem:[#allocation10 + $0x590] sm:$0xff]
    %v1129 = vld [vmem:[#allocation10 + $0x598] sm:$0xff]
    %v1130 = vld [vmem:[#allocation10 + $0x5a0] sm:$0xff]
    %v1131 = vld [vmem:[#allocation10 + $0x5a8] sm:$0xff]
    %v1132 = vld [vmem:[#allocation10 + $0x5b0] sm:$0xff]
    %v1133 = vld [vmem:[#allocation10 + $0x5b8] sm:$0xff]
    %v1134 = vld [vmem:[#allocation10 + $0x5c0] sm:$0xff]
    %v1135 = vld [vmem:[#allocation10 + $0x5c8] sm:$0xff]
    %v1136 = vld [vmem:[#allocation10 + $0x5d0] sm:$0xff]
    %v1137 = vld [vmem:[#allocation10 + $0x5d8] sm:$0xff]
    %v1138 = vld [vmem:[#allocation10 + $0x5e0] sm:$0xff]
    %v1139 = vld [vmem:[#allocation10 + $0x5e8] sm:$0xff]
    %v1140 = vld [vmem:[#allocation10 + $0x5f0] sm:$0xff]
    %v1141 = vld [vmem:[#allocation10 + $0x5f8] sm:$0xff]
    %v1142 = vld [vmem:[#allocation10 + $0x600] sm:$0xff]
    %v1143 = vld [vmem:[#allocation10 + $0x608] sm:$0xff]
    %v1144 = vld [vmem:[#allocation10 + $0x610] sm:$0xff]
    %v1145 = vld [vmem:[#allocation10 + $0x618] sm:$0xff]
    %v1146 = vld [vmem:[#allocation10 + $0x620] sm:$0xff]
    %v1147 = vld [vmem:[#allocation10 + $0x628] sm:$0xff]
    %v1148 = vld [vmem:[#allocation10 + $0x630] sm:$0xff]
    %v1149 = vld [vmem:[#allocation10 + $0x638] sm:$0xff]
    %v1150 = vld [vmem:[#allocation10 + $0x640] sm:$0xff]
    %v1151 = vld [vmem:[#allocation10 + $0x648] sm:$0xff]
    %v1152 = vld [vmem:[#allocation10 + $0x650] sm:$0xff]
    %v1153 = vld [vmem:[#allocation10 + $0x658] sm:$0xff]
    %v1154 = vld [vmem:[#allocation10 + $0x660] sm:$0xff]
    %v1155 = vld [vmem:[#allocation10 + $0x668] sm:$0xff]
    %v1156 = vld [vmem:[#allocation10 + $0x670] sm:$0xff]
    %v1157 = vld [vmem:[#allocation10 + $0x678] sm:$0xff]
    %v1158 = vld [vmem:[#allocation10 + $0x680] sm:$0xff]
    %v1159 = vld [vmem:[#allocation10 + $0x688] sm:$0xff]
    %v1160 = vld [vmem:[#allocation10 + $0x690] sm:$0xff]
    %v1161 = vld [vmem:[#allocation10 + $0x698] sm:$0xff]
    %v1162 = vld [vmem:[#allocation10 + $0x6a0] sm:$0xff]
    %v1163 = vld [vmem:[#allocation10 + $0x6a8] sm:$0xff]
    %v1164 = vld [vmem:[#allocation10 + $0x6b0] sm:$0xff]
    %v1165 = vld [vmem:[#allocation10 + $0x6b8] sm:$0xff]
    %v1166 = vld [vmem:[#allocation10 + $0x6c0] sm:$0xff]
    %v1167 = vld [vmem:[#allocation10 + $0x6c8] sm:$0xff]
    %v1168 = vld [vmem:[#allocation10 + $0x6d0] sm:$0xff]
    %v1169 = vld [vmem:[#allocation10 + $0x6d8] sm:$0xff]
    %v1170 = vld [vmem:[#allocation10 + $0x6e0] sm:$0xff]
    %v1171 = vld [vmem:[#allocation10 + $0x6e8] sm:$0xff]
    %v1172 = vld [vmem:[#allocation10 + $0x6f0] sm:$0xff]
    %v1173 = vld [vmem:[#allocation10 + $0x6f8] sm:$0xff]
    %v1174 = vld [vmem:[#allocation10 + $0x700] sm:$0xff]
    %v1175 = vld [vmem:[#allocation10 + $0x708] sm:$0xff]
    %v1176 = vld [vmem:[#allocation10 + $0x710] sm:$0xff]
    %v1177 = vld [vmem:[#allocation10 + $0x718] sm:$0xff]
    %v1178 = vld [vmem:[#allocation10 + $0x720] sm:$0xff]
    %v1179 = vld [vmem:[#allocation10 + $0x728] sm:$0xff]
    %v1180 = vld [vmem:[#allocation10 + $0x730] sm:$0xff]
    %v1181 = vld [vmem:[#allocation10 + $0x738] sm:$0xff]
    %v1182 = vld [vmem:[#allocation10 + $0x740] sm:$0xff]
    %v1183 = vld [vmem:[#allocation10 + $0x748] sm:$0xff]
    %v1184 = vld [vmem:[#allocation10 + $0x750] sm:$0xff]
    %v1185 = vld [vmem:[#allocation10 + $0x758] sm:$0xff]
    %v1186 = vld [vmem:[#allocation10 + $0x760] sm:$0xff]
    %v1187 = vld [vmem:[#allocation10 + $0x768] sm:$0xff]
    %v1188 = vld [vmem:[#allocation10 + $0x770] sm:$0xff]
    %v1189 = vld [vmem:[#allocation10 + $0x778] sm:$0xff]
    %v1190 = vld [vmem:[#allocation10 + $0x780] sm:$0xff]
    %v1191 = vld [vmem:[#allocation10 + $0x788] sm:$0xff]
    %v1192 = vld [vmem:[#allocation10 + $0x790] sm:$0xff]
    %v1193 = vld [vmem:[#allocation10 + $0x798] sm:$0xff]
    %v1194 = vld [vmem:[#allocation10 + $0x7a0] sm:$0xff]
    %v1195 = vld [vmem:[#allocation10 + $0x7a8] sm:$0xff]
    %v1196 = vld [vmem:[#allocation10 + $0x7b0] sm:$0xff]
    %v1197 = vld [vmem:[#allocation10 + $0x7b8] sm:$0xff]
    %v1198 = vld [vmem:[#allocation10 + $0x7c0] sm:$0xff]
    %v1199 = vld [vmem:[#allocation10 + $0x7c8] sm:$0xff]
    %v1200 = vld [vmem:[#allocation10 + $0x7d0] sm:$0xff]
    %v1201 = vld [vmem:[#allocation10 + $0x7d8] sm:$0xff]
    %v1202 = vld [vmem:[#allocation10 + $0x7e0] sm:$0xff]
    %v1203 = vld [vmem:[#allocation10 + $0x7e8] sm:$0xff]
    %v1204 = vld [vmem:[#allocation10 + $0x7f0] sm:$0xff]
    %v1205 = vld [vmem:[#allocation10 + $0x7f8] sm:$0xff]
    %v1206 = vld [vmem:[#allocation10 + $0x800] sm:$0xff]
    %v1207 = vld [vmem:[#allocation10 + $0x808] sm:$0xff]
    %v1208 = vld [vmem:[#allocation10 + $0x810] sm:$0xff]
    %v1209 = vld [vmem:[#allocation10 + $0x818] sm:$0xff]
    %v1210 = vld [vmem:[#allocation10 + $0x820] sm:$0xff]
    %v1211 = vld [vmem:[#allocation10 + $0x828] sm:$0xff]
    %v1212 = vld [vmem:[#allocation10 + $0x830] sm:$0xff]
    %v1213 = vld [vmem:[#allocation10 + $0x838] sm:$0xff]
    %v1214 = vld [vmem:[#allocation10 + $0x840] sm:$0xff]
    %v1215 = vld [vmem:[#allocation10 + $0x848] sm:$0xff]
    %v1216 = vld [vmem:[#allocation10 + $0x850] sm:$0xff]
    %v1217 = vld [vmem:[#allocation10 + $0x858] sm:$0xff]
    %v1218 = vld [vmem:[#allocation10 + $0x860] sm:$0xff]
    %v1219 = vld [vmem:[#allocation10 + $0x868] sm:$0xff]
    %v1220 = vld [vmem:[#allocation10 + $0x870] sm:$0xff]
    %v1221 = vld [vmem:[#allocation10 + $0x878] sm:$0xff]
    %v1222 = vld [vmem:[#allocation10 + $0x880] sm:$0xff]
    %v1223 = vld [vmem:[#allocation10 + $0x888] sm:$0xff]
    %v1224 = vld [vmem:[#allocation10 + $0x890] sm:$0xff]
    %v1225 = vld [vmem:[#allocation10 + $0x898] sm:$0xff]
    %v1226 = vld [vmem:[#allocation10 + $0x8a0] sm:$0xff]
    %v1227 = vld [vmem:[#allocation10 + $0x8a8] sm:$0xff]
    %v1228 = vld [vmem:[#allocation10 + $0x8b0] sm:$0xff]
    %v1229 = vld [vmem:[#allocation10 + $0x8b8] sm:$0xff]
    %v1230 = vld [vmem:[#allocation10 + $0x8c0] sm:$0xff]
    %v1231 = vld [vmem:[#allocation10 + $0x8c8] sm:$0xff]
    %v1232 = vld [vmem:[#allocation10 + $0x8d0] sm:$0xff]
    %v1233 = vld [vmem:[#allocation10 + $0x8d8] sm:$0xff]
    %v1234 = vld [vmem:[#allocation10 + $0x8e0] sm:$0xff]
    %v1235 = vld [vmem:[#allocation10 + $0x8e8] sm:$0xff]
    %v1236 = vld [vmem:[#allocation10 + $0x8f0] sm:$0xff]
    %v1237 = vld [vmem:[#allocation10 + $0x8f8] sm:$0xff]
    %v1238 = vld [vmem:[#allocation10 + $0x900] sm:$0xff]
    %v1239 = vld [vmem:[#allocation10 + $0x908] sm:$0xff]
    %v1240 = vld [vmem:[#allocation10 + $0x910] sm:$0xff]
    %v1241 = vld [vmem:[#allocation10 + $0x918] sm:$0xff]
    %v1242 = vld [vmem:[#allocation10 + $0x920] sm:$0xff]
    %v1243 = vld [vmem:[#allocation10 + $0x928] sm:$0xff]
    %v1244 = vld [vmem:[#allocation10 + $0x930] sm:$0xff]
    %v1245 = vld [vmem:[#allocation10 + $0x938] sm:$0xff]
    %v1246 = vld [vmem:[#allocation10 + $0x940] sm:$0xff]
    %v1247 = vld [vmem:[#allocation10 + $0x948] sm:$0xff]
    %v1248 = vld [vmem:[#allocation10 + $0x950] sm:$0xff]
    %v1249 = vld [vmem:[#allocation10 + $0x958] sm:$0xff]
    %v1250 = vld [vmem:[#allocation10 + $0x960] sm:$0xff]
    %v1251 = vld [vmem:[#allocation10 + $0x968] sm:$0xff]
    %v1252 = vld [vmem:[#allocation10 + $0x970] sm:$0xff]
    %v1253 = vld [vmem:[#allocation10 + $0x978] sm:$0xff]
    %v1254 = vld [vmem:[#allocation10 + $0x980] sm:$0xff]
    %v1255 = vld [vmem:[#allocation10 + $0x988] sm:$0xff]
    %v1256 = vld [vmem:[#allocation10 + $0x990] sm:$0xff]
    %v1257 = vld [vmem:[#allocation10 + $0x998] sm:$0xff]
    %v1258 = vld [vmem:[#allocation10 + $0x9a0] sm:$0xff]
    %v1259 = vld [vmem:[#allocation10 + $0x9a8] sm:$0xff]
    %v1260 = vld [vmem:[#allocation10 + $0x9b0] sm:$0xff]
    %v1261 = vld [vmem:[#allocation10 + $0x9b8] sm:$0xff]
    %v1262 = vld [vmem:[#allocation10 + $0x9c0] sm:$0xff]
    %v1263 = vld [vmem:[#allocation10 + $0x9c8] sm:$0xff]
    %v1264 = vld [vmem:[#allocation10 + $0x9d0] sm:$0xff]
    %v1265 = vld [vmem:[#allocation10 + $0x9d8] sm:$0xff]
    %v1266 = vld [vmem:[#allocation10 + $0x9e0] sm:$0xff]
    %v1267 = vld [vmem:[#allocation10 + $0x9e8] sm:$0xff]
    %v1268 = vld [vmem:[#allocation10 + $0x9f0] sm:$0xff]
    %v1269 = vld [vmem:[#allocation10 + $0x9f8] sm:$0xff]
    %v1270 = vld [vmem:[#allocation10 + $0xa00] sm:$0xff]
    %v1271 = vld [vmem:[#allocation10 + $0xa08] sm:$0xff]
    %v1272 = vld [vmem:[#allocation10 + $0xa10] sm:$0xff]
    %v1273 = vld [vmem:[#allocation10 + $0xa18] sm:$0xff]
    %v1274 = vld [vmem:[#allocation10 + $0xa20] sm:$0xff]
    %v1275 = vld [vmem:[#allocation10 + $0xa28] sm:$0xff]
    %v1276 = vld [vmem:[#allocation10 + $0xa30] sm:$0xff]
    %v1277 = vld [vmem:[#allocation10 + $0xa38] sm:$0xff]
    %v1278 = vld [vmem:[#allocation10 + $0xa40] sm:$0xff]
    %v1279 = vld [vmem:[#allocation10 + $0xa48] sm:$0xff]
    %v1280 = vld [vmem:[#allocation10 + $0xa50] sm:$0xff]
    %v1281 = vld [vmem:[#allocation10 + $0xa58] sm:$0xff]
    %v1282 = vld [vmem:[#allocation10 + $0xa60] sm:$0xff]
    %v1283 = vld [vmem:[#allocation10 + $0xa68] sm:$0xff]
    %v1284 = vld [vmem:[#allocation10 + $0xa70] sm:$0xff]
    %v1285 = vld [vmem:[#allocation10 + $0xa78] sm:$0xff]
    %v1286 = vld [vmem:[#allocation10 + $0xa80] sm:$0xff]
    %v1287 = vld [vmem:[#allocation10 + $0xa88] sm:$0xff]
    %v1288 = vld [vmem:[#allocation10 + $0xa90] sm:$0xff]
    %v1289 = vld [vmem:[#allocation10 + $0xa98] sm:$0xff]
    %v1290 = vld [vmem:[#allocation10 + $0xaa0] sm:$0xff]
    %v1291 = vld [vmem:[#allocation10 + $0xaa8] sm:$0xff]
    %v1292 = vld [vmem:[#allocation10 + $0xab0] sm:$0xff]
    %v1293 = vld [vmem:[#allocation10 + $0xab8] sm:$0xff]
    %v1294 = vld [vmem:[#allocation10 + $0xac0] sm:$0xff]
    %v1295 = vld [vmem:[#allocation10 + $0xac8] sm:$0xff]
    %v1296 = vld [vmem:[#allocation10 + $0xad0] sm:$0xff]
    %v1297 = vld [vmem:[#allocation10 + $0xad8] sm:$0xff]
    %v1298 = vld [vmem:[#allocation10 + $0xae0] sm:$0xff]
    %v1299 = vld [vmem:[#allocation10 + $0xae8] sm:$0xff]
    %v1300 = vld [vmem:[#allocation10 + $0xaf0] sm:$0xff]
    %v1301 = vld [vmem:[#allocation10 + $0xaf8] sm:$0xff]
    %v1302 = vld [vmem:[#allocation10 + $0xb00] sm:$0xff]
    %v1303 = vld [vmem:[#allocation10 + $0xb08] sm:$0xff]
    %v1304 = vld [vmem:[#allocation10 + $0xb10] sm:$0xff]
    %v1305 = vld [vmem:[#allocation10 + $0xb18] sm:$0xff]
    %v1306 = vld [vmem:[#allocation10 + $0xb20] sm:$0xff]
    %v1307 = vld [vmem:[#allocation10 + $0xb28] sm:$0xff]
    %v1308 = vld [vmem:[#allocation10 + $0xb30] sm:$0xff]
    %v1309 = vld [vmem:[#allocation10 + $0xb38] sm:$0xff]
    %v1310 = vld [vmem:[#allocation10 + $0xb40] sm:$0xff]
    %v1311 = vld [vmem:[#allocation10 + $0xb48] sm:$0xff]
    %v1312 = vld [vmem:[#allocation10 + $0xb50] sm:$0xff]
    %v1313 = vld [vmem:[#allocation10 + $0xb58] sm:$0xff]
    %v1314 = vld [vmem:[#allocation10 + $0xb60] sm:$0xff]
    %v1315 = vld [vmem:[#allocation10 + $0xb68] sm:$0xff]
    %v1316 = vld [vmem:[#allocation10 + $0xb70] sm:$0xff]
    %v1317 = vld [vmem:[#allocation10 + $0xb78] sm:$0xff]
    %v1318 = vld [vmem:[#allocation10 + $0xb80] sm:$0xff]
    %v1319 = vld [vmem:[#allocation10 + $0xb88] sm:$0xff]
    %v1320 = vld [vmem:[#allocation10 + $0xb90] sm:$0xff]
    %v1321 = vld [vmem:[#allocation10 + $0xb98] sm:$0xff]
    %v1322 = vld [vmem:[#allocation10 + $0xba0] sm:$0xff]
    %v1323 = vld [vmem:[#allocation10 + $0xba8] sm:$0xff]
    %v1324 = vld [vmem:[#allocation10 + $0xbb0] sm:$0xff]
    %v1325 = vld [vmem:[#allocation10 + $0xbb8] sm:$0xff]
    %v1326 = vld [vmem:[#allocation10 + $0xbc0] sm:$0xff]
    %v1327 = vld [vmem:[#allocation10 + $0xbc8] sm:$0xff]
    %v1328 = vld [vmem:[#allocation10 + $0xbd0] sm:$0xff]
    %v1329 = vld [vmem:[#allocation10 + $0xbd8] sm:$0xff]
    %v1330 = vld [vmem:[#allocation10 + $0xbe0] sm:$0xff]
    %v1331 = vld [vmem:[#allocation10 + $0xbe8] sm:$0xff]
    %v1332 = vld [vmem:[#allocation10 + $0xbf0] sm:$0xff]
    %v1333 = vld [vmem:[#allocation10 + $0xbf8] sm:$0xff]
    %v1334 = vld [vmem:[#allocation10 + $0xc00] sm:$0xff]
    %v1335 = vld [vmem:[#allocation10 + $0xc08] sm:$0xff]
    %v1336 = vld [vmem:[#allocation10 + $0xc10] sm:$0xff]
    %v1337 = vld [vmem:[#allocation10 + $0xc18] sm:$0xff]
    %v1338 = vld [vmem:[#allocation10 + $0xc20] sm:$0xff]
    %v1339 = vld [vmem:[#allocation10 + $0xc28] sm:$0xff]
    %v1340 = vld [vmem:[#allocation10 + $0xc30] sm:$0xff]
    %v1341 = vld [vmem:[#allocation10 + $0xc38] sm:$0xff]
    %v1342 = vld [vmem:[#allocation10 + $0xc40] sm:$0xff]
    %v1343 = vld [vmem:[#allocation10 + $0xc48] sm:$0xff]
    %v1344 = vld [vmem:[#allocation10 + $0xc50] sm:$0xff]
    %v1345 = vld [vmem:[#allocation10 + $0xc58] sm:$0xff]
    %v1346 = vld [vmem:[#allocation10 + $0xc60] sm:$0xff]
    %v1347 = vld [vmem:[#allocation10 + $0xc68] sm:$0xff]
    %v1348 = vld [vmem:[#allocation10 + $0xc70] sm:$0xff]
    %v1349 = vld [vmem:[#allocation10 + $0xc78] sm:$0xff]
    %v1350 = vld [vmem:[#allocation10 + $0xc80] sm:$0xff]
    %v1351 = vld [vmem:[#allocation10 + $0xc88] sm:$0xff]
    %v1352 = vld [vmem:[#allocation10 + $0xc90] sm:$0xff]
    %v1353 = vld [vmem:[#allocation10 + $0xc98] sm:$0xff]
    %v1354 = vld [vmem:[#allocation10 + $0xca0] sm:$0xff]
    %v1355 = vld [vmem:[#allocation10 + $0xca8] sm:$0xff]
    %v1356 = vld [vmem:[#allocation10 + $0xcb0] sm:$0xff]
    %v1357 = vld [vmem:[#allocation10 + $0xcb8] sm:$0xff]
    %v1358 = vld [vmem:[#allocation10 + $0xcc0] sm:$0xff]
    %v1359 = vld [vmem:[#allocation10 + $0xcc8] sm:$0xff]
    %v1360 = vld [vmem:[#allocation10 + $0xcd0] sm:$0xff]
    %v1361 = vld [vmem:[#allocation10 + $0xcd8] sm:$0xff]
    %v1362 = vld [vmem:[#allocation10 + $0xce0] sm:$0xff]
    %v1363 = vld [vmem:[#allocation10 + $0xce8] sm:$0xff]
    %v1364 = vld [vmem:[#allocation10 + $0xcf0] sm:$0xff]
    %v1365 = vld [vmem:[#allocation10 + $0xcf8] sm:$0xff]
    %v1366 = vld [vmem:[#allocation10 + $0xd00] sm:$0xff]
    %v1367 = vld [vmem:[#allocation10 + $0xd08] sm:$0xff]
    %v1368 = vld [vmem:[#allocation10 + $0xd10] sm:$0xff]
    %v1369 = vld [vmem:[#allocation10 + $0xd18] sm:$0xff]
    %v1370 = vld [vmem:[#allocation10 + $0xd20] sm:$0xff]
    %v1371 = vld [vmem:[#allocation10 + $0xd28] sm:$0xff]
    %v1372 = vld [vmem:[#allocation10 + $0xd30] sm:$0xff]
    %v1373 = vld [vmem:[#allocation10 + $0xd38] sm:$0xff]
    %v1374 = vld [vmem:[#allocation10 + $0xd40] sm:$0xff]
    %v1375 = vld [vmem:[#allocation10 + $0xd48] sm:$0xff]
    %v1376 = vld [vmem:[#allocation10 + $0xd50] sm:$0xff]
    %v1377 = vld [vmem:[#allocation10 + $0xd58] sm:$0xff]
    %v1378 = vld [vmem:[#allocation10 + $0xd60] sm:$0xff]
    %v1379 = vld [vmem:[#allocation10 + $0xd68] sm:$0xff]
    %v1380 = vld [vmem:[#allocation10 + $0xd70] sm:$0xff]
    %v1381 = vld [vmem:[#allocation10 + $0xd78] sm:$0xff]
    %v1382 = vld [vmem:[#allocation10 + $0xd80] sm:$0xff]
    %v1383 = vld [vmem:[#allocation10 + $0xd88] sm:$0xff]
    %v1384 = vld [vmem:[#allocation10 + $0xd90] sm:$0xff]
    %v1385 = vld [vmem:[#allocation10 + $0xd98] sm:$0xff]
    %v1386 = vld [vmem:[#allocation10 + $0xda0] sm:$0xff]
    %v1387 = vld [vmem:[#allocation10 + $0xda8] sm:$0xff]
    %v1388 = vld [vmem:[#allocation10 + $0xdb0] sm:$0xff]
    %v1389 = vld [vmem:[#allocation10 + $0xdb8] sm:$0xff]
    %v1390 = vld [vmem:[#allocation10 + $0xdc0] sm:$0xff]
    %v1391 = vld [vmem:[#allocation10 + $0xdc8] sm:$0xff]
    %v1392 = vld [vmem:[#allocation10 + $0xdd0] sm:$0xff]
    %v1393 = vld [vmem:[#allocation10 + $0xdd8] sm:$0xff]
    %v1394 = vld [vmem:[#allocation10 + $0xde0] sm:$0xff]
    %v1395 = vld [vmem:[#allocation10 + $0xde8] sm:$0xff]
    %v1396 = vld [vmem:[#allocation10 + $0xdf0] sm:$0xff]
    %v1397 = vld [vmem:[#allocation10 + $0xdf8] sm:$0xff]
    %v1398 = vld [vmem:[#allocation10 + $0xe00] sm:$0xff]
    %v1399 = vld [vmem:[#allocation10 + $0xe08] sm:$0xff]
    %v1400 = vld [vmem:[#allocation10 + $0xe10] sm:$0xff]
    %v1401 = vld [vmem:[#allocation10 + $0xe18] sm:$0xff]
    %v1402 = vld [vmem:[#allocation10 + $0xe20] sm:$0xff]
    %v1403 = vld [vmem:[#allocation10 + $0xe28] sm:$0xff]
    %v1404 = vld [vmem:[#allocation10 + $0xe30] sm:$0xff]
    %v1405 = vld [vmem:[#allocation10 + $0xe38] sm:$0xff]
    %v1406 = vld [vmem:[#allocation10 + $0xe40] sm:$0xff]
    %v1407 = vld [vmem:[#allocation10 + $0xe48] sm:$0xff]
    %v1408 = vld [vmem:[#allocation10 + $0xe50] sm:$0xff]
    %v1409 = vld [vmem:[#allocation10 + $0xe58] sm:$0xff]
    %v1410 = vld [vmem:[#allocation10 + $0xe60] sm:$0xff]
    %v1411 = vld [vmem:[#allocation10 + $0xe68] sm:$0xff]
    %v1412 = vld [vmem:[#allocation10 + $0xe70] sm:$0xff]
    %v1413 = vld [vmem:[#allocation10 + $0xe78] sm:$0xff]
    %v1414 = vld [vmem:[#allocation10 + $0xe80] sm:$0xff]
    %v1415 = vld [vmem:[#allocation10 + $0xe88] sm:$0xff]
    %v1416 = vld [vmem:[#allocation10 + $0xe90] sm:$0xff]
    %v1417 = vld [vmem:[#allocation10 + $0xe98] sm:$0xff]
    %v1418 = vld [vmem:[#allocation10 + $0xea0] sm:$0xff]
    %v1419 = vld [vmem:[#allocation10 + $0xea8] sm:$0xff]
    %v1420 = vld [vmem:[#allocation10 + $0xeb0] sm:$0xff]
    %v1421 = vld [vmem:[#allocation10 + $0xeb8] sm:$0xff]
    %v1422 = vld [vmem:[#allocation10 + $0xec0] sm:$0xff]
    %v1423 = vld [vmem:[#allocation10 + $0xec8] sm:$0xff]
    %v1424 = vld [vmem:[#allocation10 + $0xed0] sm:$0xff]
    %v1425 = vld [vmem:[#allocation10 + $0xed8] sm:$0xff]
    %v1426 = vld [vmem:[#allocation10 + $0xee0] sm:$0xff]
    %v1427 = vld [vmem:[#allocation10 + $0xee8] sm:$0xff]
    %v1428 = vld [vmem:[#allocation10 + $0xef0] sm:$0xff]
    %v1429 = vld [vmem:[#allocation10 + $0xef8] sm:$0xff]
    %v1430 = vld [vmem:[#allocation10 + $0xf00] sm:$0xff]
    %v1431 = vld [vmem:[#allocation10 + $0xf08] sm:$0xff]
    %v1432 = vld [vmem:[#allocation10 + $0xf10] sm:$0xff]
    %v1433 = vld [vmem:[#allocation10 + $0xf18] sm:$0xff]
    %v1434 = vld [vmem:[#allocation10 + $0xf20] sm:$0xff]
    %v1435 = vld [vmem:[#allocation10 + $0xf28] sm:$0xff]
    %v1436 = vld [vmem:[#allocation10 + $0xf30] sm:$0xff]
    %v1437 = vld [vmem:[#allocation10 + $0xf38] sm:$0xff]
    %v1438 = vld [vmem:[#allocation10 + $0xf40] sm:$0xff]
    %v1439 = vld [vmem:[#allocation10 + $0xf48] sm:$0xff]
    %v1440 = vld [vmem:[#allocation10 + $0xf50] sm:$0xff]
    %v1441 = vld [vmem:[#allocation10 + $0xf58] sm:$0xff]
    %v1442 = vld [vmem:[#allocation10 + $0xf60] sm:$0xff]
    %v1443 = vld [vmem:[#allocation10 + $0xf68] sm:$0xff]
    %v1444 = vld [vmem:[#allocation10 + $0xf70] sm:$0xff]
    %v1445 = vld [vmem:[#allocation10 + $0xf78] sm:$0xff]
    %v1446 = vld [vmem:[#allocation10 + $0xf80] sm:$0xff]
    %v1447 = vld [vmem:[#allocation10 + $0xf88] sm:$0xff]
    %v1448 = vld [vmem:[#allocation10 + $0xf90] sm:$0xff]
    %v1449 = vld [vmem:[#allocation10 + $0xf98] sm:$0xff]
    %v1450 = vld [vmem:[#allocation10 + $0xfa0] sm:$0xff]
    %v1451 = vld [vmem:[#allocation10 + $0xfa8] sm:$0xff]
    %v1452 = vld [vmem:[#allocation10 + $0xfb0] sm:$0xff]
    %v1453 = vld [vmem:[#allocation10 + $0xfb8] sm:$0xff]
    %v1454 = vld [vmem:[#allocation10 + $0xfc0] sm:$0xff]
    %v1455 = vld [vmem:[#allocation10 + $0xfc8] sm:$0xff]
    %v1456 = vld [vmem:[#allocation10 + $0xfd0] sm:$0xff]
    %v1457 = vld [vmem:[#allocation10 + $0xfd8] sm:$0xff]
    %v1458 = vld [vmem:[#allocation10 + $0xfe0] sm:$0xff]
    %v1459 = vld [vmem:[#allocation10 + $0xfe8] sm:$0xff]
    %v1460 = vld [vmem:[#allocation10 + $0xff0] sm:$0xff]
    %v1461 = vld [vmem:[#allocation10 + $0xff8] sm:$0xff]
    %v1462 = vld [vmem:[#allocation11] sm:$0xff]
    %v1463 = vld [vmem:[#allocation11 + $0x8] sm:$0xff]
    %v1464 = vld [vmem:[#allocation11 + $0x10] sm:$0xff]
    %v1465 = vld [vmem:[#allocation11 + $0x18] sm:$0xff]
    %v1470 = vlaneseq
    %v1471 = vshrl.u32 %v1470, 7
    %v1472 = vsub.s32 0, %v1471
    %v1473 = vrot.slane %v1462, %v1472
    %v1474 = vlaneseq
    %v1475 = vshrl.u32 %v1474, 7
    %v1476 = vsub.s32 1, %v1475
    %v1477 = vrot.slane %v1462, %v1476
    %v1478 = vlaneseq
    %v1479 = vshrl.u32 %v1478, 7
    %v1480 = vsub.s32 2, %v1479
    %v1481 = vrot.slane %v1462, %v1480
    %v1482 = vlaneseq
    %v1483 = vshrl.u32 %v1482, 7
    %v1484 = vsub.s32 3, %v1483
    %v1485 = vrot.slane %v1462, %v1484
    %v1486 = vlaneseq
    %v1487 = vshrl.u32 %v1486, 7
    %v1488 = vsub.s32 4, %v1487
    %v1489 = vrot.slane %v1462, %v1488
    %v1490 = vlaneseq
    %v1491 = vshrl.u32 %v1490, 7
    %v1492 = vsub.s32 5, %v1491
    %v1493 = vrot.slane %v1462, %v1492
    %v1494 = vlaneseq
    %v1495 = vshrl.u32 %v1494, 7
    %v1496 = vsub.s32 6, %v1495
    %v1497 = vrot.slane %v1462, %v1496
    %v1498 = vlaneseq
    %v1499 = vshrl.u32 %v1498, 7
    %v1500 = vsub.s32 7, %v1499
    %v1501 = vrot.slane %v1462, %v1500
    %v1502 = vlaneseq
    %v1503 = vshrl.u32 %v1502, 7
    %v1504 = vsub.s32 0, %v1503
    %v1505 = vrot.slane %v1463, %v1504
    %v1506 = vlaneseq
    %v1507 = vshrl.u32 %v1506, 7
    %v1508 = vsub.s32 1, %v1507
    %v1509 = vrot.slane %v1463, %v1508
    %v1510 = vlaneseq
    %v1511 = vshrl.u32 %v1510, 7
    %v1512 = vsub.s32 2, %v1511
    %v1513 = vrot.slane %v1463, %v1512
    %v1514 = vlaneseq
    %v1515 = vshrl.u32 %v1514, 7
    %v1516 = vsub.s32 3, %v1515
    %v1517 = vrot.slane %v1463, %v1516
    %v1518 = vlaneseq
    %v1519 = vshrl.u32 %v1518, 7
    %v1520 = vsub.s32 4, %v1519
    %v1521 = vrot.slane %v1463, %v1520
    %v1522 = vlaneseq
    %v1523 = vshrl.u32 %v1522, 7
    %v1524 = vsub.s32 5, %v1523
    %v1525 = vrot.slane %v1463, %v1524
    %v1526 = vlaneseq
    %v1527 = vshrl.u32 %v1526, 7
    %v1528 = vsub.s32 6, %v1527
    %v1529 = vrot.slane %v1463, %v1528
    %v1530 = vlaneseq
    %v1531 = vshrl.u32 %v1530, 7
    %v1532 = vsub.s32 7, %v1531
    %v1533 = vrot.slane %v1463, %v1532
    %v1534 = vlaneseq
    %v1535 = vshrl.u32 %v1534, 7
    %v1536 = vsub.s32 0, %v1535
    %v1537 = vrot.slane %v1464, %v1536
    %v1538 = vlaneseq
    %v1539 = vshrl.u32 %v1538, 7
    %v1540 = vsub.s32 1, %v1539
    %v1541 = vrot.slane %v1464, %v1540
    %v1542 = vlaneseq
    %v1543 = vshrl.u32 %v1542, 7
    %v1544 = vsub.s32 2, %v1543
    %v1545 = vrot.slane %v1464, %v1544
    %v1546 = vlaneseq
    %v1547 = vshrl.u32 %v1546, 7
    %v1548 = vsub.s32 3, %v1547
    %v1549 = vrot.slane %v1464, %v1548
    %v1550 = vlaneseq
    %v1551 = vshrl.u32 %v1550, 7
    %v1552 = vsub.s32 4, %v1551
    %v1553 = vrot.slane %v1464, %v1552
    %v1554 = vlaneseq
    %v1555 = vshrl.u32 %v1554, 7
    %v1556 = vsub.s32 5, %v1555
    %v1557 = vrot.slane %v1464, %v1556
    %v1558 = vlaneseq
    %v1559 = vshrl.u32 %v1558, 7
    %v1560 = vsub.s32 6, %v1559
    %v1561 = vrot.slane %v1464, %v1560
    %v1562 = vlaneseq
    %v1563 = vshrl.u32 %v1562, 7
    %v1564 = vsub.s32 7, %v1563
    %v1565 = vrot.slane %v1464, %v1564
    %v1566 = vlaneseq
    %v1567 = vshrl.u32 %v1566, 7
    %v1568 = vsub.s32 0, %v1567
    %v1569 = vrot.slane %v1465, %v1568
    %v1570 = vlaneseq
    %v1571 = vshrl.u32 %v1570, 7
    %v1572 = vsub.s32 1, %v1571
    %v1573 = vrot.slane %v1465, %v1572
    %v1574 = vlaneseq
    %v1575 = vshrl.u32 %v1574, 7
    %v1576 = vsub.s32 2, %v1575
    %v1577 = vrot.slane %v1465, %v1576
    %v1578 = vlaneseq
    %v1579 = vshrl.u32 %v1578, 7
    %v1580 = vsub.s32 3, %v1579
    %v1581 = vrot.slane %v1465, %v1580
    %v1582 = vlaneseq
    %v1583 = vshrl.u32 %v1582, 7
    %v1584 = vsub.s32 4, %v1583
    %v1585 = vrot.slane %v1465, %v1584
    %v1586 = vlaneseq
    %v1587 = vshrl.u32 %v1586, 7
    %v1588 = vsub.s32 5, %v1587
    %v1589 = vrot.slane %v1465, %v1588
    %v1590 = vlaneseq
    %v1591 = vshrl.u32 %v1590, 7
    %v1592 = vsub.s32 6, %v1591
    %v1593 = vrot.slane %v1465, %v1592
    %v1594 = vlaneseq
    %v1595 = vshrl.u32 %v1594, 7
    %v1596 = vsub.s32 7, %v1595
    %v1597 = vrot.slane %v1465, %v1596
    %v1632 = vunpack.c.l.b16 %v948
    %v1633 = vunpack.c.h.b16 %v948
    %v1634 = vunpack.c.l.b16 %v949
    %v1635 = vunpack.c.h.b16 %v949
    %v1636 = vpack.c.b16 %v1634, %v1632
    %v1637 = vpack.c.b16 %v1635, %v1633
    %v2152 = vunpack.c.l.b16 %v950
    %v2153 = vunpack.c.h.b16 %v950
    %v2154 = vunpack.c.l.b16 %v951
    %v2155 = vunpack.c.h.b16 %v951
    %v2156 = vunpack.c.l.b16 %v952
    %v2157 = vunpack.c.h.b16 %v952
    %v2158 = vunpack.c.l.b16 %v953
    %v2159 = vunpack.c.h.b16 %v953
    %v2160 = vunpack.c.l.b16 %v954
    %v2161 = vunpack.c.h.b16 %v954
    %v2162 = vunpack.c.l.b16 %v955
    %v2163 = vunpack.c.h.b16 %v955
    %v2164 = vunpack.c.l.b16 %v956
    %v2165 = vunpack.c.h.b16 %v956
    %v2166 = vunpack.c.l.b16 %v957
    %v2167 = vunpack.c.h.b16 %v957
    %v2168 = vunpack.c.l.b16 %v958
    %v2169 = vunpack.c.h.b16 %v958
    %v2170 = vunpack.c.l.b16 %v959
    %v2171 = vunpack.c.h.b16 %v959
    %v2172 = vunpack.c.l.b16 %v960
    %v2173 = vunpack.c.h.b16 %v960
    %v2174 = vunpack.c.l.b16 %v961
    %v2175 = vunpack.c.h.b16 %v961
    %v2176 = vunpack.c.l.b16 %v962
    %v2177 = vunpack.c.h.b16 %v962
    %v2178 = vunpack.c.l.b16 %v963
    %v2179 = vunpack.c.h.b16 %v963
    %v2180 = vunpack.c.l.b16 %v964
    %v2181 = vunpack.c.h.b16 %v964
    %v2182 = vunpack.c.l.b16 %v965
    %v2183 = vunpack.c.h.b16 %v965
    %v2184 = vunpack.c.l.b16 %v966
    %v2185 = vunpack.c.h.b16 %v966
    %v2186 = vunpack.c.l.b16 %v967
    %v2187 = vunpack.c.h.b16 %v967
    %v2188 = vunpack.c.l.b16 %v968
    %v2189 = vunpack.c.h.b16 %v968
    %v2190 = vunpack.c.l.b16 %v969
    %v2191 = vunpack.c.h.b16 %v969
    %v2192 = vunpack.c.l.b16 %v970
    %v2193 = vunpack.c.h.b16 %v970
    %v2194 = vunpack.c.l.b16 %v971
    %v2195 = vunpack.c.h.b16 %v971
    %v2196 = vunpack.c.l.b16 %v972
    %v2197 = vunpack.c.h.b16 %v972
    %v2198 = vunpack.c.l.b16 %v973
    %v2199 = vunpack.c.h.b16 %v973
    %v2200 = vunpack.c.l.b16 %v974
    %v2201 = vunpack.c.h.b16 %v974
    %v2202 = vunpack.c.l.b16 %v975
    %v2203 = vunpack.c.h.b16 %v975
    %v2204 = vunpack.c.l.b16 %v976
    %v2205 = vunpack.c.h.b16 %v976
    %v2206 = vunpack.c.l.b16 %v977
    %v2207 = vunpack.c.h.b16 %v977
    %v2208 = vunpack.c.l.b16 %v978
    %v2209 = vunpack.c.h.b16 %v978
    %v2210 = vunpack.c.l.b16 %v979
    %v2211 = vunpack.c.h.b16 %v979
    %v2212 = vunpack.c.l.b16 %v980
    %v2213 = vunpack.c.h.b16 %v980
    %v2214 = vunpack.c.l.b16 %v981
    %v2215 = vunpack.c.h.b16 %v981
    %v2216 = vunpack.c.l.b16 %v982
    %v2217 = vunpack.c.h.b16 %v982
    %v2218 = vunpack.c.l.b16 %v983
    %v2219 = vunpack.c.h.b16 %v983
    %v2220 = vunpack.c.l.b16 %v984
    %v2221 = vunpack.c.h.b16 %v984
    %v2222 = vunpack.c.l.b16 %v985
    %v2223 = vunpack.c.h.b16 %v985
    %v2224 = vunpack.c.l.b16 %v986
    %v2225 = vunpack.c.h.b16 %v986
    %v2226 = vunpack.c.l.b16 %v987
    %v2227 = vunpack.c.h.b16 %v987
    %v2228 = vunpack.c.l.b16 %v988
    %v2229 = vunpack.c.h.b16 %v988
    %v2230 = vunpack.c.l.b16 %v989
    %v2231 = vunpack.c.h.b16 %v989
    %v2232 = vunpack.c.l.b16 %v990
    %v2233 = vunpack.c.h.b16 %v990
    %v2234 = vunpack.c.l.b16 %v991
    %v2235 = vunpack.c.h.b16 %v991
    %v2236 = vunpack.c.l.b16 %v992
    %v2237 = vunpack.c.h.b16 %v992
    %v2238 = vunpack.c.l.b16 %v993
    %v2239 = vunpack.c.h.b16 %v993
    %v2240 = vunpack.c.l.b16 %v994
    %v2241 = vunpack.c.h.b16 %v994
    %v2242 = vunpack.c.l.b16 %v995
    %v2243 = vunpack.c.h.b16 %v995
    %v2244 = vunpack.c.l.b16 %v996
    %v2245 = vunpack.c.h.b16 %v996
    %v2246 = vunpack.c.l.b16 %v997
    %v2247 = vunpack.c.h.b16 %v997
    %v2248 = vunpack.c.l.b16 %v998
    %v2249 = vunpack.c.h.b16 %v998
    %v2250 = vunpack.c.l.b16 %v999
    %v2251 = vunpack.c.h.b16 %v999
    %v2252 = vunpack.c.l.b16 %v1000
    %v2253 = vunpack.c.h.b16 %v1000
    %v2254 = vunpack.c.l.b16 %v1001
    %v2255 = vunpack.c.h.b16 %v1001
    %v2256 = vunpack.c.l.b16 %v1002
    %v2257 = vunpack.c.h.b16 %v1002
    %v2258 = vunpack.c.l.b16 %v1003
    %v2259 = vunpack.c.h.b16 %v1003
    %v2260 = vunpack.c.l.b16 %v1004
    %v2261 = vunpack.c.h.b16 %v1004
    %v2262 = vunpack.c.l.b16 %v1005
    %v2263 = vunpack.c.h.b16 %v1005
    %v2264 = vunpack.c.l.b16 %v1006
    %v2265 = vunpack.c.h.b16 %v1006
    %v2266 = vunpack.c.l.b16 %v1007
    %v2267 = vunpack.c.h.b16 %v1007
    %v2268 = vunpack.c.l.b16 %v1008
    %v2269 = vunpack.c.h.b16 %v1008
    %v2270 = vunpack.c.l.b16 %v1009
    %v2271 = vunpack.c.h.b16 %v1009
    %v2272 = vunpack.c.l.b16 %v1010
    %v2273 = vunpack.c.h.b16 %v1010
    %v2274 = vunpack.c.l.b16 %v1011
    %v2275 = vunpack.c.h.b16 %v1011
    %v2276 = vunpack.c.l.b16 %v1012
    %v2277 = vunpack.c.h.b16 %v1012
    %v2278 = vunpack.c.l.b16 %v1013
    %v2279 = vunpack.c.h.b16 %v1013
    %v2280 = vunpack.c.l.b16 %v1014
    %v2281 = vunpack.c.h.b16 %v1014
    %v2282 = vunpack.c.l.b16 %v1015
    %v2283 = vunpack.c.h.b16 %v1015
    %v2284 = vunpack.c.l.b16 %v1016
    %v2285 = vunpack.c.h.b16 %v1016
    %v2286 = vunpack.c.l.b16 %v1017
    %v2287 = vunpack.c.h.b16 %v1017
    %v2288 = vunpack.c.l.b16 %v1018
    %v2289 = vunpack.c.h.b16 %v1018
    %v2290 = vunpack.c.l.b16 %v1019
    %v2291 = vunpack.c.h.b16 %v1019
    %v2292 = vunpack.c.l.b16 %v1020
    %v2293 = vunpack.c.h.b16 %v1020
    %v2294 = vunpack.c.l.b16 %v1021
    %v2295 = vunpack.c.h.b16 %v1021
    %v2296 = vunpack.c.l.b16 %v1022
    %v2297 = vunpack.c.h.b16 %v1022
    %v2298 = vunpack.c.l.b16 %v1023
    %v2299 = vunpack.c.h.b16 %v1023
    %v2300 = vunpack.c.l.b16 %v1024
    %v2301 = vunpack.c.h.b16 %v1024
    %v2302 = vunpack.c.l.b16 %v1025
    %v2303 = vunpack.c.h.b16 %v1025
    %v2304 = vunpack.c.l.b16 %v1026
    %v2305 = vunpack.c.h.b16 %v1026
    %v2306 = vunpack.c.l.b16 %v1027
    %v2307 = vunpack.c.h.b16 %v1027
    %v2308 = vunpack.c.l.b16 %v1028
    %v2309 = vunpack.c.h.b16 %v1028
    %v2310 = vunpack.c.l.b16 %v1029
    %v2311 = vunpack.c.h.b16 %v1029
    %v2312 = vunpack.c.l.b16 %v1030
    %v2313 = vunpack.c.h.b16 %v1030
    %v2314 = vunpack.c.l.b16 %v1031
    %v2315 = vunpack.c.h.b16 %v1031
    %v2316 = vunpack.c.l.b16 %v1032
    %v2317 = vunpack.c.h.b16 %v1032
    %v2318 = vunpack.c.l.b16 %v1033
    %v2319 = vunpack.c.h.b16 %v1033
    %v2320 = vunpack.c.l.b16 %v1034
    %v2321 = vunpack.c.h.b16 %v1034
    %v2322 = vunpack.c.l.b16 %v1035
    %v2323 = vunpack.c.h.b16 %v1035
    %v2324 = vunpack.c.l.b16 %v1036
    %v2325 = vunpack.c.h.b16 %v1036
    %v2326 = vunpack.c.l.b16 %v1037
    %v2327 = vunpack.c.h.b16 %v1037
    %v2328 = vunpack.c.l.b16 %v1038
    %v2329 = vunpack.c.h.b16 %v1038
    %v2330 = vunpack.c.l.b16 %v1039
    %v2331 = vunpack.c.h.b16 %v1039
    %v2332 = vunpack.c.l.b16 %v1040
    %v2333 = vunpack.c.h.b16 %v1040
    %v2334 = vunpack.c.l.b16 %v1041
    %v2335 = vunpack.c.h.b16 %v1041
    %v2336 = vunpack.c.l.b16 %v1042
    %v2337 = vunpack.c.h.b16 %v1042
    %v2338 = vunpack.c.l.b16 %v1043
    %v2339 = vunpack.c.h.b16 %v1043
    %v2340 = vunpack.c.l.b16 %v1044
    %v2341 = vunpack.c.h.b16 %v1044
    %v2342 = vunpack.c.l.b16 %v1045
    %v2343 = vunpack.c.h.b16 %v1045
    %v2344 = vunpack.c.l.b16 %v1046
    %v2345 = vunpack.c.h.b16 %v1046
    %v2346 = vunpack.c.l.b16 %v1047
    %v2347 = vunpack.c.h.b16 %v1047
    %v2348 = vunpack.c.l.b16 %v1048
    %v2349 = vunpack.c.h.b16 %v1048
    %v2350 = vunpack.c.l.b16 %v1049
    %v2351 = vunpack.c.h.b16 %v1049
    %v2352 = vunpack.c.l.b16 %v1050
    %v2353 = vunpack.c.h.b16 %v1050
    %v2354 = vunpack.c.l.b16 %v1051
    %v2355 = vunpack.c.h.b16 %v1051
    %v2356 = vunpack.c.l.b16 %v1052
    %v2357 = vunpack.c.h.b16 %v1052
    %v2358 = vunpack.c.l.b16 %v1053
    %v2359 = vunpack.c.h.b16 %v1053
    %v2360 = vunpack.c.l.b16 %v1054
    %v2361 = vunpack.c.h.b16 %v1054
    %v2362 = vunpack.c.l.b16 %v1055
    %v2363 = vunpack.c.h.b16 %v1055
    %v2364 = vunpack.c.l.b16 %v1056
    %v2365 = vunpack.c.h.b16 %v1056
    %v2366 = vunpack.c.l.b16 %v1057
    %v2367 = vunpack.c.h.b16 %v1057
    %v2368 = vunpack.c.l.b16 %v1058
    %v2369 = vunpack.c.h.b16 %v1058
    %v2370 = vunpack.c.l.b16 %v1059
    %v2371 = vunpack.c.h.b16 %v1059
    %v2372 = vunpack.c.l.b16 %v1060
    %v2373 = vunpack.c.h.b16 %v1060
    %v2374 = vunpack.c.l.b16 %v1061
    %v2375 = vunpack.c.h.b16 %v1061
    %v2376 = vunpack.c.l.b16 %v1062
    %v2377 = vunpack.c.h.b16 %v1062
    %v2378 = vunpack.c.l.b16 %v1063
    %v2379 = vunpack.c.h.b16 %v1063
    %v2380 = vunpack.c.l.b16 %v1064
    %v2381 = vunpack.c.h.b16 %v1064
    %v2382 = vunpack.c.l.b16 %v1065
    %v2383 = vunpack.c.h.b16 %v1065
    %v2384 = vunpack.c.l.b16 %v1066
    %v2385 = vunpack.c.h.b16 %v1066
    %v2386 = vunpack.c.l.b16 %v1067
    %v2387 = vunpack.c.h.b16 %v1067
    %v2388 = vunpack.c.l.b16 %v1068
    %v2389 = vunpack.c.h.b16 %v1068
    %v2390 = vunpack.c.l.b16 %v1069
    %v2391 = vunpack.c.h.b16 %v1069
    %v2392 = vunpack.c.l.b16 %v1070
    %v2393 = vunpack.c.h.b16 %v1070
    %v2394 = vunpack.c.l.b16 %v1071
    %v2395 = vunpack.c.h.b16 %v1071
    %v2396 = vunpack.c.l.b16 %v1072
    %v2397 = vunpack.c.h.b16 %v1072
    %v2398 = vunpack.c.l.b16 %v1073
    %v2399 = vunpack.c.h.b16 %v1073
    %v2400 = vunpack.c.l.b16 %v1074
    %v2401 = vunpack.c.h.b16 %v1074
    %v2402 = vunpack.c.l.b16 %v1075
    %v2403 = vunpack.c.h.b16 %v1075
    %v2404 = vunpack.c.l.b16 %v1076
    %v2405 = vunpack.c.h.b16 %v1076
    %v2406 = vunpack.c.l.b16 %v1077
    %v2407 = vunpack.c.h.b16 %v1077
    %v2408 = vunpack.c.l.b16 %v1078
    %v2409 = vunpack.c.h.b16 %v1078
    %v2410 = vunpack.c.l.b16 %v1079
    %v2411 = vunpack.c.h.b16 %v1079
    %v2412 = vunpack.c.l.b16 %v1080
    %v2413 = vunpack.c.h.b16 %v1080
    %v2414 = vunpack.c.l.b16 %v1081
    %v2415 = vunpack.c.h.b16 %v1081
    %v2416 = vunpack.c.l.b16 %v1082
    %v2417 = vunpack.c.h.b16 %v1082
    %v2418 = vunpack.c.l.b16 %v1083
    %v2419 = vunpack.c.h.b16 %v1083
    %v2420 = vunpack.c.l.b16 %v1084
    %v2421 = vunpack.c.h.b16 %v1084
    %v2422 = vunpack.c.l.b16 %v1085
    %v2423 = vunpack.c.h.b16 %v1085
    %v2424 = vunpack.c.l.b16 %v1086
    %v2425 = vunpack.c.h.b16 %v1086
    %v2426 = vunpack.c.l.b16 %v1087
    %v2427 = vunpack.c.h.b16 %v1087
    %v2428 = vunpack.c.l.b16 %v1088
    %v2429 = vunpack.c.h.b16 %v1088
    %v2430 = vunpack.c.l.b16 %v1089
    %v2431 = vunpack.c.h.b16 %v1089
    %v2432 = vunpack.c.l.b16 %v1090
    %v2433 = vunpack.c.h.b16 %v1090
    %v2434 = vunpack.c.l.b16 %v1091
    %v2435 = vunpack.c.h.b16 %v1091
    %v2436 = vunpack.c.l.b16 %v1092
    %v2437 = vunpack.c.h.b16 %v1092
    %v2438 = vunpack.c.l.b16 %v1093
    %v2439 = vunpack.c.h.b16 %v1093
    %v2440 = vunpack.c.l.b16 %v1094
    %v2441 = vunpack.c.h.b16 %v1094
    %v2442 = vunpack.c.l.b16 %v1095
    %v2443 = vunpack.c.h.b16 %v1095
    %v2444 = vunpack.c.l.b16 %v1096
    %v2445 = vunpack.c.h.b16 %v1096
    %v2446 = vunpack.c.l.b16 %v1097
    %v2447 = vunpack.c.h.b16 %v1097
    %v2448 = vunpack.c.l.b16 %v1098
    %v2449 = vunpack.c.h.b16 %v1098
    %v2450 = vunpack.c.l.b16 %v1099
    %v2451 = vunpack.c.h.b16 %v1099
    %v2452 = vunpack.c.l.b16 %v1100
    %v2453 = vunpack.c.h.b16 %v1100
    %v2454 = vunpack.c.l.b16 %v1101
    %v2455 = vunpack.c.h.b16 %v1101
    %v2456 = vunpack.c.l.b16 %v1102
    %v2457 = vunpack.c.h.b16 %v1102
    %v2458 = vunpack.c.l.b16 %v1103
    %v2459 = vunpack.c.h.b16 %v1103
    %v2460 = vunpack.c.l.b16 %v1104
    %v2461 = vunpack.c.h.b16 %v1104
    %v2462 = vunpack.c.l.b16 %v1105
    %v2463 = vunpack.c.h.b16 %v1105
    %v2464 = vunpack.c.l.b16 %v1106
    %v2465 = vunpack.c.h.b16 %v1106
    %v2466 = vunpack.c.l.b16 %v1107
    %v2467 = vunpack.c.h.b16 %v1107
    %v2468 = vunpack.c.l.b16 %v1108
    %v2469 = vunpack.c.h.b16 %v1108
    %v2470 = vunpack.c.l.b16 %v1109
    %v2471 = vunpack.c.h.b16 %v1109
    %v2472 = vunpack.c.l.b16 %v1110
    %v2473 = vunpack.c.h.b16 %v1110
    %v2474 = vunpack.c.l.b16 %v1111
    %v2475 = vunpack.c.h.b16 %v1111
    %v2476 = vunpack.c.l.b16 %v1112
    %v2477 = vunpack.c.h.b16 %v1112
    %v2478 = vunpack.c.l.b16 %v1113
    %v2479 = vunpack.c.h.b16 %v1113
    %v2480 = vunpack.c.l.b16 %v1114
    %v2481 = vunpack.c.h.b16 %v1114
    %v2482 = vunpack.c.l.b16 %v1115
    %v2483 = vunpack.c.h.b16 %v1115
    %v2484 = vunpack.c.l.b16 %v1116
    %v2485 = vunpack.c.h.b16 %v1116
    %v2486 = vunpack.c.l.b16 %v1117
    %v2487 = vunpack.c.h.b16 %v1117
    %v2488 = vunpack.c.l.b16 %v1118
    %v2489 = vunpack.c.h.b16 %v1118
    %v2490 = vunpack.c.l.b16 %v1119
    %v2491 = vunpack.c.h.b16 %v1119
    %v2492 = vunpack.c.l.b16 %v1120
    %v2493 = vunpack.c.h.b16 %v1120
    %v2494 = vunpack.c.l.b16 %v1121
    %v2495 = vunpack.c.h.b16 %v1121
    %v2496 = vunpack.c.l.b16 %v1122
    %v2497 = vunpack.c.h.b16 %v1122
    %v2498 = vunpack.c.l.b16 %v1123
    %v2499 = vunpack.c.h.b16 %v1123
    %v2500 = vunpack.c.l.b16 %v1124
    %v2501 = vunpack.c.h.b16 %v1124
    %v2502 = vunpack.c.l.b16 %v1125
    %v2503 = vunpack.c.h.b16 %v1125
    %v2504 = vunpack.c.l.b16 %v1126
    %v2505 = vunpack.c.h.b16 %v1126
    %v2506 = vunpack.c.l.b16 %v1127
    %v2507 = vunpack.c.h.b16 %v1127
    %v2508 = vunpack.c.l.b16 %v1128
    %v2509 = vunpack.c.h.b16 %v1128
    %v2510 = vunpack.c.l.b16 %v1129
    %v2511 = vunpack.c.h.b16 %v1129
    %v2512 = vunpack.c.l.b16 %v1130
    %v2513 = vunpack.c.h.b16 %v1130
    %v2514 = vunpack.c.l.b16 %v1131
    %v2515 = vunpack.c.h.b16 %v1131
    %v2516 = vunpack.c.l.b16 %v1132
    %v2517 = vunpack.c.h.b16 %v1132
    %v2518 = vunpack.c.l.b16 %v1133
    %v2519 = vunpack.c.h.b16 %v1133
    %v2520 = vunpack.c.l.b16 %v1134
    %v2521 = vunpack.c.h.b16 %v1134
    %v2522 = vunpack.c.l.b16 %v1135
    %v2523 = vunpack.c.h.b16 %v1135
    %v2524 = vunpack.c.l.b16 %v1136
    %v2525 = vunpack.c.h.b16 %v1136
    %v2526 = vunpack.c.l.b16 %v1137
    %v2527 = vunpack.c.h.b16 %v1137
    %v2528 = vunpack.c.l.b16 %v1138
    %v2529 = vunpack.c.h.b16 %v1138
    %v2530 = vunpack.c.l.b16 %v1139
    %v2531 = vunpack.c.h.b16 %v1139
    %v2532 = vunpack.c.l.b16 %v1140
    %v2533 = vunpack.c.h.b16 %v1140
    %v2534 = vunpack.c.l.b16 %v1141
    %v2535 = vunpack.c.h.b16 %v1141
    %v2536 = vunpack.c.l.b16 %v1142
    %v2537 = vunpack.c.h.b16 %v1142
    %v2538 = vunpack.c.l.b16 %v1143
    %v2539 = vunpack.c.h.b16 %v1143
    %v2540 = vunpack.c.l.b16 %v1144
    %v2541 = vunpack.c.h.b16 %v1144
    %v2542 = vunpack.c.l.b16 %v1145
    %v2543 = vunpack.c.h.b16 %v1145
    %v2544 = vunpack.c.l.b16 %v1146
    %v2545 = vunpack.c.h.b16 %v1146
    %v2546 = vunpack.c.l.b16 %v1147
    %v2547 = vunpack.c.h.b16 %v1147
    %v2548 = vunpack.c.l.b16 %v1148
    %v2549 = vunpack.c.h.b16 %v1148
    %v2550 = vunpack.c.l.b16 %v1149
    %v2551 = vunpack.c.h.b16 %v1149
    %v2552 = vunpack.c.l.b16 %v1150
    %v2553 = vunpack.c.h.b16 %v1150
    %v2554 = vunpack.c.l.b16 %v1151
    %v2555 = vunpack.c.h.b16 %v1151
    %v2556 = vunpack.c.l.b16 %v1152
    %v2557 = vunpack.c.h.b16 %v1152
    %v2558 = vunpack.c.l.b16 %v1153
    %v2559 = vunpack.c.h.b16 %v1153
    %v2560 = vunpack.c.l.b16 %v1154
    %v2561 = vunpack.c.h.b16 %v1154
    %v2562 = vunpack.c.l.b16 %v1155
    %v2563 = vunpack.c.h.b16 %v1155
    %v2564 = vunpack.c.l.b16 %v1156
    %v2565 = vunpack.c.h.b16 %v1156
    %v2566 = vunpack.c.l.b16 %v1157
    %v2567 = vunpack.c.h.b16 %v1157
    %v2568 = vunpack.c.l.b16 %v1158
    %v2569 = vunpack.c.h.b16 %v1158
    %v2570 = vunpack.c.l.b16 %v1159
    %v2571 = vunpack.c.h.b16 %v1159
    %v2572 = vunpack.c.l.b16 %v1160
    %v2573 = vunpack.c.h.b16 %v1160
    %v2574 = vunpack.c.l.b16 %v1161
    %v2575 = vunpack.c.h.b16 %v1161
    %v2576 = vunpack.c.l.b16 %v1162
    %v2577 = vunpack.c.h.b16 %v1162
    %v2578 = vunpack.c.l.b16 %v1163
    %v2579 = vunpack.c.h.b16 %v1163
    %v2580 = vunpack.c.l.b16 %v1164
    %v2581 = vunpack.c.h.b16 %v1164
    %v2582 = vunpack.c.l.b16 %v1165
    %v2583 = vunpack.c.h.b16 %v1165
    %v2584 = vunpack.c.l.b16 %v1166
    %v2585 = vunpack.c.h.b16 %v1166
    %v2586 = vunpack.c.l.b16 %v1167
    %v2587 = vunpack.c.h.b16 %v1167
    %v2588 = vunpack.c.l.b16 %v1168
    %v2589 = vunpack.c.h.b16 %v1168
    %v2590 = vunpack.c.l.b16 %v1169
    %v2591 = vunpack.c.h.b16 %v1169
    %v2592 = vunpack.c.l.b16 %v1170
    %v2593 = vunpack.c.h.b16 %v1170
    %v2594 = vunpack.c.l.b16 %v1171
    %v2595 = vunpack.c.h.b16 %v1171
    %v2596 = vunpack.c.l.b16 %v1172
    %v2597 = vunpack.c.h.b16 %v1172
    %v2598 = vunpack.c.l.b16 %v1173
    %v2599 = vunpack.c.h.b16 %v1173
    %v2600 = vunpack.c.l.b16 %v1174
    %v2601 = vunpack.c.h.b16 %v1174
    %v2602 = vunpack.c.l.b16 %v1175
    %v2603 = vunpack.c.h.b16 %v1175
    %v2604 = vunpack.c.l.b16 %v1176
    %v2605 = vunpack.c.h.b16 %v1176
    %v2606 = vunpack.c.l.b16 %v1177
    %v2607 = vunpack.c.h.b16 %v1177
    %v2608 = vunpack.c.l.b16 %v1178
    %v2609 = vunpack.c.h.b16 %v1178
    %v2610 = vunpack.c.l.b16 %v1179
    %v2611 = vunpack.c.h.b16 %v1179
    %v2612 = vunpack.c.l.b16 %v1180
    %v2613 = vunpack.c.h.b16 %v1180
    %v2614 = vunpack.c.l.b16 %v1181
    %v2615 = vunpack.c.h.b16 %v1181
    %v2616 = vunpack.c.l.b16 %v1182
    %v2617 = vunpack.c.h.b16 %v1182
    %v2618 = vunpack.c.l.b16 %v1183
    %v2619 = vunpack.c.h.b16 %v1183
    %v2620 = vunpack.c.l.b16 %v1184
    %v2621 = vunpack.c.h.b16 %v1184
    %v2622 = vunpack.c.l.b16 %v1185
    %v2623 = vunpack.c.h.b16 %v1185
    %v2624 = vunpack.c.l.b16 %v1186
    %v2625 = vunpack.c.h.b16 %v1186
    %v2626 = vunpack.c.l.b16 %v1187
    %v2627 = vunpack.c.h.b16 %v1187
    %v2628 = vunpack.c.l.b16 %v1188
    %v2629 = vunpack.c.h.b16 %v1188
    %v2630 = vunpack.c.l.b16 %v1189
    %v2631 = vunpack.c.h.b16 %v1189
    %v2632 = vunpack.c.l.b16 %v1190
    %v2633 = vunpack.c.h.b16 %v1190
    %v2634 = vunpack.c.l.b16 %v1191
    %v2635 = vunpack.c.h.b16 %v1191
    %v2636 = vunpack.c.l.b16 %v1192
    %v2637 = vunpack.c.h.b16 %v1192
    %v2638 = vunpack.c.l.b16 %v1193
    %v2639 = vunpack.c.h.b16 %v1193
    %v2640 = vunpack.c.l.b16 %v1194
    %v2641 = vunpack.c.h.b16 %v1194
    %v2642 = vunpack.c.l.b16 %v1195
    %v2643 = vunpack.c.h.b16 %v1195
    %v2644 = vunpack.c.l.b16 %v1196
    %v2645 = vunpack.c.h.b16 %v1196
    %v2646 = vunpack.c.l.b16 %v1197
    %v2647 = vunpack.c.h.b16 %v1197
    %v2648 = vunpack.c.l.b16 %v1198
    %v2649 = vunpack.c.h.b16 %v1198
    %v2650 = vunpack.c.l.b16 %v1199
    %v2651 = vunpack.c.h.b16 %v1199
    %v2652 = vunpack.c.l.b16 %v1200
    %v2653 = vunpack.c.h.b16 %v1200
    %v2654 = vunpack.c.l.b16 %v1201
    %v2655 = vunpack.c.h.b16 %v1201
    %v2656 = vunpack.c.l.b16 %v1202
    %v2657 = vunpack.c.h.b16 %v1202
    %v2658 = vunpack.c.l.b16 %v1203
    %v2659 = vunpack.c.h.b16 %v1203
    %v2660 = vunpack.c.l.b16 %v1204
    %v2661 = vunpack.c.h.b16 %v1204
    %v2662 = vunpack.c.l.b16 %v1205
    %v2663 = vunpack.c.h.b16 %v1205
    %v2664 = vunpack.c.l.b16 %v1206
    %v2665 = vunpack.c.h.b16 %v1206
    %v2666 = vunpack.c.l.b16 %v1207
    %v2667 = vunpack.c.h.b16 %v1207
    %v2668 = vunpack.c.l.b16 %v1208
    %v2669 = vunpack.c.h.b16 %v1208
    %v2670 = vunpack.c.l.b16 %v1209
    %v2671 = vunpack.c.h.b16 %v1209
    %v2672 = vunpack.c.l.b16 %v1210
    %v2673 = vunpack.c.h.b16 %v1210
    %v2674 = vunpack.c.l.b16 %v1211
    %v2675 = vunpack.c.h.b16 %v1211
    %v2676 = vunpack.c.l.b16 %v1212
    %v2677 = vunpack.c.h.b16 %v1212
    %v2678 = vunpack.c.l.b16 %v1213
    %v2679 = vunpack.c.h.b16 %v1213
    %v2680 = vunpack.c.l.b16 %v1214
    %v2681 = vunpack.c.h.b16 %v1214
    %v2682 = vunpack.c.l.b16 %v1215
    %v2683 = vunpack.c.h.b16 %v1215
    %v2684 = vunpack.c.l.b16 %v1216
    %v2685 = vunpack.c.h.b16 %v1216
    %v2686 = vunpack.c.l.b16 %v1217
    %v2687 = vunpack.c.h.b16 %v1217
    %v2688 = vunpack.c.l.b16 %v1218
    %v2689 = vunpack.c.h.b16 %v1218
    %v2690 = vunpack.c.l.b16 %v1219
    %v2691 = vunpack.c.h.b16 %v1219
    %v2692 = vunpack.c.l.b16 %v1220
    %v2693 = vunpack.c.h.b16 %v1220
    %v2694 = vunpack.c.l.b16 %v1221
    %v2695 = vunpack.c.h.b16 %v1221
    %v2696 = vunpack.c.l.b16 %v1222
    %v2697 = vunpack.c.h.b16 %v1222
    %v2698 = vunpack.c.l.b16 %v1223
    %v2699 = vunpack.c.h.b16 %v1223
    %v2700 = vunpack.c.l.b16 %v1224
    %v2701 = vunpack.c.h.b16 %v1224
    %v2702 = vunpack.c.l.b16 %v1225
    %v2703 = vunpack.c.h.b16 %v1225
    %v2704 = vunpack.c.l.b16 %v1226
    %v2705 = vunpack.c.h.b16 %v1226
    %v2706 = vunpack.c.l.b16 %v1227
    %v2707 = vunpack.c.h.b16 %v1227
    %v2708 = vunpack.c.l.b16 %v1228
    %v2709 = vunpack.c.h.b16 %v1228
    %v2710 = vunpack.c.l.b16 %v1229
    %v2711 = vunpack.c.h.b16 %v1229
    %v2712 = vunpack.c.l.b16 %v1230
    %v2713 = vunpack.c.h.b16 %v1230
    %v2714 = vunpack.c.l.b16 %v1231
    %v2715 = vunpack.c.h.b16 %v1231
    %v2716 = vunpack.c.l.b16 %v1232
    %v2717 = vunpack.c.h.b16 %v1232
    %v2718 = vunpack.c.l.b16 %v1233
    %v2719 = vunpack.c.h.b16 %v1233
    %v2720 = vunpack.c.l.b16 %v1234
    %v2721 = vunpack.c.h.b16 %v1234
    %v2722 = vunpack.c.l.b16 %v1235
    %v2723 = vunpack.c.h.b16 %v1235
    %v2724 = vunpack.c.l.b16 %v1236
    %v2725 = vunpack.c.h.b16 %v1236
    %v2726 = vunpack.c.l.b16 %v1237
    %v2727 = vunpack.c.h.b16 %v1237
    %v2728 = vunpack.c.l.b16 %v1238
    %v2729 = vunpack.c.h.b16 %v1238
    %v2730 = vunpack.c.l.b16 %v1239
    %v2731 = vunpack.c.h.b16 %v1239
    %v2732 = vunpack.c.l.b16 %v1240
    %v2733 = vunpack.c.h.b16 %v1240
    %v2734 = vunpack.c.l.b16 %v1241
    %v2735 = vunpack.c.h.b16 %v1241
    %v2736 = vunpack.c.l.b16 %v1242
    %v2737 = vunpack.c.h.b16 %v1242
    %v2738 = vunpack.c.l.b16 %v1243
    %v2739 = vunpack.c.h.b16 %v1243
    %v2740 = vunpack.c.l.b16 %v1244
    %v2741 = vunpack.c.h.b16 %v1244
    %v2742 = vunpack.c.l.b16 %v1245
    %v2743 = vunpack.c.h.b16 %v1245
    %v2744 = vunpack.c.l.b16 %v1246
    %v2745 = vunpack.c.h.b16 %v1246
    %v2746 = vunpack.c.l.b16 %v1247
    %v2747 = vunpack.c.h.b16 %v1247
    %v2748 = vunpack.c.l.b16 %v1248
    %v2749 = vunpack.c.h.b16 %v1248
    %v2750 = vunpack.c.l.b16 %v1249
    %v2751 = vunpack.c.h.b16 %v1249
    %v2752 = vunpack.c.l.b16 %v1250
    %v2753 = vunpack.c.h.b16 %v1250
    %v2754 = vunpack.c.l.b16 %v1251
    %v2755 = vunpack.c.h.b16 %v1251
    %v2756 = vunpack.c.l.b16 %v1252
    %v2757 = vunpack.c.h.b16 %v1252
    %v2758 = vunpack.c.l.b16 %v1253
    %v2759 = vunpack.c.h.b16 %v1253
    %v2760 = vunpack.c.l.b16 %v1254
    %v2761 = vunpack.c.h.b16 %v1254
    %v2762 = vunpack.c.l.b16 %v1255
    %v2763 = vunpack.c.h.b16 %v1255
    %v2764 = vunpack.c.l.b16 %v1256
    %v2765 = vunpack.c.h.b16 %v1256
    %v2766 = vunpack.c.l.b16 %v1257
    %v2767 = vunpack.c.h.b16 %v1257
    %v2768 = vunpack.c.l.b16 %v1258
    %v2769 = vunpack.c.h.b16 %v1258
    %v2770 = vunpack.c.l.b16 %v1259
    %v2771 = vunpack.c.h.b16 %v1259
    %v2772 = vunpack.c.l.b16 %v1260
    %v2773 = vunpack.c.h.b16 %v1260
    %v2774 = vunpack.c.l.b16 %v1261
    %v2775 = vunpack.c.h.b16 %v1261
    %v2776 = vunpack.c.l.b16 %v1262
    %v2777 = vunpack.c.h.b16 %v1262
    %v2778 = vunpack.c.l.b16 %v1263
    %v2779 = vunpack.c.h.b16 %v1263
    %v2780 = vunpack.c.l.b16 %v1264
    %v2781 = vunpack.c.h.b16 %v1264
    %v2782 = vunpack.c.l.b16 %v1265
    %v2783 = vunpack.c.h.b16 %v1265
    %v2784 = vunpack.c.l.b16 %v1266
    %v2785 = vunpack.c.h.b16 %v1266
    %v2786 = vunpack.c.l.b16 %v1267
    %v2787 = vunpack.c.h.b16 %v1267
    %v2788 = vunpack.c.l.b16 %v1268
    %v2789 = vunpack.c.h.b16 %v1268
    %v2790 = vunpack.c.l.b16 %v1269
    %v2791 = vunpack.c.h.b16 %v1269
    %v2792 = vunpack.c.l.b16 %v1270
    %v2793 = vunpack.c.h.b16 %v1270
    %v2794 = vunpack.c.l.b16 %v1271
    %v2795 = vunpack.c.h.b16 %v1271
    %v2796 = vunpack.c.l.b16 %v1272
    %v2797 = vunpack.c.h.b16 %v1272
    %v2798 = vunpack.c.l.b16 %v1273
    %v2799 = vunpack.c.h.b16 %v1273
    %v2800 = vunpack.c.l.b16 %v1274
    %v2801 = vunpack.c.h.b16 %v1274
    %v2802 = vunpack.c.l.b16 %v1275
    %v2803 = vunpack.c.h.b16 %v1275
    %v2804 = vunpack.c.l.b16 %v1276
    %v2805 = vunpack.c.h.b16 %v1276
    %v2806 = vunpack.c.l.b16 %v1277
    %v2807 = vunpack.c.h.b16 %v1277
    %v2808 = vunpack.c.l.b16 %v1278
    %v2809 = vunpack.c.h.b16 %v1278
    %v2810 = vunpack.c.l.b16 %v1279
    %v2811 = vunpack.c.h.b16 %v1279
    %v2812 = vunpack.c.l.b16 %v1280
    %v2813 = vunpack.c.h.b16 %v1280
    %v2814 = vunpack.c.l.b16 %v1281
    %v2815 = vunpack.c.h.b16 %v1281
    %v2816 = vunpack.c.l.b16 %v1282
    %v2817 = vunpack.c.h.b16 %v1282
    %v2818 = vunpack.c.l.b16 %v1283
    %v2819 = vunpack.c.h.b16 %v1283
    %v2820 = vunpack.c.l.b16 %v1284
    %v2821 = vunpack.c.h.b16 %v1284
    %v2822 = vunpack.c.l.b16 %v1285
    %v2823 = vunpack.c.h.b16 %v1285
    %v2824 = vunpack.c.l.b16 %v1286
    %v2825 = vunpack.c.h.b16 %v1286
    %v2826 = vunpack.c.l.b16 %v1287
    %v2827 = vunpack.c.h.b16 %v1287
    %v2828 = vunpack.c.l.b16 %v1288
    %v2829 = vunpack.c.h.b16 %v1288
    %v2830 = vunpack.c.l.b16 %v1289
    %v2831 = vunpack.c.h.b16 %v1289
    %v2832 = vunpack.c.l.b16 %v1290
    %v2833 = vunpack.c.h.b16 %v1290
    %v2834 = vunpack.c.l.b16 %v1291
    %v2835 = vunpack.c.h.b16 %v1291
    %v2836 = vunpack.c.l.b16 %v1292
    %v2837 = vunpack.c.h.b16 %v1292
    %v2838 = vunpack.c.l.b16 %v1293
    %v2839 = vunpack.c.h.b16 %v1293
    %v2840 = vunpack.c.l.b16 %v1294
    %v2841 = vunpack.c.h.b16 %v1294
    %v2842 = vunpack.c.l.b16 %v1295
    %v2843 = vunpack.c.h.b16 %v1295
    %v2844 = vunpack.c.l.b16 %v1296
    %v2845 = vunpack.c.h.b16 %v1296
    %v2846 = vunpack.c.l.b16 %v1297
    %v2847 = vunpack.c.h.b16 %v1297
    %v2848 = vunpack.c.l.b16 %v1298
    %v2849 = vunpack.c.h.b16 %v1298
    %v2850 = vunpack.c.l.b16 %v1299
    %v2851 = vunpack.c.h.b16 %v1299
    %v2852 = vunpack.c.l.b16 %v1300
    %v2853 = vunpack.c.h.b16 %v1300
    %v2854 = vunpack.c.l.b16 %v1301
    %v2855 = vunpack.c.h.b16 %v1301
    %v2856 = vunpack.c.l.b16 %v1302
    %v2857 = vunpack.c.h.b16 %v1302
    %v2858 = vunpack.c.l.b16 %v1303
    %v2859 = vunpack.c.h.b16 %v1303
    %v2860 = vunpack.c.l.b16 %v1304
    %v2861 = vunpack.c.h.b16 %v1304
    %v2862 = vunpack.c.l.b16 %v1305
    %v2863 = vunpack.c.h.b16 %v1305
    %v2864 = vunpack.c.l.b16 %v1306
    %v2865 = vunpack.c.h.b16 %v1306
    %v2866 = vunpack.c.l.b16 %v1307
    %v2867 = vunpack.c.h.b16 %v1307
    %v2868 = vunpack.c.l.b16 %v1308
    %v2869 = vunpack.c.h.b16 %v1308
    %v2870 = vunpack.c.l.b16 %v1309
    %v2871 = vunpack.c.h.b16 %v1309
    %v2872 = vunpack.c.l.b16 %v1310
    %v2873 = vunpack.c.h.b16 %v1310
    %v2874 = vunpack.c.l.b16 %v1311
    %v2875 = vunpack.c.h.b16 %v1311
    %v2876 = vunpack.c.l.b16 %v1312
    %v2877 = vunpack.c.h.b16 %v1312
    %v2878 = vunpack.c.l.b16 %v1313
    %v2879 = vunpack.c.h.b16 %v1313
    %v2880 = vunpack.c.l.b16 %v1314
    %v2881 = vunpack.c.h.b16 %v1314
    %v2882 = vunpack.c.l.b16 %v1315
    %v2883 = vunpack.c.h.b16 %v1315
    %v2884 = vunpack.c.l.b16 %v1316
    %v2885 = vunpack.c.h.b16 %v1316
    %v2886 = vunpack.c.l.b16 %v1317
    %v2887 = vunpack.c.h.b16 %v1317
    %v2888 = vunpack.c.l.b16 %v1318
    %v2889 = vunpack.c.h.b16 %v1318
    %v2890 = vunpack.c.l.b16 %v1319
    %v2891 = vunpack.c.h.b16 %v1319
    %v2892 = vunpack.c.l.b16 %v1320
    %v2893 = vunpack.c.h.b16 %v1320
    %v2894 = vunpack.c.l.b16 %v1321
    %v2895 = vunpack.c.h.b16 %v1321
    %v2896 = vunpack.c.l.b16 %v1322
    %v2897 = vunpack.c.h.b16 %v1322
    %v2898 = vunpack.c.l.b16 %v1323
    %v2899 = vunpack.c.h.b16 %v1323
    %v2900 = vunpack.c.l.b16 %v1324
    %v2901 = vunpack.c.h.b16 %v1324
    %v2902 = vunpack.c.l.b16 %v1325
    %v2903 = vunpack.c.h.b16 %v1325
    %v2904 = vunpack.c.l.b16 %v1326
    %v2905 = vunpack.c.h.b16 %v1326
    %v2906 = vunpack.c.l.b16 %v1327
    %v2907 = vunpack.c.h.b16 %v1327
    %v2908 = vunpack.c.l.b16 %v1328
    %v2909 = vunpack.c.h.b16 %v1328
    %v2910 = vunpack.c.l.b16 %v1329
    %v2911 = vunpack.c.h.b16 %v1329
    %v2912 = vunpack.c.l.b16 %v1330
    %v2913 = vunpack.c.h.b16 %v1330
    %v2914 = vunpack.c.l.b16 %v1331
    %v2915 = vunpack.c.h.b16 %v1331
    %v2916 = vunpack.c.l.b16 %v1332
    %v2917 = vunpack.c.h.b16 %v1332
    %v2918 = vunpack.c.l.b16 %v1333
    %v2919 = vunpack.c.h.b16 %v1333
    %v2920 = vunpack.c.l.b16 %v1334
    %v2921 = vunpack.c.h.b16 %v1334
    %v2922 = vunpack.c.l.b16 %v1335
    %v2923 = vunpack.c.h.b16 %v1335
    %v2924 = vunpack.c.l.b16 %v1336
    %v2925 = vunpack.c.h.b16 %v1336
    %v2926 = vunpack.c.l.b16 %v1337
    %v2927 = vunpack.c.h.b16 %v1337
    %v2928 = vunpack.c.l.b16 %v1338
    %v2929 = vunpack.c.h.b16 %v1338
    %v2930 = vunpack.c.l.b16 %v1339
    %v2931 = vunpack.c.h.b16 %v1339
    %v2932 = vunpack.c.l.b16 %v1340
    %v2933 = vunpack.c.h.b16 %v1340
    %v2934 = vunpack.c.l.b16 %v1341
    %v2935 = vunpack.c.h.b16 %v1341
    %v2936 = vunpack.c.l.b16 %v1342
    %v2937 = vunpack.c.h.b16 %v1342
    %v2938 = vunpack.c.l.b16 %v1343
    %v2939 = vunpack.c.h.b16 %v1343
    %v2940 = vunpack.c.l.b16 %v1344
    %v2941 = vunpack.c.h.b16 %v1344
    %v2942 = vunpack.c.l.b16 %v1345
    %v2943 = vunpack.c.h.b16 %v1345
    %v2944 = vunpack.c.l.b16 %v1346
    %v2945 = vunpack.c.h.b16 %v1346
    %v2946 = vunpack.c.l.b16 %v1347
    %v2947 = vunpack.c.h.b16 %v1347
    %v2948 = vunpack.c.l.b16 %v1348
    %v2949 = vunpack.c.h.b16 %v1348
    %v2950 = vunpack.c.l.b16 %v1349
    %v2951 = vunpack.c.h.b16 %v1349
    %v2952 = vunpack.c.l.b16 %v1350
    %v2953 = vunpack.c.h.b16 %v1350
    %v2954 = vunpack.c.l.b16 %v1351
    %v2955 = vunpack.c.h.b16 %v1351
    %v2956 = vunpack.c.l.b16 %v1352
    %v2957 = vunpack.c.h.b16 %v1352
    %v2958 = vunpack.c.l.b16 %v1353
    %v2959 = vunpack.c.h.b16 %v1353
    %v2960 = vunpack.c.l.b16 %v1354
    %v2961 = vunpack.c.h.b16 %v1354
    %v2962 = vunpack.c.l.b16 %v1355
    %v2963 = vunpack.c.h.b16 %v1355
    %v2964 = vunpack.c.l.b16 %v1356
    %v2965 = vunpack.c.h.b16 %v1356
    %v2966 = vunpack.c.l.b16 %v1357
    %v2967 = vunpack.c.h.b16 %v1357
    %v2968 = vunpack.c.l.b16 %v1358
    %v2969 = vunpack.c.h.b16 %v1358
    %v2970 = vunpack.c.l.b16 %v1359
    %v2971 = vunpack.c.h.b16 %v1359
    %v2972 = vunpack.c.l.b16 %v1360
    %v2973 = vunpack.c.h.b16 %v1360
    %v2974 = vunpack.c.l.b16 %v1361
    %v2975 = vunpack.c.h.b16 %v1361
    %v2976 = vunpack.c.l.b16 %v1362
    %v2977 = vunpack.c.h.b16 %v1362
    %v2978 = vunpack.c.l.b16 %v1363
    %v2979 = vunpack.c.h.b16 %v1363
    %v2980 = vunpack.c.l.b16 %v1364
    %v2981 = vunpack.c.h.b16 %v1364
    %v2982 = vunpack.c.l.b16 %v1365
    %v2983 = vunpack.c.h.b16 %v1365
    %v2984 = vunpack.c.l.b16 %v1366
    %v2985 = vunpack.c.h.b16 %v1366
    %v2986 = vunpack.c.l.b16 %v1367
    %v2987 = vunpack.c.h.b16 %v1367
    %v2988 = vunpack.c.l.b16 %v1368
    %v2989 = vunpack.c.h.b16 %v1368
    %v2990 = vunpack.c.l.b16 %v1369
    %v2991 = vunpack.c.h.b16 %v1369
    %v2992 = vunpack.c.l.b16 %v1370
    %v2993 = vunpack.c.h.b16 %v1370
    %v2994 = vunpack.c.l.b16 %v1371
    %v2995 = vunpack.c.h.b16 %v1371
    %v2996 = vunpack.c.l.b16 %v1372
    %v2997 = vunpack.c.h.b16 %v1372
    %v2998 = vunpack.c.l.b16 %v1373
    %v2999 = vunpack.c.h.b16 %v1373
    %v3000 = vunpack.c.l.b16 %v1374
    %v3001 = vunpack.c.h.b16 %v1374
    %v3002 = vunpack.c.l.b16 %v1375
    %v3003 = vunpack.c.h.b16 %v1375
    %v3004 = vunpack.c.l.b16 %v1376
    %v3005 = vunpack.c.h.b16 %v1376
    %v3006 = vunpack.c.l.b16 %v1377
    %v3007 = vunpack.c.h.b16 %v1377
    %v3008 = vunpack.c.l.b16 %v1378
    %v3009 = vunpack.c.h.b16 %v1378
    %v3010 = vunpack.c.l.b16 %v1379
    %v3011 = vunpack.c.h.b16 %v1379
    %v3012 = vunpack.c.l.b16 %v1380
    %v3013 = vunpack.c.h.b16 %v1380
    %v3014 = vunpack.c.l.b16 %v1381
    %v3015 = vunpack.c.h.b16 %v1381
    %v3016 = vunpack.c.l.b16 %v1382
    %v3017 = vunpack.c.h.b16 %v1382
    %v3018 = vunpack.c.l.b16 %v1383
    %v3019 = vunpack.c.h.b16 %v1383
    %v3020 = vunpack.c.l.b16 %v1384
    %v3021 = vunpack.c.h.b16 %v1384
    %v3022 = vunpack.c.l.b16 %v1385
    %v3023 = vunpack.c.h.b16 %v1385
    %v3024 = vunpack.c.l.b16 %v1386
    %v3025 = vunpack.c.h.b16 %v1386
    %v3026 = vunpack.c.l.b16 %v1387
    %v3027 = vunpack.c.h.b16 %v1387
    %v3028 = vunpack.c.l.b16 %v1388
    %v3029 = vunpack.c.h.b16 %v1388
    %v3030 = vunpack.c.l.b16 %v1389
    %v3031 = vunpack.c.h.b16 %v1389
    %v3032 = vunpack.c.l.b16 %v1390
    %v3033 = vunpack.c.h.b16 %v1390
    %v3034 = vunpack.c.l.b16 %v1391
    %v3035 = vunpack.c.h.b16 %v1391
    %v3036 = vunpack.c.l.b16 %v1392
    %v3037 = vunpack.c.h.b16 %v1392
    %v3038 = vunpack.c.l.b16 %v1393
    %v3039 = vunpack.c.h.b16 %v1393
    %v3040 = vunpack.c.l.b16 %v1394
    %v3041 = vunpack.c.h.b16 %v1394
    %v3042 = vunpack.c.l.b16 %v1395
    %v3043 = vunpack.c.h.b16 %v1395
    %v3044 = vunpack.c.l.b16 %v1396
    %v3045 = vunpack.c.h.b16 %v1396
    %v3046 = vunpack.c.l.b16 %v1397
    %v3047 = vunpack.c.h.b16 %v1397
    %v3048 = vunpack.c.l.b16 %v1398
    %v3049 = vunpack.c.h.b16 %v1398
    %v3050 = vunpack.c.l.b16 %v1399
    %v3051 = vunpack.c.h.b16 %v1399
    %v3052 = vunpack.c.l.b16 %v1400
    %v3053 = vunpack.c.h.b16 %v1400
    %v3054 = vunpack.c.l.b16 %v1401
    %v3055 = vunpack.c.h.b16 %v1401
    %v3056 = vunpack.c.l.b16 %v1402
    %v3057 = vunpack.c.h.b16 %v1402
    %v3058 = vunpack.c.l.b16 %v1403
    %v3059 = vunpack.c.h.b16 %v1403
    %v3060 = vunpack.c.l.b16 %v1404
    %v3061 = vunpack.c.h.b16 %v1404
    %v3062 = vunpack.c.l.b16 %v1405
    %v3063 = vunpack.c.h.b16 %v1405
    %v3064 = vunpack.c.l.b16 %v1406
    %v3065 = vunpack.c.h.b16 %v1406
    %v3066 = vunpack.c.l.b16 %v1407
    %v3067 = vunpack.c.h.b16 %v1407
    %v3068 = vunpack.c.l.b16 %v1408
    %v3069 = vunpack.c.h.b16 %v1408
    %v3070 = vunpack.c.l.b16 %v1409
    %v3071 = vunpack.c.h.b16 %v1409
    %v3072 = vunpack.c.l.b16 %v1410
    %v3073 = vunpack.c.h.b16 %v1410
    %v3074 = vunpack.c.l.b16 %v1411
    %v3075 = vunpack.c.h.b16 %v1411
    %v3076 = vunpack.c.l.b16 %v1412
    %v3077 = vunpack.c.h.b16 %v1412
    %v3078 = vunpack.c.l.b16 %v1413
    %v3079 = vunpack.c.h.b16 %v1413
    %v3080 = vunpack.c.l.b16 %v1414
    %v3081 = vunpack.c.h.b16 %v1414
    %v3082 = vunpack.c.l.b16 %v1415
    %v3083 = vunpack.c.h.b16 %v1415
    %v3084 = vunpack.c.l.b16 %v1416
    %v3085 = vunpack.c.h.b16 %v1416
    %v3086 = vunpack.c.l.b16 %v1417
    %v3087 = vunpack.c.h.b16 %v1417
    %v3088 = vunpack.c.l.b16 %v1418
    %v3089 = vunpack.c.h.b16 %v1418
    %v3090 = vunpack.c.l.b16 %v1419
    %v3091 = vunpack.c.h.b16 %v1419
    %v3092 = vunpack.c.l.b16 %v1420
    %v3093 = vunpack.c.h.b16 %v1420
    %v3094 = vunpack.c.l.b16 %v1421
    %v3095 = vunpack.c.h.b16 %v1421
    %v3096 = vunpack.c.l.b16 %v1422
    %v3097 = vunpack.c.h.b16 %v1422
    %v3098 = vunpack.c.l.b16 %v1423
    %v3099 = vunpack.c.h.b16 %v1423
    %v3100 = vunpack.c.l.b16 %v1424
    %v3101 = vunpack.c.h.b16 %v1424
    %v3102 = vunpack.c.l.b16 %v1425
    %v3103 = vunpack.c.h.b16 %v1425
    %v3104 = vunpack.c.l.b16 %v1426
    %v3105 = vunpack.c.h.b16 %v1426
    %v3106 = vunpack.c.l.b16 %v1427
    %v3107 = vunpack.c.h.b16 %v1427
    %v3108 = vunpack.c.l.b16 %v1428
    %v3109 = vunpack.c.h.b16 %v1428
    %v3110 = vunpack.c.l.b16 %v1429
    %v3111 = vunpack.c.h.b16 %v1429
    %v3112 = vunpack.c.l.b16 %v1430
    %v3113 = vunpack.c.h.b16 %v1430
    %v3114 = vunpack.c.l.b16 %v1431
    %v3115 = vunpack.c.h.b16 %v1431
    %v3116 = vunpack.c.l.b16 %v1432
    %v3117 = vunpack.c.h.b16 %v1432
    %v3118 = vunpack.c.l.b16 %v1433
    %v3119 = vunpack.c.h.b16 %v1433
    %v3120 = vunpack.c.l.b16 %v1434
    %v3121 = vunpack.c.h.b16 %v1434
    %v3122 = vunpack.c.l.b16 %v1435
    %v3123 = vunpack.c.h.b16 %v1435
    %v3124 = vunpack.c.l.b16 %v1436
    %v3125 = vunpack.c.h.b16 %v1436
    %v3126 = vunpack.c.l.b16 %v1437
    %v3127 = vunpack.c.h.b16 %v1437
    %v3128 = vunpack.c.l.b16 %v1438
    %v3129 = vunpack.c.h.b16 %v1438
    %v3130 = vunpack.c.l.b16 %v1439
    %v3131 = vunpack.c.h.b16 %v1439
    %v3132 = vunpack.c.l.b16 %v1440
    %v3133 = vunpack.c.h.b16 %v1440
    %v3134 = vunpack.c.l.b16 %v1441
    %v3135 = vunpack.c.h.b16 %v1441
    %v3136 = vunpack.c.l.b16 %v1442
    %v3137 = vunpack.c.h.b16 %v1442
    %v3138 = vunpack.c.l.b16 %v1443
    %v3139 = vunpack.c.h.b16 %v1443
    %v3140 = vunpack.c.l.b16 %v1444
    %v3141 = vunpack.c.h.b16 %v1444
    %v3142 = vunpack.c.l.b16 %v1445
    %v3143 = vunpack.c.h.b16 %v1445
    %v3144 = vunpack.c.l.b16 %v1446
    %v3145 = vunpack.c.h.b16 %v1446
    %v3146 = vunpack.c.l.b16 %v1447
    %v3147 = vunpack.c.h.b16 %v1447
    %v3148 = vunpack.c.l.b16 %v1448
    %v3149 = vunpack.c.h.b16 %v1448
    %v3150 = vunpack.c.l.b16 %v1449
    %v3151 = vunpack.c.h.b16 %v1449
    %v3152 = vunpack.c.l.b16 %v1450
    %v3153 = vunpack.c.h.b16 %v1450
    %v3154 = vunpack.c.l.b16 %v1451
    %v3155 = vunpack.c.h.b16 %v1451
    %v3156 = vunpack.c.l.b16 %v1452
    %v3157 = vunpack.c.h.b16 %v1452
    %v3158 = vunpack.c.l.b16 %v1453
    %v3159 = vunpack.c.h.b16 %v1453
    %v3160 = vunpack.c.l.b16 %v1454
    %v3161 = vunpack.c.h.b16 %v1454
    %v3162 = vunpack.c.l.b16 %v1455
    %v3163 = vunpack.c.h.b16 %v1455
    %v3164 = vunpack.c.l.b16 %v1456
    %v3165 = vunpack.c.h.b16 %v1456
    %v3166 = vunpack.c.l.b16 %v1457
    %v3167 = vunpack.c.h.b16 %v1457
    %v3168 = vunpack.c.l.b16 %v1458
    %v3169 = vunpack.c.h.b16 %v1458
    %v3170 = vunpack.c.l.b16 %v1459
    %v3171 = vunpack.c.h.b16 %v1459
    %v3172 = vunpack.c.l.b16 %v1460
    %v3173 = vunpack.c.h.b16 %v1460
    %v3174 = vunpack.c.l.b16 %v1461
    %v3175 = vunpack.c.h.b16 %v1461
    %v3176 = vpack.c.b16 %v2184, %v2152
    %v3177 = vpack.c.b16 %v2185, %v2153
    %v3178 = vpack.c.b16 %v2186, %v2154
    %v3179 = vpack.c.b16 %v2187, %v2155
    %v3180 = vpack.c.b16 %v2188, %v2156
    %v3181 = vpack.c.b16 %v2189, %v2157
    %v3182 = vpack.c.b16 %v2190, %v2158
    %v3183 = vpack.c.b16 %v2191, %v2159
    %v3184 = vpack.c.b16 %v2192, %v2160
    %v3185 = vpack.c.b16 %v2193, %v2161
    %v3186 = vpack.c.b16 %v2194, %v2162
    %v3187 = vpack.c.b16 %v2195, %v2163
    %v3188 = vpack.c.b16 %v2196, %v2164
    %v3189 = vpack.c.b16 %v2197, %v2165
    %v3190 = vpack.c.b16 %v2198, %v2166
    %v3191 = vpack.c.b16 %v2199, %v2167
    %v3192 = vpack.c.b16 %v2200, %v2168
    %v3193 = vpack.c.b16 %v2201, %v2169
    %v3194 = vpack.c.b16 %v2202, %v2170
    %v3195 = vpack.c.b16 %v2203, %v2171
    %v3196 = vpack.c.b16 %v2204, %v2172
    %v3197 = vpack.c.b16 %v2205, %v2173
    %v3198 = vpack.c.b16 %v2206, %v2174
    %v3199 = vpack.c.b16 %v2207, %v2175
    %v3200 = vpack.c.b16 %v2208, %v2176
    %v3201 = vpack.c.b16 %v2209, %v2177
    %v3202 = vpack.c.b16 %v2210, %v2178
    %v3203 = vpack.c.b16 %v2211, %v2179
    %v3204 = vpack.c.b16 %v2212, %v2180
    %v3205 = vpack.c.b16 %v2213, %v2181
    %v3206 = vpack.c.b16 %v2214, %v2182
    %v3207 = vpack.c.b16 %v2215, %v2183
    %v3208 = vpack.c.b16 %v2248, %v2216
    %v3209 = vpack.c.b16 %v2249, %v2217
    %v3210 = vpack.c.b16 %v2250, %v2218
    %v3211 = vpack.c.b16 %v2251, %v2219
    %v3212 = vpack.c.b16 %v2252, %v2220
    %v3213 = vpack.c.b16 %v2253, %v2221
    %v3214 = vpack.c.b16 %v2254, %v2222
    %v3215 = vpack.c.b16 %v2255, %v2223
    %v3216 = vpack.c.b16 %v2256, %v2224
    %v3217 = vpack.c.b16 %v2257, %v2225
    %v3218 = vpack.c.b16 %v2258, %v2226
    %v3219 = vpack.c.b16 %v2259, %v2227
    %v3220 = vpack.c.b16 %v2260, %v2228
    %v3221 = vpack.c.b16 %v2261, %v2229
    %v3222 = vpack.c.b16 %v2262, %v2230
    %v3223 = vpack.c.b16 %v2263, %v2231
    %v3224 = vpack.c.b16 %v2264, %v2232
    %v3225 = vpack.c.b16 %v2265, %v2233
    %v3226 = vpack.c.b16 %v2266, %v2234
    %v3227 = vpack.c.b16 %v2267, %v2235
    %v3228 = vpack.c.b16 %v2268, %v2236
    %v3229 = vpack.c.b16 %v2269, %v2237
    %v3230 = vpack.c.b16 %v2270, %v2238
    %v3231 = vpack.c.b16 %v2271, %v2239
    %v3232 = vpack.c.b16 %v2272, %v2240
    %v3233 = vpack.c.b16 %v2273, %v2241
    %v3234 = vpack.c.b16 %v2274, %v2242
    %v3235 = vpack.c.b16 %v2275, %v2243
    %v3236 = vpack.c.b16 %v2276, %v2244
    %v3237 = vpack.c.b16 %v2277, %v2245
    %v3238 = vpack.c.b16 %v2278, %v2246
    %v3239 = vpack.c.b16 %v2279, %v2247
    %v3240 = vpack.c.b16 %v2312, %v2280
    %v3241 = vpack.c.b16 %v2313, %v2281
    %v3242 = vpack.c.b16 %v2314, %v2282
    %v3243 = vpack.c.b16 %v2315, %v2283
    %v3244 = vpack.c.b16 %v2316, %v2284
    %v3245 = vpack.c.b16 %v2317, %v2285
    %v3246 = vpack.c.b16 %v2318, %v2286
    %v3247 = vpack.c.b16 %v2319, %v2287
    %v3248 = vpack.c.b16 %v2320, %v2288
    %v3249 = vpack.c.b16 %v2321, %v2289
    %v3250 = vpack.c.b16 %v2322, %v2290
    %v3251 = vpack.c.b16 %v2323, %v2291
    %v3252 = vpack.c.b16 %v2324, %v2292
    %v3253 = vpack.c.b16 %v2325, %v2293
    %v3254 = vpack.c.b16 %v2326, %v2294
    %v3255 = vpack.c.b16 %v2327, %v2295
    %v3256 = vpack.c.b16 %v2328, %v2296
    %v3257 = vpack.c.b16 %v2329, %v2297
    %v3258 = vpack.c.b16 %v2330, %v2298
    %v3259 = vpack.c.b16 %v2331, %v2299
    %v3260 = vpack.c.b16 %v2332, %v2300
    %v3261 = vpack.c.b16 %v2333, %v2301
    %v3262 = vpack.c.b16 %v2334, %v2302
    %v3263 = vpack.c.b16 %v2335, %v2303
    %v3264 = vpack.c.b16 %v2336, %v2304
    %v3265 = vpack.c.b16 %v2337, %v2305
    %v3266 = vpack.c.b16 %v2338, %v2306
    %v3267 = vpack.c.b16 %v2339, %v2307
    %v3268 = vpack.c.b16 %v2340, %v2308
    %v3269 = vpack.c.b16 %v2341, %v2309
    %v3270 = vpack.c.b16 %v2342, %v2310
    %v3271 = vpack.c.b16 %v2343, %v2311
    %v3272 = vpack.c.b16 %v2376, %v2344
    %v3273 = vpack.c.b16 %v2377, %v2345
    %v3274 = vpack.c.b16 %v2378, %v2346
    %v3275 = vpack.c.b16 %v2379, %v2347
    %v3276 = vpack.c.b16 %v2380, %v2348
    %v3277 = vpack.c.b16 %v2381, %v2349
    %v3278 = vpack.c.b16 %v2382, %v2350
    %v3279 = vpack.c.b16 %v2383, %v2351
    %v3280 = vpack.c.b16 %v2384, %v2352
    %v3281 = vpack.c.b16 %v2385, %v2353
    %v3282 = vpack.c.b16 %v2386, %v2354
    %v3283 = vpack.c.b16 %v2387, %v2355
    %v3284 = vpack.c.b16 %v2388, %v2356
    %v3285 = vpack.c.b16 %v2389, %v2357
    %v3286 = vpack.c.b16 %v2390, %v2358
    %v3287 = vpack.c.b16 %v2391, %v2359
    %v3288 = vpack.c.b16 %v2392, %v2360
    %v3289 = vpack.c.b16 %v2393, %v2361
    %v3290 = vpack.c.b16 %v2394, %v2362
    %v3291 = vpack.c.b16 %v2395, %v2363
    %v3292 = vpack.c.b16 %v2396, %v2364
    %v3293 = vpack.c.b16 %v2397, %v2365
    %v3294 = vpack.c.b16 %v2398, %v2366
    %v3295 = vpack.c.b16 %v2399, %v2367
    %v3296 = vpack.c.b16 %v2400, %v2368
    %v3297 = vpack.c.b16 %v2401, %v2369
    %v3298 = vpack.c.b16 %v2402, %v2370
    %v3299 = vpack.c.b16 %v2403, %v2371
    %v3300 = vpack.c.b16 %v2404, %v2372
    %v3301 = vpack.c.b16 %v2405, %v2373
    %v3302 = vpack.c.b16 %v2406, %v2374
    %v3303 = vpack.c.b16 %v2407, %v2375
    %v3304 = vpack.c.b16 %v2440, %v2408
    %v3305 = vpack.c.b16 %v2441, %v2409
    %v3306 = vpack.c.b16 %v2442, %v2410
    %v3307 = vpack.c.b16 %v2443, %v2411
    %v3308 = vpack.c.b16 %v2444, %v2412
    %v3309 = vpack.c.b16 %v2445, %v2413
    %v3310 = vpack.c.b16 %v2446, %v2414
    %v3311 = vpack.c.b16 %v2447, %v2415
    %v3312 = vpack.c.b16 %v2448, %v2416
    %v3313 = vpack.c.b16 %v2449, %v2417
    %v3314 = vpack.c.b16 %v2450, %v2418
    %v3315 = vpack.c.b16 %v2451, %v2419
    %v3316 = vpack.c.b16 %v2452, %v2420
    %v3317 = vpack.c.b16 %v2453, %v2421
    %v3318 = vpack.c.b16 %v2454, %v2422
    %v3319 = vpack.c.b16 %v2455, %v2423
    %v3320 = vpack.c.b16 %v2456, %v2424
    %v3321 = vpack.c.b16 %v2457, %v2425
    %v3322 = vpack.c.b16 %v2458, %v2426
    %v3323 = vpack.c.b16 %v2459, %v2427
    %v3324 = vpack.c.b16 %v2460, %v2428
    %v3325 = vpack.c.b16 %v2461, %v2429
    %v3326 = vpack.c.b16 %v2462, %v2430
    %v3327 = vpack.c.b16 %v2463, %v2431
    %v3328 = vpack.c.b16 %v2464, %v2432
    %v3329 = vpack.c.b16 %v2465, %v2433
    %v3330 = vpack.c.b16 %v2466, %v2434
    %v3331 = vpack.c.b16 %v2467, %v2435
    %v3332 = vpack.c.b16 %v2468, %v2436
    %v3333 = vpack.c.b16 %v2469, %v2437
    %v3334 = vpack.c.b16 %v2470, %v2438
    %v3335 = vpack.c.b16 %v2471, %v2439
    %v3336 = vpack.c.b16 %v2504, %v2472
    %v3337 = vpack.c.b16 %v2505, %v2473
    %v3338 = vpack.c.b16 %v2506, %v2474
    %v3339 = vpack.c.b16 %v2507, %v2475
    %v3340 = vpack.c.b16 %v2508, %v2476
    %v3341 = vpack.c.b16 %v2509, %v2477
    %v3342 = vpack.c.b16 %v2510, %v2478
    %v3343 = vpack.c.b16 %v2511, %v2479
    %v3344 = vpack.c.b16 %v2512, %v2480
    %v3345 = vpack.c.b16 %v2513, %v2481
    %v3346 = vpack.c.b16 %v2514, %v2482
    %v3347 = vpack.c.b16 %v2515, %v2483
    %v3348 = vpack.c.b16 %v2516, %v2484
    %v3349 = vpack.c.b16 %v2517, %v2485
    %v3350 = vpack.c.b16 %v2518, %v2486
    %v3351 = vpack.c.b16 %v2519, %v2487
    %v3352 = vpack.c.b16 %v2520, %v2488
    %v3353 = vpack.c.b16 %v2521, %v2489
    %v3354 = vpack.c.b16 %v2522, %v2490
    %v3355 = vpack.c.b16 %v2523, %v2491
    %v3356 = vpack.c.b16 %v2524, %v2492
    %v3357 = vpack.c.b16 %v2525, %v2493
    %v3358 = vpack.c.b16 %v2526, %v2494
    %v3359 = vpack.c.b16 %v2527, %v2495
    %v3360 = vpack.c.b16 %v2528, %v2496
    %v3361 = vpack.c.b16 %v2529, %v2497
    %v3362 = vpack.c.b16 %v2530, %v2498
    %v3363 = vpack.c.b16 %v2531, %v2499
    %v3364 = vpack.c.b16 %v2532, %v2500
    %v3365 = vpack.c.b16 %v2533, %v2501
    %v3366 = vpack.c.b16 %v2534, %v2502
    %v3367 = vpack.c.b16 %v2535, %v2503
    %v3368 = vpack.c.b16 %v2568, %v2536
    %v3369 = vpack.c.b16 %v2569, %v2537
    %v3370 = vpack.c.b16 %v2570, %v2538
    %v3371 = vpack.c.b16 %v2571, %v2539
    %v3372 = vpack.c.b16 %v2572, %v2540
    %v3373 = vpack.c.b16 %v2573, %v2541
    %v3374 = vpack.c.b16 %v2574, %v2542
    %v3375 = vpack.c.b16 %v2575, %v2543
    %v3376 = vpack.c.b16 %v2576, %v2544
    %v3377 = vpack.c.b16 %v2577, %v2545
    %v3378 = vpack.c.b16 %v2578, %v2546
    %v3379 = vpack.c.b16 %v2579, %v2547
    %v3380 = vpack.c.b16 %v2580, %v2548
    %v3381 = vpack.c.b16 %v2581, %v2549
    %v3382 = vpack.c.b16 %v2582, %v2550
    %v3383 = vpack.c.b16 %v2583, %v2551
    %v3384 = vpack.c.b16 %v2584, %v2552
    %v3385 = vpack.c.b16 %v2585, %v2553
    %v3386 = vpack.c.b16 %v2586, %v2554
    %v3387 = vpack.c.b16 %v2587, %v2555
    %v3388 = vpack.c.b16 %v2588, %v2556
    %v3389 = vpack.c.b16 %v2589, %v2557
    %v3390 = vpack.c.b16 %v2590, %v2558
    %v3391 = vpack.c.b16 %v2591, %v2559
    %v3392 = vpack.c.b16 %v2592, %v2560
    %v3393 = vpack.c.b16 %v2593, %v2561
    %v3394 = vpack.c.b16 %v2594, %v2562
    %v3395 = vpack.c.b16 %v2595, %v2563
    %v3396 = vpack.c.b16 %v2596, %v2564
    %v3397 = vpack.c.b16 %v2597, %v2565
    %v3398 = vpack.c.b16 %v2598, %v2566
    %v3399 = vpack.c.b16 %v2599, %v2567
    %v3400 = vpack.c.b16 %v2632, %v2600
    %v3401 = vpack.c.b16 %v2633, %v2601
    %v3402 = vpack.c.b16 %v2634, %v2602
    %v3403 = vpack.c.b16 %v2635, %v2603
    %v3404 = vpack.c.b16 %v2636, %v2604
    %v3405 = vpack.c.b16 %v2637, %v2605
    %v3406 = vpack.c.b16 %v2638, %v2606
    %v3407 = vpack.c.b16 %v2639, %v2607
    %v3408 = vpack.c.b16 %v2640, %v2608
    %v3409 = vpack.c.b16 %v2641, %v2609
    %v3410 = vpack.c.b16 %v2642, %v2610
    %v3411 = vpack.c.b16 %v2643, %v2611
    %v3412 = vpack.c.b16 %v2644, %v2612
    %v3413 = vpack.c.b16 %v2645, %v2613
    %v3414 = vpack.c.b16 %v2646, %v2614
    %v3415 = vpack.c.b16 %v2647, %v2615
    %v3416 = vpack.c.b16 %v2648, %v2616
    %v3417 = vpack.c.b16 %v2649, %v2617
    %v3418 = vpack.c.b16 %v2650, %v2618
    %v3419 = vpack.c.b16 %v2651, %v2619
    %v3420 = vpack.c.b16 %v2652, %v2620
    %v3421 = vpack.c.b16 %v2653, %v2621
    %v3422 = vpack.c.b16 %v2654, %v2622
    %v3423 = vpack.c.b16 %v2655, %v2623
    %v3424 = vpack.c.b16 %v2656, %v2624
    %v3425 = vpack.c.b16 %v2657, %v2625
    %v3426 = vpack.c.b16 %v2658, %v2626
    %v3427 = vpack.c.b16 %v2659, %v2627
    %v3428 = vpack.c.b16 %v2660, %v2628
    %v3429 = vpack.c.b16 %v2661, %v2629
    %v3430 = vpack.c.b16 %v2662, %v2630
    %v3431 = vpack.c.b16 %v2663, %v2631
    %v3432 = vpack.c.b16 %v2696, %v2664
    %v3433 = vpack.c.b16 %v2697, %v2665
    %v3434 = vpack.c.b16 %v2698, %v2666
    %v3435 = vpack.c.b16 %v2699, %v2667
    %v3436 = vpack.c.b16 %v2700, %v2668
    %v3437 = vpack.c.b16 %v2701, %v2669
    %v3438 = vpack.c.b16 %v2702, %v2670
    %v3439 = vpack.c.b16 %v2703, %v2671
    %v3440 = vpack.c.b16 %v2704, %v2672
    %v3441 = vpack.c.b16 %v2705, %v2673
    %v3442 = vpack.c.b16 %v2706, %v2674
    %v3443 = vpack.c.b16 %v2707, %v2675
    %v3444 = vpack.c.b16 %v2708, %v2676
    %v3445 = vpack.c.b16 %v2709, %v2677
    %v3446 = vpack.c.b16 %v2710, %v2678
    %v3447 = vpack.c.b16 %v2711, %v2679
    %v3448 = vpack.c.b16 %v2712, %v2680
    %v3449 = vpack.c.b16 %v2713, %v2681
    %v3450 = vpack.c.b16 %v2714, %v2682
    %v3451 = vpack.c.b16 %v2715, %v2683
    %v3452 = vpack.c.b16 %v2716, %v2684
    %v3453 = vpack.c.b16 %v2717, %v2685
    %v3454 = vpack.c.b16 %v2718, %v2686
    %v3455 = vpack.c.b16 %v2719, %v2687
    %v3456 = vpack.c.b16 %v2720, %v2688
    %v3457 = vpack.c.b16 %v2721, %v2689
    %v3458 = vpack.c.b16 %v2722, %v2690
    %v3459 = vpack.c.b16 %v2723, %v2691
    %v3460 = vpack.c.b16 %v2724, %v2692
    %v3461 = vpack.c.b16 %v2725, %v2693
    %v3462 = vpack.c.b16 %v2726, %v2694
    %v3463 = vpack.c.b16 %v2727, %v2695
    %v3464 = vpack.c.b16 %v2760, %v2728
    %v3465 = vpack.c.b16 %v2761, %v2729
    %v3466 = vpack.c.b16 %v2762, %v2730
    %v3467 = vpack.c.b16 %v2763, %v2731
    %v3468 = vpack.c.b16 %v2764, %v2732
    %v3469 = vpack.c.b16 %v2765, %v2733
    %v3470 = vpack.c.b16 %v2766, %v2734
    %v3471 = vpack.c.b16 %v2767, %v2735
    %v3472 = vpack.c.b16 %v2768, %v2736
    %v3473 = vpack.c.b16 %v2769, %v2737
    %v3474 = vpack.c.b16 %v2770, %v2738
    %v3475 = vpack.c.b16 %v2771, %v2739
    %v3476 = vpack.c.b16 %v2772, %v2740
    %v3477 = vpack.c.b16 %v2773, %v2741
    %v3478 = vpack.c.b16 %v2774, %v2742
    %v3479 = vpack.c.b16 %v2775, %v2743
    %v3480 = vpack.c.b16 %v2776, %v2744
    %v3481 = vpack.c.b16 %v2777, %v2745
    %v3482 = vpack.c.b16 %v2778, %v2746
    %v3483 = vpack.c.b16 %v2779, %v2747
    %v3484 = vpack.c.b16 %v2780, %v2748
    %v3485 = vpack.c.b16 %v2781, %v2749
    %v3486 = vpack.c.b16 %v2782, %v2750
    %v3487 = vpack.c.b16 %v2783, %v2751
    %v3488 = vpack.c.b16 %v2784, %v2752
    %v3489 = vpack.c.b16 %v2785, %v2753
    %v3490 = vpack.c.b16 %v2786, %v2754
    %v3491 = vpack.c.b16 %v2787, %v2755
    %v3492 = vpack.c.b16 %v2788, %v2756
    %v3493 = vpack.c.b16 %v2789, %v2757
    %v3494 = vpack.c.b16 %v2790, %v2758
    %v3495 = vpack.c.b16 %v2791, %v2759
    %v3496 = vpack.c.b16 %v2824, %v2792
    %v3497 = vpack.c.b16 %v2825, %v2793
    %v3498 = vpack.c.b16 %v2826, %v2794
    %v3499 = vpack.c.b16 %v2827, %v2795
    %v3500 = vpack.c.b16 %v2828, %v2796
    %v3501 = vpack.c.b16 %v2829, %v2797
    %v3502 = vpack.c.b16 %v2830, %v2798
    %v3503 = vpack.c.b16 %v2831, %v2799
    %v3504 = vpack.c.b16 %v2832, %v2800
    %v3505 = vpack.c.b16 %v2833, %v2801
    %v3506 = vpack.c.b16 %v2834, %v2802
    %v3507 = vpack.c.b16 %v2835, %v2803
    %v3508 = vpack.c.b16 %v2836, %v2804
    %v3509 = vpack.c.b16 %v2837, %v2805
    %v3510 = vpack.c.b16 %v2838, %v2806
    %v3511 = vpack.c.b16 %v2839, %v2807
    %v3512 = vpack.c.b16 %v2840, %v2808
    %v3513 = vpack.c.b16 %v2841, %v2809
    %v3514 = vpack.c.b16 %v2842, %v2810
    %v3515 = vpack.c.b16 %v2843, %v2811
    %v3516 = vpack.c.b16 %v2844, %v2812
    %v3517 = vpack.c.b16 %v2845, %v2813
    %v3518 = vpack.c.b16 %v2846, %v2814
    %v3519 = vpack.c.b16 %v2847, %v2815
    %v3520 = vpack.c.b16 %v2848, %v2816
    %v3521 = vpack.c.b16 %v2849, %v2817
    %v3522 = vpack.c.b16 %v2850, %v2818
    %v3523 = vpack.c.b16 %v2851, %v2819
    %v3524 = vpack.c.b16 %v2852, %v2820
    %v3525 = vpack.c.b16 %v2853, %v2821
    %v3526 = vpack.c.b16 %v2854, %v2822
    %v3527 = vpack.c.b16 %v2855, %v2823
    %v3528 = vpack.c.b16 %v2888, %v2856
    %v3529 = vpack.c.b16 %v2889, %v2857
    %v3530 = vpack.c.b16 %v2890, %v2858
    %v3531 = vpack.c.b16 %v2891, %v2859
    %v3532 = vpack.c.b16 %v2892, %v2860
    %v3533 = vpack.c.b16 %v2893, %v2861
    %v3534 = vpack.c.b16 %v2894, %v2862
    %v3535 = vpack.c.b16 %v2895, %v2863
    %v3536 = vpack.c.b16 %v2896, %v2864
    %v3537 = vpack.c.b16 %v2897, %v2865
    %v3538 = vpack.c.b16 %v2898, %v2866
    %v3539 = vpack.c.b16 %v2899, %v2867
    %v3540 = vpack.c.b16 %v2900, %v2868
    %v3541 = vpack.c.b16 %v2901, %v2869
    %v3542 = vpack.c.b16 %v2902, %v2870
    %v3543 = vpack.c.b16 %v2903, %v2871
    %v3544 = vpack.c.b16 %v2904, %v2872
    %v3545 = vpack.c.b16 %v2905, %v2873
    %v3546 = vpack.c.b16 %v2906, %v2874
    %v3547 = vpack.c.b16 %v2907, %v2875
    %v3548 = vpack.c.b16 %v2908, %v2876
    %v3549 = vpack.c.b16 %v2909, %v2877
    %v3550 = vpack.c.b16 %v2910, %v2878
    %v3551 = vpack.c.b16 %v2911, %v2879
    %v3552 = vpack.c.b16 %v2912, %v2880
    %v3553 = vpack.c.b16 %v2913, %v2881
    %v3554 = vpack.c.b16 %v2914, %v2882
    %v3555 = vpack.c.b16 %v2915, %v2883
    %v3556 = vpack.c.b16 %v2916, %v2884
    %v3557 = vpack.c.b16 %v2917, %v2885
    %v3558 = vpack.c.b16 %v2918, %v2886
    %v3559 = vpack.c.b16 %v2919, %v2887
    %v3560 = vpack.c.b16 %v2952, %v2920
    %v3561 = vpack.c.b16 %v2953, %v2921
    %v3562 = vpack.c.b16 %v2954, %v2922
    %v3563 = vpack.c.b16 %v2955, %v2923
    %v3564 = vpack.c.b16 %v2956, %v2924
    %v3565 = vpack.c.b16 %v2957, %v2925
    %v3566 = vpack.c.b16 %v2958, %v2926
    %v3567 = vpack.c.b16 %v2959, %v2927
    %v3568 = vpack.c.b16 %v2960, %v2928
    %v3569 = vpack.c.b16 %v2961, %v2929
    %v3570 = vpack.c.b16 %v2962, %v2930
    %v3571 = vpack.c.b16 %v2963, %v2931
    %v3572 = vpack.c.b16 %v2964, %v2932
    %v3573 = vpack.c.b16 %v2965, %v2933
    %v3574 = vpack.c.b16 %v2966, %v2934
    %v3575 = vpack.c.b16 %v2967, %v2935
    %v3576 = vpack.c.b16 %v2968, %v2936
    %v3577 = vpack.c.b16 %v2969, %v2937
    %v3578 = vpack.c.b16 %v2970, %v2938
    %v3579 = vpack.c.b16 %v2971, %v2939
    %v3580 = vpack.c.b16 %v2972, %v2940
    %v3581 = vpack.c.b16 %v2973, %v2941
    %v3582 = vpack.c.b16 %v2974, %v2942
    %v3583 = vpack.c.b16 %v2975, %v2943
    %v3584 = vpack.c.b16 %v2976, %v2944
    %v3585 = vpack.c.b16 %v2977, %v2945
    %v3586 = vpack.c.b16 %v2978, %v2946
    %v3587 = vpack.c.b16 %v2979, %v2947
    %v3588 = vpack.c.b16 %v2980, %v2948
    %v3589 = vpack.c.b16 %v2981, %v2949
    %v3590 = vpack.c.b16 %v2982, %v2950
    %v3591 = vpack.c.b16 %v2983, %v2951
    %v3592 = vpack.c.b16 %v3016, %v2984
    %v3593 = vpack.c.b16 %v3017, %v2985
    %v3594 = vpack.c.b16 %v3018, %v2986
    %v3595 = vpack.c.b16 %v3019, %v2987
    %v3596 = vpack.c.b16 %v3020, %v2988
    %v3597 = vpack.c.b16 %v3021, %v2989
    %v3598 = vpack.c.b16 %v3022, %v2990
    %v3599 = vpack.c.b16 %v3023, %v2991
    %v3600 = vpack.c.b16 %v3024, %v2992
    %v3601 = vpack.c.b16 %v3025, %v2993
    %v3602 = vpack.c.b16 %v3026, %v2994
    %v3603 = vpack.c.b16 %v3027, %v2995
    %v3604 = vpack.c.b16 %v3028, %v2996
    %v3605 = vpack.c.b16 %v3029, %v2997
    %v3606 = vpack.c.b16 %v3030, %v2998
    %v3607 = vpack.c.b16 %v3031, %v2999
    %v3608 = vpack.c.b16 %v3032, %v3000
    %v3609 = vpack.c.b16 %v3033, %v3001
    %v3610 = vpack.c.b16 %v3034, %v3002
    %v3611 = vpack.c.b16 %v3035, %v3003
    %v3612 = vpack.c.b16 %v3036, %v3004
    %v3613 = vpack.c.b16 %v3037, %v3005
    %v3614 = vpack.c.b16 %v3038, %v3006
    %v3615 = vpack.c.b16 %v3039, %v3007
    %v3616 = vpack.c.b16 %v3040, %v3008
    %v3617 = vpack.c.b16 %v3041, %v3009
    %v3618 = vpack.c.b16 %v3042, %v3010
    %v3619 = vpack.c.b16 %v3043, %v3011
    %v3620 = vpack.c.b16 %v3044, %v3012
    %v3621 = vpack.c.b16 %v3045, %v3013
    %v3622 = vpack.c.b16 %v3046, %v3014
    %v3623 = vpack.c.b16 %v3047, %v3015
    %v3624 = vpack.c.b16 %v3080, %v3048
    %v3625 = vpack.c.b16 %v3081, %v3049
    %v3626 = vpack.c.b16 %v3082, %v3050
    %v3627 = vpack.c.b16 %v3083, %v3051
    %v3628 = vpack.c.b16 %v3084, %v3052
    %v3629 = vpack.c.b16 %v3085, %v3053
    %v3630 = vpack.c.b16 %v3086, %v3054
    %v3631 = vpack.c.b16 %v3087, %v3055
    %v3632 = vpack.c.b16 %v3088, %v3056
    %v3633 = vpack.c.b16 %v3089, %v3057
    %v3634 = vpack.c.b16 %v3090, %v3058
    %v3635 = vpack.c.b16 %v3091, %v3059
    %v3636 = vpack.c.b16 %v3092, %v3060
    %v3637 = vpack.c.b16 %v3093, %v3061
    %v3638 = vpack.c.b16 %v3094, %v3062
    %v3639 = vpack.c.b16 %v3095, %v3063
    %v3640 = vpack.c.b16 %v3096, %v3064
    %v3641 = vpack.c.b16 %v3097, %v3065
    %v3642 = vpack.c.b16 %v3098, %v3066
    %v3643 = vpack.c.b16 %v3099, %v3067
    %v3644 = vpack.c.b16 %v3100, %v3068
    %v3645 = vpack.c.b16 %v3101, %v3069
    %v3646 = vpack.c.b16 %v3102, %v3070
    %v3647 = vpack.c.b16 %v3103, %v3071
    %v3648 = vpack.c.b16 %v3104, %v3072
    %v3649 = vpack.c.b16 %v3105, %v3073
    %v3650 = vpack.c.b16 %v3106, %v3074
    %v3651 = vpack.c.b16 %v3107, %v3075
    %v3652 = vpack.c.b16 %v3108, %v3076
    %v3653 = vpack.c.b16 %v3109, %v3077
    %v3654 = vpack.c.b16 %v3110, %v3078
    %v3655 = vpack.c.b16 %v3111, %v3079
    %v3656 = vpack.c.b16 %v3144, %v3112
    %v3657 = vpack.c.b16 %v3145, %v3113
    %v3658 = vpack.c.b16 %v3146, %v3114
    %v3659 = vpack.c.b16 %v3147, %v3115
    %v3660 = vpack.c.b16 %v3148, %v3116
    %v3661 = vpack.c.b16 %v3149, %v3117
    %v3662 = vpack.c.b16 %v3150, %v3118
    %v3663 = vpack.c.b16 %v3151, %v3119
    %v3664 = vpack.c.b16 %v3152, %v3120
    %v3665 = vpack.c.b16 %v3153, %v3121
    %v3666 = vpack.c.b16 %v3154, %v3122
    %v3667 = vpack.c.b16 %v3155, %v3123
    %v3668 = vpack.c.b16 %v3156, %v3124
    %v3669 = vpack.c.b16 %v3157, %v3125
    %v3670 = vpack.c.b16 %v3158, %v3126
    %v3671 = vpack.c.b16 %v3159, %v3127
    %v3672 = vpack.c.b16 %v3160, %v3128
    %v3673 = vpack.c.b16 %v3161, %v3129
    %v3674 = vpack.c.b16 %v3162, %v3130
    %v3675 = vpack.c.b16 %v3163, %v3131
    %v3676 = vpack.c.b16 %v3164, %v3132
    %v3677 = vpack.c.b16 %v3165, %v3133
    %v3678 = vpack.c.b16 %v3166, %v3134
    %v3679 = vpack.c.b16 %v3167, %v3135
    %v3680 = vpack.c.b16 %v3168, %v3136
    %v3681 = vpack.c.b16 %v3169, %v3137
    %v3682 = vpack.c.b16 %v3170, %v3138
    %v3683 = vpack.c.b16 %v3171, %v3139
    %v3684 = vpack.c.b16 %v3172, %v3140
    %v3685 = vpack.c.b16 %v3173, %v3141
    %v3686 = vpack.c.b16 %v3174, %v3142
    %v3687 = vpack.c.b16 %v3175, %v3143
    %4200 = vmatprep.subr.bf16.mxu0 %v3401
    %4201 = vmatpush1.bf16.msra.mxu0 %v3400
    %4202 = vmatprep.subr.bf16.mxu0 %v3369
    %4203 = vmatpush1.bf16.msra.mxu0 %v3368
    %4204 = vmatprep.subr.bf16.mxu0 %v3337
    %4205 = vmatpush1.bf16.msra.mxu0 %v3336
    %4206 = vmatprep.subr.bf16.mxu0 %v3305
    %4207 = vmatpush1.bf16.msra.mxu0 %v3304
    %4208 = vmatprep.subr.bf16.mxu0 %v3273
    %4209 = vmatpush1.bf16.msra.mxu0 %v3272
    %4210 = vmatprep.subr.bf16.mxu0 %v3241
    %4211 = vmatpush1.bf16.msra.mxu0 %v3240
    %4212 = vmatprep.subr.bf16.mxu0 %v3209
    %4213 = vmatpush1.bf16.msra.mxu0 %v3208
    %4214 = vmatprep.subr.bf16.mxu0 %v3177
    %4215 = vmatpush1.bf16.msra.mxu0 %v3176
    %4216 = vmatprep.subr.bf16.mxu0 %v3657
    %4217 = vmatpush2.bf16.msra.mxu0 %v3656
    %4218 = vmatprep.subr.bf16.mxu0 %v3625
    %4219 = vmatpush2.bf16.msra.mxu0 %v3624
    %4220 = vmatprep.subr.bf16.mxu0 %v3593
    %4221 = vmatpush2.bf16.msra.mxu0 %v3592
    %4222 = vmatprep.subr.bf16.mxu0 %v3561
    %4223 = vmatpush2.bf16.msra.mxu0 %v3560
    %4224 = vmatprep.subr.bf16.mxu0 %v3529
    %4225 = vmatpush2.bf16.msra.mxu0 %v3528
    %4226 = vmatprep.subr.bf16.mxu0 %v3497
    %4227 = vmatpush2.bf16.msra.mxu0 %v3496
    %4228 = vmatprep.subr.bf16.mxu0 %v3465
    %4229 = vmatpush2.bf16.msra.mxu0 %v3464
    %4230 = vmatprep.subr.bf16.mxu0 %v3433
    %4231 = vmatpush2.bf16.msra.mxu0 %v3432
    %4232 = vmatprep.mubr.bf16.mxu0 %v1637
    %4233 = vmatmul.mubr.bf16.gmra.mxu0 %v1636
    %v4234 = vpop.f32.mrf.mxu0
    %v4235 = vadd.f32 %v1473, %v4234
    %v4236 = vpop.f32.mrf.mxu0
    %v4237 = vadd.f32 %v1477, %v4236
    %v4238 = vpop.f32.mrf.mxu0
    %v4239 = vadd.f32 %v1473, %v4238
    %v4240 = vpop.f32.mrf.mxu0
    %v4241 = vadd.f32 %v1477, %v4240
    %4242 = vdwg.mxu0
    %4243 = vmatprep.subr.bf16.mxu0 %v3403
    %4244 = vmatpush1.bf16.msra.mxu0 %v3402
    %4245 = vmatprep.subr.bf16.mxu0 %v3371
    %4246 = vmatpush1.bf16.msra.mxu0 %v3370
    %4247 = vmatprep.subr.bf16.mxu0 %v3339
    %4248 = vmatpush1.bf16.msra.mxu0 %v3338
    %4249 = vmatprep.subr.bf16.mxu0 %v3307
    %4250 = vmatpush1.bf16.msra.mxu0 %v3306
    %4251 = vmatprep.subr.bf16.mxu0 %v3275
    %4252 = vmatpush1.bf16.msra.mxu0 %v3274
    %4253 = vmatprep.subr.bf16.mxu0 %v3243
    %4254 = vmatpush1.bf16.msra.mxu0 %v3242
    %4255 = vmatprep.subr.bf16.mxu0 %v3211
    %4256 = vmatpush1.bf16.msra.mxu0 %v3210
    %4257 = vmatprep.subr.bf16.mxu0 %v3179
    %4258 = vmatpush1.bf16.msra.mxu0 %v3178
    %4259 = vmatprep.subr.bf16.mxu0 %v3659
    %4260 = vmatpush2.bf16.msra.mxu0 %v3658
    %4261 = vmatprep.subr.bf16.mxu0 %v3627
    %4262 = vmatpush2.bf16.msra.mxu0 %v3626
    %4263 = vmatprep.subr.bf16.mxu0 %v3595
    %4264 = vmatpush2.bf16.msra.mxu0 %v3594
    %4265 = vmatprep.subr.bf16.mxu0 %v3563
    %4266 = vmatpush2.bf16.msra.mxu0 %v3562
    %4267 = vmatprep.subr.bf16.mxu0 %v3531
    %4268 = vmatpush2.bf16.msra.mxu0 %v3530
    %4269 = vmatprep.subr.bf16.mxu0 %v3499
    %4270 = vmatpush2.bf16.msra.mxu0 %v3498
    %4271 = vmatprep.subr.bf16.mxu0 %v3467
    %4272 = vmatpush2.bf16.msra.mxu0 %v3466
    %4273 = vmatprep.subr.bf16.mxu0 %v3435
    %4274 = vmatpush2.bf16.msra.mxu0 %v3434
    %4275 = vmatprep.mubr.bf16.mxu0 %v1637
    %4276 = vmatmul.mubr.bf16.gmra.mxu0 %v1636
    %v4277 = vpop.f32.mrf.mxu0
    %v4278 = vadd.f32 %v1481, %v4277
    %v4279 = vpop.f32.mrf.mxu0
    %v4280 = vadd.f32 %v1485, %v4279
    %v4281 = vpop.f32.mrf.mxu0
    %v4282 = vadd.f32 %v1481, %v4281
    %v4283 = vpop.f32.mrf.mxu0
    %v4284 = vadd.f32 %v1485, %v4283
    %4285 = vdwg.mxu0
    %4286 = vmatprep.subr.bf16.mxu0 %v3405
    %4287 = vmatpush1.bf16.msra.mxu0 %v3404
    %4288 = vmatprep.subr.bf16.mxu0 %v3373
    %4289 = vmatpush1.bf16.msra.mxu0 %v3372
    %4290 = vmatprep.subr.bf16.mxu0 %v3341
    %4291 = vmatpush1.bf16.msra.mxu0 %v3340
    %4292 = vmatprep.subr.bf16.mxu0 %v3309
    %4293 = vmatpush1.bf16.msra.mxu0 %v3308
    %4294 = vmatprep.subr.bf16.mxu0 %v3277
    %4295 = vmatpush1.bf16.msra.mxu0 %v3276
    %4296 = vmatprep.subr.bf16.mxu0 %v3245
    %4297 = vmatpush1.bf16.msra.mxu0 %v3244
    %4298 = vmatprep.subr.bf16.mxu0 %v3213
    %4299 = vmatpush1.bf16.msra.mxu0 %v3212
    %4300 = vmatprep.subr.bf16.mxu0 %v3181
    %4301 = vmatpush1.bf16.msra.mxu0 %v3180
    %4302 = vmatprep.subr.bf16.mxu0 %v3661
    %4303 = vmatpush2.bf16.msra.mxu0 %v3660
    %4304 = vmatprep.subr.bf16.mxu0 %v3629
    %4305 = vmatpush2.bf16.msra.mxu0 %v3628
    %4306 = vmatprep.subr.bf16.mxu0 %v3597
    %4307 = vmatpush2.bf16.msra.mxu0 %v3596
    %4308 = vmatprep.subr.bf16.mxu0 %v3565
    %4309 = vmatpush2.bf16.msra.mxu0 %v3564
    %4310 = vmatprep.subr.bf16.mxu0 %v3533
    %4311 = vmatpush2.bf16.msra.mxu0 %v3532
    %4312 = vmatprep.subr.bf16.mxu0 %v3501
    %4313 = vmatpush2.bf16.msra.mxu0 %v3500
    %4314 = vmatprep.subr.bf16.mxu0 %v3469
    %4315 = vmatpush2.bf16.msra.mxu0 %v3468
    %4316 = vmatprep.subr.bf16.mxu0 %v3437
    %4317 = vmatpush2.bf16.msra.mxu0 %v3436
    %4318 = vmatprep.mubr.bf16.mxu0 %v1637
    %4319 = vmatmul.mubr.bf16.gmra.mxu0 %v1636
    %v4320 = vpop.f32.mrf.mxu0
    %v4321 = vadd.f32 %v1489, %v4320
    %v4322 = vpop.f32.mrf.mxu0
    %v4323 = vadd.f32 %v1493, %v4322
    %v4324 = vpop.f32.mrf.mxu0
    %v4325 = vadd.f32 %v1489, %v4324
    %v4326 = vpop.f32.mrf.mxu0
    %v4327 = vadd.f32 %v1493, %v4326
    %4328 = vdwg.mxu0
    %4329 = vmatprep.subr.bf16.mxu0 %v3407
    %4330 = vmatpush1.bf16.msra.mxu0 %v3406
    %4331 = vmatprep.subr.bf16.mxu0 %v3375
    %4332 = vmatpush1.bf16.msra.mxu0 %v3374
    %4333 = vmatprep.subr.bf16.mxu0 %v3343
    %4334 = vmatpush1.bf16.msra.mxu0 %v3342
    %4335 = vmatprep.subr.bf16.mxu0 %v3311
    %4336 = vmatpush1.bf16.msra.mxu0 %v3310
    %4337 = vmatprep.subr.bf16.mxu0 %v3279
    %4338 = vmatpush1.bf16.msra.mxu0 %v3278
    %4339 = vmatprep.subr.bf16.mxu0 %v3247
    %4340 = vmatpush1.bf16.msra.mxu0 %v3246
    %4341 = vmatprep.subr.bf16.mxu0 %v3215
    %4342 = vmatpush1.bf16.msra.mxu0 %v3214
    %4343 = vmatprep.subr.bf16.mxu0 %v3183
    %4344 = vmatpush1.bf16.msra.mxu0 %v3182
    %4345 = vmatprep.subr.bf16.mxu0 %v3663
    %4346 = vmatpush2.bf16.msra.mxu0 %v3662
    %4347 = vmatprep.subr.bf16.mxu0 %v3631
    %4348 = vmatpush2.bf16.msra.mxu0 %v3630
    %4349 = vmatprep.subr.bf16.mxu0 %v3599
    %4350 = vmatpush2.bf16.msra.mxu0 %v3598
    %4351 = vmatprep.subr.bf16.mxu0 %v3567
    %4352 = vmatpush2.bf16.msra.mxu0 %v3566
    %4353 = vmatprep.subr.bf16.mxu0 %v3535
    %4354 = vmatpush2.bf16.msra.mxu0 %v3534
    %4355 = vmatprep.subr.bf16.mxu0 %v3503
    %4356 = vmatpush2.bf16.msra.mxu0 %v3502
    %4357 = vmatprep.subr.bf16.mxu0 %v3471
    %4358 = vmatpush2.bf16.msra.mxu0 %v3470
    %4359 = vmatprep.subr.bf16.mxu0 %v3439
    %4360 = vmatpush2.bf16.msra.mxu0 %v3438
    %4361 = vmatprep.mubr.bf16.mxu0 %v1637
    %4362 = vmatmul.mubr.bf16.gmra.mxu0 %v1636
    %v4363 = vpop.f32.mrf.mxu0
    %v4364 = vadd.f32 %v1497, %v4363
    %v4365 = vpop.f32.mrf.mxu0
    %v4366 = vadd.f32 %v1501, %v4365
    %v4367 = vpop.f32.mrf.mxu0
    %v4368 = vadd.f32 %v1497, %v4367
    %v4369 = vpop.f32.mrf.mxu0
    %v4370 = vadd.f32 %v1501, %v4369
    %4371 = vdwg.mxu0
    %4372 = vmatprep.subr.bf16.mxu0 %v3409
    %4373 = vmatpush1.bf16.msra.mxu0 %v3408
    %4374 = vmatprep.subr.bf16.mxu0 %v3377
    %4375 = vmatpush1.bf16.msra.mxu0 %v3376
    %4376 = vmatprep.subr.bf16.mxu0 %v3345
    %4377 = vmatpush1.bf16.msra.mxu0 %v3344
    %4378 = vmatprep.subr.bf16.mxu0 %v3313
    %4379 = vmatpush1.bf16.msra.mxu0 %v3312
    %4380 = vmatprep.subr.bf16.mxu0 %v3281
    %4381 = vmatpush1.bf16.msra.mxu0 %v3280
    %4382 = vmatprep.subr.bf16.mxu0 %v3249
    %4383 = vmatpush1.bf16.msra.mxu0 %v3248
    %4384 = vmatprep.subr.bf16.mxu0 %v3217
    %4385 = vmatpush1.bf16.msra.mxu0 %v3216
    %4386 = vmatprep.subr.bf16.mxu0 %v3185
    %4387 = vmatpush1.bf16.msra.mxu0 %v3184
    %4388 = vmatprep.subr.bf16.mxu0 %v3665
    %4389 = vmatpush2.bf16.msra.mxu0 %v3664
    %4390 = vmatprep.subr.bf16.mxu0 %v3633
    %4391 = vmatpush2.bf16.msra.mxu0 %v3632
    %4392 = vmatprep.subr.bf16.mxu0 %v3601
    %4393 = vmatpush2.bf16.msra.mxu0 %v3600
    %4394 = vmatprep.subr.bf16.mxu0 %v3569
    %4395 = vmatpush2.bf16.msra.mxu0 %v3568
    %4396 = vmatprep.subr.bf16.mxu0 %v3537
    %4397 = vmatpush2.bf16.msra.mxu0 %v3536
    %4398 = vmatprep.subr.bf16.mxu0 %v3505
    %4399 = vmatpush2.bf16.msra.mxu0 %v3504
    %4400 = vmatprep.subr.bf16.mxu0 %v3473
    %4401 = vmatpush2.bf16.msra.mxu0 %v3472
    %4402 = vmatprep.subr.bf16.mxu0 %v3441
    %4403 = vmatpush2.bf16.msra.mxu0 %v3440
    %4404 = vmatprep.mubr.bf16.mxu0 %v1637
    %4405 = vmatmul.mubr.bf16.gmra.mxu0 %v1636
    %v4406 = vpop.f32.mrf.mxu0
    %v4407 = vadd.f32 %v1505, %v4406
    %v4408 = vpop.f32.mrf.mxu0
    %v4409 = vadd.f32 %v1509, %v4408
    %v4410 = vpop.f32.mrf.mxu0
    %v4411 = vadd.f32 %v1505, %v4410
    %v4412 = vpop.f32.mrf.mxu0
    %v4413 = vadd.f32 %v1509, %v4412
    %4414 = vdwg.mxu0
    %4415 = vmatprep.subr.bf16.mxu0 %v3411
    %4416 = vmatpush1.bf16.msra.mxu0 %v3410
    %4417 = vmatprep.subr.bf16.mxu0 %v3379
    %4418 = vmatpush1.bf16.msra.mxu0 %v3378
    %4419 = vmatprep.subr.bf16.mxu0 %v3347
    %4420 = vmatpush1.bf16.msra.mxu0 %v3346
    %4421 = vmatprep.subr.bf16.mxu0 %v3315
    %4422 = vmatpush1.bf16.msra.mxu0 %v3314
    %4423 = vmatprep.subr.bf16.mxu0 %v3283
    %4424 = vmatpush1.bf16.msra.mxu0 %v3282
    %4425 = vmatprep.subr.bf16.mxu0 %v3251
    %4426 = vmatpush1.bf16.msra.mxu0 %v3250
    %4427 = vmatprep.subr.bf16.mxu0 %v3219
    %4428 = vmatpush1.bf16.msra.mxu0 %v3218
    %4429 = vmatprep.subr.bf16.mxu0 %v3187
    %4430 = vmatpush1.bf16.msra.mxu0 %v3186
    %4431 = vmatprep.subr.bf16.mxu0 %v3667
    %4432 = vmatpush2.bf16.msra.mxu0 %v3666
    %4433 = vmatprep.subr.bf16.mxu0 %v3635
    %4434 = vmatpush2.bf16.msra.mxu0 %v3634
    %4435 = vmatprep.subr.bf16.mxu0 %v3603
    %4436 = vmatpush2.bf16.msra.mxu0 %v3602
    %4437 = vmatprep.subr.bf16.mxu0 %v3571
    %4438 = vmatpush2.bf16.msra.mxu0 %v3570
    %4439 = vmatprep.subr.bf16.mxu0 %v3539
    %4440 = vmatpush2.bf16.msra.mxu0 %v3538
    %4441 = vmatprep.subr.bf16.mxu0 %v3507
    %4442 = vmatpush2.bf16.msra.mxu0 %v3506
    %4443 = vmatprep.subr.bf16.mxu0 %v3475
    %4444 = vmatpush2.bf16.msra.mxu0 %v3474
    %4445 = vmatprep.subr.bf16.mxu0 %v3443
    %4446 = vmatpush2.bf16.msra.mxu0 %v3442
    %4447 = vmatprep.mubr.bf16.mxu0 %v1637
    %4448 = vmatmul.mubr.bf16.gmra.mxu0 %v1636
    %v4449 = vpop.f32.mrf.mxu0
    %v4450 = vadd.f32 %v1513, %v4449
    %v4451 = vpop.f32.mrf.mxu0
    %v4452 = vadd.f32 %v1517, %v4451
    %v4453 = vpop.f32.mrf.mxu0
    %v4454 = vadd.f32 %v1513, %v4453
    %v4455 = vpop.f32.mrf.mxu0
    %v4456 = vadd.f32 %v1517, %v4455
    %4457 = vdwg.mxu0
    %4458 = vmatprep.subr.bf16.mxu0 %v3413
    %4459 = vmatpush1.bf16.msra.mxu0 %v3412
    %4460 = vmatprep.subr.bf16.mxu0 %v3381
    %4461 = vmatpush1.bf16.msra.mxu0 %v3380
    %4462 = vmatprep.subr.bf16.mxu0 %v3349
    %4463 = vmatpush1.bf16.msra.mxu0 %v3348
    %4464 = vmatprep.subr.bf16.mxu0 %v3317
    %4465 = vmatpush1.bf16.msra.mxu0 %v3316
    %4466 = vmatprep.subr.bf16.mxu0 %v3285
    %4467 = vmatpush1.bf16.msra.mxu0 %v3284
    %4468 = vmatprep.subr.bf16.mxu0 %v3253
    %4469 = vmatpush1.bf16.msra.mxu0 %v3252
    %4470 = vmatprep.subr.bf16.mxu0 %v3221
    %4471 = vmatpush1.bf16.msra.mxu0 %v3220
    %4472 = vmatprep.subr.bf16.mxu0 %v3189
    %4473 = vmatpush1.bf16.msra.mxu0 %v3188
    %4474 = vmatprep.subr.bf16.mxu0 %v3669
    %4475 = vmatpush2.bf16.msra.mxu0 %v3668
    %4476 = vmatprep.subr.bf16.mxu0 %v3637
    %4477 = vmatpush2.bf16.msra.mxu0 %v3636
    %4478 = vmatprep.subr.bf16.mxu0 %v3605
    %4479 = vmatpush2.bf16.msra.mxu0 %v3604
    %4480 = vmatprep.subr.bf16.mxu0 %v3573
    %4481 = vmatpush2.bf16.msra.mxu0 %v3572
    %4482 = vmatprep.subr.bf16.mxu0 %v3541
    %4483 = vmatpush2.bf16.msra.mxu0 %v3540
    %4484 = vmatprep.subr.bf16.mxu0 %v3509
    %4485 = vmatpush2.bf16.msra.mxu0 %v3508
    %4486 = vmatprep.subr.bf16.mxu0 %v3477
    %4487 = vmatpush2.bf16.msra.mxu0 %v3476
    %4488 = vmatprep.subr.bf16.mxu0 %v3445
    %4489 = vmatpush2.bf16.msra.mxu0 %v3444
    %4490 = vmatprep.mubr.bf16.mxu0 %v1637
    %4491 = vmatmul.mubr.bf16.gmra.mxu0 %v1636
    %v4492 = vpop.f32.mrf.mxu0
    %v4493 = vadd.f32 %v1521, %v4492
    %v4494 = vpop.f32.mrf.mxu0
    %v4495 = vadd.f32 %v1525, %v4494
    %v4496 = vpop.f32.mrf.mxu0
    %v4497 = vadd.f32 %v1521, %v4496
    %v4498 = vpop.f32.mrf.mxu0
    %v4499 = vadd.f32 %v1525, %v4498
    %4500 = vdwg.mxu0
    %4501 = vmatprep.subr.bf16.mxu0 %v3415
    %4502 = vmatpush1.bf16.msra.mxu0 %v3414
    %4503 = vmatprep.subr.bf16.mxu0 %v3383
    %4504 = vmatpush1.bf16.msra.mxu0 %v3382
    %4505 = vmatprep.subr.bf16.mxu0 %v3351
    %4506 = vmatpush1.bf16.msra.mxu0 %v3350
    %4507 = vmatprep.subr.bf16.mxu0 %v3319
    %4508 = vmatpush1.bf16.msra.mxu0 %v3318
    %4509 = vmatprep.subr.bf16.mxu0 %v3287
    %4510 = vmatpush1.bf16.msra.mxu0 %v3286
    %4511 = vmatprep.subr.bf16.mxu0 %v3255
    %4512 = vmatpush1.bf16.msra.mxu0 %v3254
    %4513 = vmatprep.subr.bf16.mxu0 %v3223
    %4514 = vmatpush1.bf16.msra.mxu0 %v3222
    %4515 = vmatprep.subr.bf16.mxu0 %v3191
    %4516 = vmatpush1.bf16.msra.mxu0 %v3190
    %4517 = vmatprep.subr.bf16.mxu0 %v3671
    %4518 = vmatpush2.bf16.msra.mxu0 %v3670
    %4519 = vmatprep.subr.bf16.mxu0 %v3639
    %4520 = vmatpush2.bf16.msra.mxu0 %v3638
    %4521 = vmatprep.subr.bf16.mxu0 %v3607
    %4522 = vmatpush2.bf16.msra.mxu0 %v3606
    %4523 = vmatprep.subr.bf16.mxu0 %v3575
    %4524 = vmatpush2.bf16.msra.mxu0 %v3574
    %4525 = vmatprep.subr.bf16.mxu0 %v3543
    %4526 = vmatpush2.bf16.msra.mxu0 %v3542
    %4527 = vmatprep.subr.bf16.mxu0 %v3511
    %4528 = vmatpush2.bf16.msra.mxu0 %v3510
    %4529 = vmatprep.subr.bf16.mxu0 %v3479
    %4530 = vmatpush2.bf16.msra.mxu0 %v3478
    %4531 = vmatprep.subr.bf16.mxu0 %v3447
    %4532 = vmatpush2.bf16.msra.mxu0 %v3446
    %4533 = vmatprep.mubr.bf16.mxu0 %v1637
    %4534 = vmatmul.mubr.bf16.gmra.mxu0 %v1636
    %v4535 = vpop.f32.mrf.mxu0
    %v4536 = vadd.f32 %v1529, %v4535
    %v4537 = vpop.f32.mrf.mxu0
    %v4538 = vadd.f32 %v1533, %v4537
    %v4539 = vpop.f32.mrf.mxu0
    %v4540 = vadd.f32 %v1529, %v4539
    %v4541 = vpop.f32.mrf.mxu0
    %v4542 = vadd.f32 %v1533, %v4541
    %4543 = vdwg.mxu0
    %4544 = vmatprep.subr.bf16.mxu0 %v3417
    %4545 = vmatpush1.bf16.msra.mxu0 %v3416
    %4546 = vmatprep.subr.bf16.mxu0 %v3385
    %4547 = vmatpush1.bf16.msra.mxu0 %v3384
    %4548 = vmatprep.subr.bf16.mxu0 %v3353
    %4549 = vmatpush1.bf16.msra.mxu0 %v3352
    %4550 = vmatprep.subr.bf16.mxu0 %v3321
    %4551 = vmatpush1.bf16.msra.mxu0 %v3320
    %4552 = vmatprep.subr.bf16.mxu0 %v3289
    %4553 = vmatpush1.bf16.msra.mxu0 %v3288
    %4554 = vmatprep.subr.bf16.mxu0 %v3257
    %4555 = vmatpush1.bf16.msra.mxu0 %v3256
    %4556 = vmatprep.subr.bf16.mxu0 %v3225
    %4557 = vmatpush1.bf16.msra.mxu0 %v3224
    %4558 = vmatprep.subr.bf16.mxu0 %v3193
    %4559 = vmatpush1.bf16.msra.mxu0 %v3192
    %4560 = vmatprep.subr.bf16.mxu0 %v3673
    %4561 = vmatpush2.bf16.msra.mxu0 %v3672
    %4562 = vmatprep.subr.bf16.mxu0 %v3641
    %4563 = vmatpush2.bf16.msra.mxu0 %v3640
    %4564 = vmatprep.subr.bf16.mxu0 %v3609
    %4565 = vmatpush2.bf16.msra.mxu0 %v3608
    %4566 = vmatprep.subr.bf16.mxu0 %v3577
    %4567 = vmatpush2.bf16.msra.mxu0 %v3576
    %4568 = vmatprep.subr.bf16.mxu0 %v3545
    %4569 = vmatpush2.bf16.msra.mxu0 %v3544
    %4570 = vmatprep.subr.bf16.mxu0 %v3513
    %4571 = vmatpush2.bf16.msra.mxu0 %v3512
    %4572 = vmatprep.subr.bf16.mxu0 %v3481
    %4573 = vmatpush2.bf16.msra.mxu0 %v3480
    %4574 = vmatprep.subr.bf16.mxu0 %v3449
    %4575 = vmatpush2.bf16.msra.mxu0 %v3448
    %4576 = vmatprep.mubr.bf16.mxu0 %v1637
    %4577 = vmatmul.mubr.bf16.gmra.mxu0 %v1636
    %v4578 = vpop.f32.mrf.mxu0
    %v4579 = vadd.f32 %v1537, %v4578
    %v4580 = vpop.f32.mrf.mxu0
    %v4581 = vadd.f32 %v1541, %v4580
    %v4582 = vpop.f32.mrf.mxu0
    %v4583 = vadd.f32 %v1537, %v4582
    %v4584 = vpop.f32.mrf.mxu0
    %v4585 = vadd.f32 %v1541, %v4584
    %4586 = vdwg.mxu0
    %4587 = vmatprep.subr.bf16.mxu0 %v3419
    %4588 = vmatpush1.bf16.msra.mxu0 %v3418
    %4589 = vmatprep.subr.bf16.mxu0 %v3387
    %4590 = vmatpush1.bf16.msra.mxu0 %v3386
    %4591 = vmatprep.subr.bf16.mxu0 %v3355
    %4592 = vmatpush1.bf16.msra.mxu0 %v3354
    %4593 = vmatprep.subr.bf16.mxu0 %v3323
    %4594 = vmatpush1.bf16.msra.mxu0 %v3322
    %4595 = vmatprep.subr.bf16.mxu0 %v3291
    %4596 = vmatpush1.bf16.msra.mxu0 %v3290
    %4597 = vmatprep.subr.bf16.mxu0 %v3259
    %4598 = vmatpush1.bf16.msra.mxu0 %v3258
    %4599 = vmatprep.subr.bf16.mxu0 %v3227
    %4600 = vmatpush1.bf16.msra.mxu0 %v3226
    %4601 = vmatprep.subr.bf16.mxu0 %v3195
    %4602 = vmatpush1.bf16.msra.mxu0 %v3194
    %4603 = vmatprep.subr.bf16.mxu0 %v3675
    %4604 = vmatpush2.bf16.msra.mxu0 %v3674
    %4605 = vmatprep.subr.bf16.mxu0 %v3643
    %4606 = vmatpush2.bf16.msra.mxu0 %v3642
    %4607 = vmatprep.subr.bf16.mxu0 %v3611
    %4608 = vmatpush2.bf16.msra.mxu0 %v3610
    %4609 = vmatprep.subr.bf16.mxu0 %v3579
    %4610 = vmatpush2.bf16.msra.mxu0 %v3578
    %4611 = vmatprep.subr.bf16.mxu0 %v3547
    %4612 = vmatpush2.bf16.msra.mxu0 %v3546
    %4613 = vmatprep.subr.bf16.mxu0 %v3515
    %4614 = vmatpush2.bf16.msra.mxu0 %v3514
    %4615 = vmatprep.subr.bf16.mxu0 %v3483
    %4616 = vmatpush2.bf16.msra.mxu0 %v3482
    %4617 = vmatprep.subr.bf16.mxu0 %v3451
    %4618 = vmatpush2.bf16.msra.mxu0 %v3450
    %4619 = vmatprep.mubr.bf16.mxu0 %v1637
    %4620 = vmatmul.mubr.bf16.gmra.mxu0 %v1636
    %v4621 = vpop.f32.mrf.mxu0
    %v4622 = vadd.f32 %v1545, %v4621
    %v4623 = vpop.f32.mrf.mxu0
    %v4624 = vadd.f32 %v1549, %v4623
    %v4625 = vpop.f32.mrf.mxu0
    %v4626 = vadd.f32 %v1545, %v4625
    %v4627 = vpop.f32.mrf.mxu0
    %v4628 = vadd.f32 %v1549, %v4627
    %4629 = vdwg.mxu0
    %4630 = vmatprep.subr.bf16.mxu0 %v3421
    %4631 = vmatpush1.bf16.msra.mxu0 %v3420
    %4632 = vmatprep.subr.bf16.mxu0 %v3389
    %4633 = vmatpush1.bf16.msra.mxu0 %v3388
    %4634 = vmatprep.subr.bf16.mxu0 %v3357
    %4635 = vmatpush1.bf16.msra.mxu0 %v3356
    %4636 = vmatprep.subr.bf16.mxu0 %v3325
    %4637 = vmatpush1.bf16.msra.mxu0 %v3324
    %4638 = vmatprep.subr.bf16.mxu0 %v3293
    %4639 = vmatpush1.bf16.msra.mxu0 %v3292
    %4640 = vmatprep.subr.bf16.mxu0 %v3261
    %4641 = vmatpush1.bf16.msra.mxu0 %v3260
    %4642 = vmatprep.subr.bf16.mxu0 %v3229
    %4643 = vmatpush1.bf16.msra.mxu0 %v3228
    %4644 = vmatprep.subr.bf16.mxu0 %v3197
    %4645 = vmatpush1.bf16.msra.mxu0 %v3196
    %4646 = vmatprep.subr.bf16.mxu0 %v3677
    %4647 = vmatpush2.bf16.msra.mxu0 %v3676
    %4648 = vmatprep.subr.bf16.mxu0 %v3645
    %4649 = vmatpush2.bf16.msra.mxu0 %v3644
    %4650 = vmatprep.subr.bf16.mxu0 %v3613
    %4651 = vmatpush2.bf16.msra.mxu0 %v3612
    %4652 = vmatprep.subr.bf16.mxu0 %v3581
    %4653 = vmatpush2.bf16.msra.mxu0 %v3580
    %4654 = vmatprep.subr.bf16.mxu0 %v3549
    %4655 = vmatpush2.bf16.msra.mxu0 %v3548
    %4656 = vmatprep.subr.bf16.mxu0 %v3517
    %4657 = vmatpush2.bf16.msra.mxu0 %v3516
    %4658 = vmatprep.subr.bf16.mxu0 %v3485
    %4659 = vmatpush2.bf16.msra.mxu0 %v3484
    %4660 = vmatprep.subr.bf16.mxu0 %v3453
    %4661 = vmatpush2.bf16.msra.mxu0 %v3452
    %4662 = vmatprep.mubr.bf16.mxu0 %v1637
    %4663 = vmatmul.mubr.bf16.gmra.mxu0 %v1636
    %v4664 = vpop.f32.mrf.mxu0
    %v4665 = vadd.f32 %v1553, %v4664
    %v4666 = vpop.f32.mrf.mxu0
    %v4667 = vadd.f32 %v1557, %v4666
    %v4668 = vpop.f32.mrf.mxu0
    %v4669 = vadd.f32 %v1553, %v4668
    %v4670 = vpop.f32.mrf.mxu0
    %v4671 = vadd.f32 %v1557, %v4670
    %4672 = vdwg.mxu0
    %4673 = vmatprep.subr.bf16.mxu0 %v3423
    %4674 = vmatpush1.bf16.msra.mxu0 %v3422
    %4675 = vmatprep.subr.bf16.mxu0 %v3391
    %4676 = vmatpush1.bf16.msra.mxu0 %v3390
    %4677 = vmatprep.subr.bf16.mxu0 %v3359
    %4678 = vmatpush1.bf16.msra.mxu0 %v3358
    %4679 = vmatprep.subr.bf16.mxu0 %v3327
    %4680 = vmatpush1.bf16.msra.mxu0 %v3326
    %4681 = vmatprep.subr.bf16.mxu0 %v3295
    %4682 = vmatpush1.bf16.msra.mxu0 %v3294
    %4683 = vmatprep.subr.bf16.mxu0 %v3263
    %4684 = vmatpush1.bf16.msra.mxu0 %v3262
    %4685 = vmatprep.subr.bf16.mxu0 %v3231
    %4686 = vmatpush1.bf16.msra.mxu0 %v3230
    %4687 = vmatprep.subr.bf16.mxu0 %v3199
    %4688 = vmatpush1.bf16.msra.mxu0 %v3198
    %4689 = vmatprep.subr.bf16.mxu0 %v3679
    %4690 = vmatpush2.bf16.msra.mxu0 %v3678
    %4691 = vmatprep.subr.bf16.mxu0 %v3647
    %4692 = vmatpush2.bf16.msra.mxu0 %v3646
    %4693 = vmatprep.subr.bf16.mxu0 %v3615
    %4694 = vmatpush2.bf16.msra.mxu0 %v3614
    %4695 = vmatprep.subr.bf16.mxu0 %v3583
    %4696 = vmatpush2.bf16.msra.mxu0 %v3582
    %4697 = vmatprep.subr.bf16.mxu0 %v3551
    %4698 = vmatpush2.bf16.msra.mxu0 %v3550
    %4699 = vmatprep.subr.bf16.mxu0 %v3519
    %4700 = vmatpush2.bf16.msra.mxu0 %v3518
    %4701 = vmatprep.subr.bf16.mxu0 %v3487
    %4702 = vmatpush2.bf16.msra.mxu0 %v3486
    %4703 = vmatprep.subr.bf16.mxu0 %v3455
    %4704 = vmatpush2.bf16.msra.mxu0 %v3454
    %4705 = vmatprep.mubr.bf16.mxu0 %v1637
    %4706 = vmatmul.mubr.bf16.gmra.mxu0 %v1636
    %v4707 = vpop.f32.mrf.mxu0
    %v4708 = vadd.f32 %v1561, %v4707
    %v4709 = vpop.f32.mrf.mxu0
    %v4710 = vadd.f32 %v1565, %v4709
    %v4711 = vpop.f32.mrf.mxu0
    %v4712 = vadd.f32 %v1561, %v4711
    %v4713 = vpop.f32.mrf.mxu0
    %v4714 = vadd.f32 %v1565, %v4713
    %4715 = vdwg.mxu0
    %4716 = vmatprep.subr.bf16.mxu0 %v3425
    %4717 = vmatpush1.bf16.msra.mxu0 %v3424
    %4718 = vmatprep.subr.bf16.mxu0 %v3393
    %4719 = vmatpush1.bf16.msra.mxu0 %v3392
    %4720 = vmatprep.subr.bf16.mxu0 %v3361
    %4721 = vmatpush1.bf16.msra.mxu0 %v3360
    %4722 = vmatprep.subr.bf16.mxu0 %v3329
    %4723 = vmatpush1.bf16.msra.mxu0 %v3328
    %4724 = vmatprep.subr.bf16.mxu0 %v3297
    %4725 = vmatpush1.bf16.msra.mxu0 %v3296
    %4726 = vmatprep.subr.bf16.mxu0 %v3265
    %4727 = vmatpush1.bf16.msra.mxu0 %v3264
    %4728 = vmatprep.subr.bf16.mxu0 %v3233
    %4729 = vmatpush1.bf16.msra.mxu0 %v3232
    %4730 = vmatprep.subr.bf16.mxu0 %v3201
    %4731 = vmatpush1.bf16.msra.mxu0 %v3200
    %4732 = vmatprep.subr.bf16.mxu0 %v3681
    %4733 = vmatpush2.bf16.msra.mxu0 %v3680
    %4734 = vmatprep.subr.bf16.mxu0 %v3649
    %4735 = vmatpush2.bf16.msra.mxu0 %v3648
    %4736 = vmatprep.subr.bf16.mxu0 %v3617
    %4737 = vmatpush2.bf16.msra.mxu0 %v3616
    %4738 = vmatprep.subr.bf16.mxu0 %v3585
    %4739 = vmatpush2.bf16.msra.mxu0 %v3584
    %4740 = vmatprep.subr.bf16.mxu0 %v3553
    %4741 = vmatpush2.bf16.msra.mxu0 %v3552
    %4742 = vmatprep.subr.bf16.mxu0 %v3521
    %4743 = vmatpush2.bf16.msra.mxu0 %v3520
    %4744 = vmatprep.subr.bf16.mxu0 %v3489
    %4745 = vmatpush2.bf16.msra.mxu0 %v3488
    %4746 = vmatprep.subr.bf16.mxu0 %v3457
    %4747 = vmatpush2.bf16.msra.mxu0 %v3456
    %4748 = vmatprep.mubr.bf16.mxu0 %v1637
    %4749 = vmatmul.mubr.bf16.gmra.mxu0 %v1636
    %v4750 = vpop.f32.mrf.mxu0
    %v4751 = vadd.f32 %v1569, %v4750
    %v4752 = vpop.f32.mrf.mxu0
    %v4753 = vadd.f32 %v1573, %v4752
    %v4754 = vpop.f32.mrf.mxu0
    %v4755 = vadd.f32 %v1569, %v4754
    %v4756 = vpop.f32.mrf.mxu0
    %v4757 = vadd.f32 %v1573, %v4756
    %4758 = vdwg.mxu0
    %4759 = vmatprep.subr.bf16.mxu0 %v3427
    %4760 = vmatpush1.bf16.msra.mxu0 %v3426
    %4761 = vmatprep.subr.bf16.mxu0 %v3395
    %4762 = vmatpush1.bf16.msra.mxu0 %v3394
    %4763 = vmatprep.subr.bf16.mxu0 %v3363
    %4764 = vmatpush1.bf16.msra.mxu0 %v3362
    %4765 = vmatprep.subr.bf16.mxu0 %v3331
    %4766 = vmatpush1.bf16.msra.mxu0 %v3330
    %4767 = vmatprep.subr.bf16.mxu0 %v3299
    %4768 = vmatpush1.bf16.msra.mxu0 %v3298
    %4769 = vmatprep.subr.bf16.mxu0 %v3267
    %4770 = vmatpush1.bf16.msra.mxu0 %v3266
    %4771 = vmatprep.subr.bf16.mxu0 %v3235
    %4772 = vmatpush1.bf16.msra.mxu0 %v3234
    %4773 = vmatprep.subr.bf16.mxu0 %v3203
    %4774 = vmatpush1.bf16.msra.mxu0 %v3202
    %4775 = vmatprep.subr.bf16.mxu0 %v3683
    %4776 = vmatpush2.bf16.msra.mxu0 %v3682
    %4777 = vmatprep.subr.bf16.mxu0 %v3651
    %4778 = vmatpush2.bf16.msra.mxu0 %v3650
    %4779 = vmatprep.subr.bf16.mxu0 %v3619
    %4780 = vmatpush2.bf16.msra.mxu0 %v3618
    %4781 = vmatprep.subr.bf16.mxu0 %v3587
    %4782 = vmatpush2.bf16.msra.mxu0 %v3586
    %4783 = vmatprep.subr.bf16.mxu0 %v3555
    %4784 = vmatpush2.bf16.msra.mxu0 %v3554
    %4785 = vmatprep.subr.bf16.mxu0 %v3523
    %4786 = vmatpush2.bf16.msra.mxu0 %v3522
    %4787 = vmatprep.subr.bf16.mxu0 %v3491
    %4788 = vmatpush2.bf16.msra.mxu0 %v3490
    %4789 = vmatprep.subr.bf16.mxu0 %v3459
    %4790 = vmatpush2.bf16.msra.mxu0 %v3458
    %4791 = vmatprep.mubr.bf16.mxu0 %v1637
    %4792 = vmatmul.mubr.bf16.gmra.mxu0 %v1636
    %v4793 = vpop.f32.mrf.mxu0
    %v4794 = vadd.f32 %v1577, %v4793
    %v4795 = vpop.f32.mrf.mxu0
    %v4796 = vadd.f32 %v1581, %v4795
    %v4797 = vpop.f32.mrf.mxu0
    %v4798 = vadd.f32 %v1577, %v4797
    %v4799 = vpop.f32.mrf.mxu0
    %v4800 = vadd.f32 %v1581, %v4799
    %4801 = vdwg.mxu0
    %4802 = vmatprep.subr.bf16.mxu0 %v3429
    %4803 = vmatpush1.bf16.msra.mxu0 %v3428
    %4804 = vmatprep.subr.bf16.mxu0 %v3397
    %4805 = vmatpush1.bf16.msra.mxu0 %v3396
    %4806 = vmatprep.subr.bf16.mxu0 %v3365
    %4807 = vmatpush1.bf16.msra.mxu0 %v3364
    %4808 = vmatprep.subr.bf16.mxu0 %v3333
    %4809 = vmatpush1.bf16.msra.mxu0 %v3332
    %4810 = vmatprep.subr.bf16.mxu0 %v3301
    %4811 = vmatpush1.bf16.msra.mxu0 %v3300
    %4812 = vmatprep.subr.bf16.mxu0 %v3269
    %4813 = vmatpush1.bf16.msra.mxu0 %v3268
    %4814 = vmatprep.subr.bf16.mxu0 %v3237
    %4815 = vmatpush1.bf16.msra.mxu0 %v3236
    %4816 = vmatprep.subr.bf16.mxu0 %v3205
    %4817 = vmatpush1.bf16.msra.mxu0 %v3204
    %4818 = vmatprep.subr.bf16.mxu0 %v3685
    %4819 = vmatpush2.bf16.msra.mxu0 %v3684
    %4820 = vmatprep.subr.bf16.mxu0 %v3653
    %4821 = vmatpush2.bf16.msra.mxu0 %v3652
    %4822 = vmatprep.subr.bf16.mxu0 %v3621
    %4823 = vmatpush2.bf16.msra.mxu0 %v3620
    %4824 = vmatprep.subr.bf16.mxu0 %v3589
    %4825 = vmatpush2.bf16.msra.mxu0 %v3588
    %4826 = vmatprep.subr.bf16.mxu0 %v3557
    %4827 = vmatpush2.bf16.msra.mxu0 %v3556
    %4828 = vmatprep.subr.bf16.mxu0 %v3525
    %4829 = vmatpush2.bf16.msra.mxu0 %v3524
    %4830 = vmatprep.subr.bf16.mxu0 %v3493
    %4831 = vmatpush2.bf16.msra.mxu0 %v3492
    %4832 = vmatprep.subr.bf16.mxu0 %v3461
    %4833 = vmatpush2.bf16.msra.mxu0 %v3460
    %4834 = vmatprep.mubr.bf16.mxu0 %v1637
    %4835 = vmatmul.mubr.bf16.gmra.mxu0 %v1636
    %v4836 = vpop.f32.mrf.mxu0
    %v4837 = vadd.f32 %v1585, %v4836
    %v4838 = vpop.f32.mrf.mxu0
    %v4839 = vadd.f32 %v1589, %v4838
    %v4840 = vpop.f32.mrf.mxu0
    %v4841 = vadd.f32 %v1585, %v4840
    %v4842 = vpop.f32.mrf.mxu0
    %v4843 = vadd.f32 %v1589, %v4842
    %4844 = vdwg.mxu0
    %4845 = vmatprep.subr.bf16.mxu0 %v3431
    %4846 = vmatpush1.bf16.msra.mxu0 %v3430
    %4847 = vmatprep.subr.bf16.mxu0 %v3399
    %4848 = vmatpush1.bf16.msra.mxu0 %v3398
    %4849 = vmatprep.subr.bf16.mxu0 %v3367
    %4850 = vmatpush1.bf16.msra.mxu0 %v3366
    %4851 = vmatprep.subr.bf16.mxu0 %v3335
    %4852 = vmatpush1.bf16.msra.mxu0 %v3334
    %4853 = vmatprep.subr.bf16.mxu0 %v3303
    %4854 = vmatpush1.bf16.msra.mxu0 %v3302
    %4855 = vmatprep.subr.bf16.mxu0 %v3271
    %4856 = vmatpush1.bf16.msra.mxu0 %v3270
    %4857 = vmatprep.subr.bf16.mxu0 %v3239
    %4858 = vmatpush1.bf16.msra.mxu0 %v3238
    %4859 = vmatprep.subr.bf16.mxu0 %v3207
    %4860 = vmatpush1.bf16.msra.mxu0 %v3206
    %4861 = vmatprep.subr.bf16.mxu0 %v3687
    %4862 = vmatpush2.bf16.msra.mxu0 %v3686
    %4863 = vmatprep.subr.bf16.mxu0 %v3655
    %4864 = vmatpush2.bf16.msra.mxu0 %v3654
    %4865 = vmatprep.subr.bf16.mxu0 %v3623
    %4866 = vmatpush2.bf16.msra.mxu0 %v3622
    %4867 = vmatprep.subr.bf16.mxu0 %v3591
    %4868 = vmatpush2.bf16.msra.mxu0 %v3590
    %4869 = vmatprep.subr.bf16.mxu0 %v3559
    %4870 = vmatpush2.bf16.msra.mxu0 %v3558
    %4871 = vmatprep.subr.bf16.mxu0 %v3527
    %4872 = vmatpush2.bf16.msra.mxu0 %v3526
    %4873 = vmatprep.subr.bf16.mxu0 %v3495
    %4874 = vmatpush2.bf16.msra.mxu0 %v3494
    %4875 = vmatprep.subr.bf16.mxu0 %v3463
    %4876 = vmatpush2.bf16.msra.mxu0 %v3462
    %4877 = vmatprep.mubr.bf16.mxu0 %v1637
    %4878 = vmatmul.mubr.bf16.gmra.mxu0 %v1636
    %v4879 = vpop.f32.mrf.mxu0
    %v4880 = vadd.f32 %v1593, %v4879
    %v4881 = vpop.f32.mrf.mxu0
    %v4882 = vadd.f32 %v1597, %v4881
    %v4883 = vpop.f32.mrf.mxu0
    %v4884 = vadd.f32 %v1593, %v4883
    %v4885 = vpop.f32.mrf.mxu0
    %v4886 = vadd.f32 %v1597, %v4885
    %4887 = vdwg.mxu0
    %v4888 = vtanh.pop %v4235
    %v4889 = vtanh.pop %v4237
    %v4890 = vtanh.pop %v4278
    %v4891 = vtanh.pop %v4280
    %v4892 = vtanh.pop %v4321
    %v4893 = vtanh.pop %v4323
    %v4894 = vtanh.pop %v4364
    %v4895 = vtanh.pop %v4366
    %v4896 = vtanh.pop %v4407
    %v4897 = vtanh.pop %v4409
    %v4898 = vtanh.pop %v4450
    %v4899 = vtanh.pop %v4452
    %v4900 = vtanh.pop %v4493
    %v4901 = vtanh.pop %v4495
    %v4902 = vtanh.pop %v4536
    %v4903 = vtanh.pop %v4538
    %v4904 = vtanh.pop %v4579
    %v4905 = vtanh.pop %v4581
    %v4906 = vtanh.pop %v4622
    %v4907 = vtanh.pop %v4624
    %v4908 = vtanh.pop %v4665
    %v4909 = vtanh.pop %v4667
    %v4910 = vtanh.pop %v4708
    %v4911 = vtanh.pop %v4710
    %v4912 = vtanh.pop %v4751
    %v4913 = vtanh.pop %v4753
    %v4914 = vtanh.pop %v4794
    %v4915 = vtanh.pop %v4796
    %v4916 = vtanh.pop %v4837
    %v4917 = vtanh.pop %v4839
    %v4918 = vtanh.pop %v4880
    %v4919 = vtanh.pop %v4882
    %v4920 = vtanh.pop %v4239
    %v4921 = vtanh.pop %v4241
    %v4922 = vtanh.pop %v4282
    %v4923 = vtanh.pop %v4284
    %v4924 = vtanh.pop %v4325
    %v4925 = vtanh.pop %v4327
    %v4926 = vtanh.pop %v4368
    %v4927 = vtanh.pop %v4370
    %v4928 = vtanh.pop %v4411
    %v4929 = vtanh.pop %v4413
    %v4930 = vtanh.pop %v4454
    %v4931 = vtanh.pop %v4456
    %v4932 = vtanh.pop %v4497
    %v4933 = vtanh.pop %v4499
    %v4934 = vtanh.pop %v4540
    %v4935 = vtanh.pop %v4542
    %v4936 = vtanh.pop %v4583
    %v4937 = vtanh.pop %v4585
    %v4938 = vtanh.pop %v4626
    %v4939 = vtanh.pop %v4628
    %v4940 = vtanh.pop %v4669
    %v4941 = vtanh.pop %v4671
    %v4942 = vtanh.pop %v4712
    %v4943 = vtanh.pop %v4714
    %v4944 = vtanh.pop %v4755
    %v4945 = vtanh.pop %v4757
    %v4946 = vtanh.pop %v4798
    %v4947 = vtanh.pop %v4800
    %v4948 = vtanh.pop %v4841
    %v4949 = vtanh.pop %v4843
    %v4950 = vtanh.pop %v4884
    %v4951 = vtanh.pop %v4886
    %v4952 = vpack.c.bf16 %v4888, %v4888
    %v4953 = vpack.c.bf16 %v4889, %v4889
    %v4954 = vpack.c.bf16 %v4890, %v4890
    %v4955 = vpack.c.bf16 %v4891, %v4891
    %v4956 = vpack.c.bf16 %v4892, %v4892
    %v4957 = vpack.c.bf16 %v4893, %v4893
    %v4958 = vpack.c.bf16 %v4894, %v4894
    %v4959 = vpack.c.bf16 %v4895, %v4895
    %v4960 = vpack.c.bf16 %v4896, %v4896
    %v4961 = vpack.c.bf16 %v4897, %v4897
    %v4962 = vpack.c.bf16 %v4898, %v4898
    %v4963 = vpack.c.bf16 %v4899, %v4899
    %v4964 = vpack.c.bf16 %v4900, %v4900
    %v4965 = vpack.c.bf16 %v4901, %v4901
    %v4966 = vpack.c.bf16 %v4902, %v4902
    %v4967 = vpack.c.bf16 %v4903, %v4903
    %v4968 = vpack.c.bf16 %v4904, %v4904
    %v4969 = vpack.c.bf16 %v4905, %v4905
    %v4970 = vpack.c.bf16 %v4906, %v4906
    %v4971 = vpack.c.bf16 %v4907, %v4907
    %v4972 = vpack.c.bf16 %v4908, %v4908
    %v4973 = vpack.c.bf16 %v4909, %v4909
    %v4974 = vpack.c.bf16 %v4910, %v4910
    %v4975 = vpack.c.bf16 %v4911, %v4911
    %v4976 = vpack.c.bf16 %v4912, %v4912
    %v4977 = vpack.c.bf16 %v4913, %v4913
    %v4978 = vpack.c.bf16 %v4914, %v4914
    %v4979 = vpack.c.bf16 %v4915, %v4915
    %v4980 = vpack.c.bf16 %v4916, %v4916
    %v4981 = vpack.c.bf16 %v4917, %v4917
    %v4982 = vpack.c.bf16 %v4918, %v4918
    %v4983 = vpack.c.bf16 %v4919, %v4919
    %v4984 = vpack.c.bf16 %v4920, %v4920
    %v4985 = vpack.c.bf16 %v4921, %v4921
    %v4986 = vpack.c.bf16 %v4922, %v4922
    %v4987 = vpack.c.bf16 %v4923, %v4923
    %v4988 = vpack.c.bf16 %v4924, %v4924
    %v4989 = vpack.c.bf16 %v4925, %v4925
    %v4990 = vpack.c.bf16 %v4926, %v4926
    %v4991 = vpack.c.bf16 %v4927, %v4927
    %v4992 = vpack.c.bf16 %v4928, %v4928
    %v4993 = vpack.c.bf16 %v4929, %v4929
    %v4994 = vpack.c.bf16 %v4930, %v4930
    %v4995 = vpack.c.bf16 %v4931, %v4931
    %v4996 = vpack.c.bf16 %v4932, %v4932
    %v4997 = vpack.c.bf16 %v4933, %v4933
    %v4998 = vpack.c.bf16 %v4934, %v4934
    %v4999 = vpack.c.bf16 %v4935, %v4935
    %v5000 = vpack.c.bf16 %v4936, %v4936
    %v5001 = vpack.c.bf16 %v4937, %v4937
    %v5002 = vpack.c.bf16 %v4938, %v4938
    %v5003 = vpack.c.bf16 %v4939, %v4939
    %v5004 = vpack.c.bf16 %v4940, %v4940
    %v5005 = vpack.c.bf16 %v4941, %v4941
    %v5006 = vpack.c.bf16 %v4942, %v4942
    %v5007 = vpack.c.bf16 %v4943, %v4943
    %v5008 = vpack.c.bf16 %v4944, %v4944
    %v5009 = vpack.c.bf16 %v4945, %v4945
    %v5010 = vpack.c.bf16 %v4946, %v4946
    %v5011 = vpack.c.bf16 %v4947, %v4947
    %v5012 = vpack.c.bf16 %v4948, %v4948
    %v5013 = vpack.c.bf16 %v4949, %v4949
    %v5014 = vpack.c.bf16 %v4950, %v4950
    %v5015 = vpack.c.bf16 %v4951, %v4951
    %v5080 = vunpack.c.l.b16 %v4952
    %v5081 = vunpack.c.l.b16 %v4953
    %v5082 = vunpack.c.l.b16 %v4954
    %v5083 = vunpack.c.l.b16 %v4955
    %v5084 = vunpack.c.l.b16 %v4956
    %v5085 = vunpack.c.l.b16 %v4957
    %v5086 = vunpack.c.l.b16 %v4958
    %v5087 = vunpack.c.l.b16 %v4959
    %v5088 = vunpack.c.l.b16 %v4960
    %v5089 = vunpack.c.l.b16 %v4961
    %v5090 = vunpack.c.l.b16 %v4962
    %v5091 = vunpack.c.l.b16 %v4963
    %v5092 = vunpack.c.l.b16 %v4964
    %v5093 = vunpack.c.l.b16 %v4965
    %v5094 = vunpack.c.l.b16 %v4966
    %v5095 = vunpack.c.l.b16 %v4967
    %v5096 = vunpack.c.l.b16 %v4968
    %v5097 = vunpack.c.l.b16 %v4969
    %v5098 = vunpack.c.l.b16 %v4970
    %v5099 = vunpack.c.l.b16 %v4971
    %v5100 = vunpack.c.l.b16 %v4972
    %v5101 = vunpack.c.l.b16 %v4973
    %v5102 = vunpack.c.l.b16 %v4974
    %v5103 = vunpack.c.l.b16 %v4975
    %v5104 = vunpack.c.l.b16 %v4976
    %v5105 = vunpack.c.l.b16 %v4977
    %v5106 = vunpack.c.l.b16 %v4978
    %v5107 = vunpack.c.l.b16 %v4979
    %v5108 = vunpack.c.l.b16 %v4980
    %v5109 = vunpack.c.l.b16 %v4981
    %v5110 = vunpack.c.l.b16 %v4982
    %v5111 = vunpack.c.l.b16 %v4983
    %v5112 = vunpack.c.l.b16 %v4984
    %v5113 = vunpack.c.l.b16 %v4985
    %v5114 = vunpack.c.l.b16 %v4986
    %v5115 = vunpack.c.l.b16 %v4987
    %v5116 = vunpack.c.l.b16 %v4988
    %v5117 = vunpack.c.l.b16 %v4989
    %v5118 = vunpack.c.l.b16 %v4990
    %v5119 = vunpack.c.l.b16 %v4991
    %v5120 = vunpack.c.l.b16 %v4992
    %v5121 = vunpack.c.l.b16 %v4993
    %v5122 = vunpack.c.l.b16 %v4994
    %v5123 = vunpack.c.l.b16 %v4995
    %v5124 = vunpack.c.l.b16 %v4996
    %v5125 = vunpack.c.l.b16 %v4997
    %v5126 = vunpack.c.l.b16 %v4998
    %v5127 = vunpack.c.l.b16 %v4999
    %v5128 = vunpack.c.l.b16 %v5000
    %v5129 = vunpack.c.l.b16 %v5001
    %v5130 = vunpack.c.l.b16 %v5002
    %v5131 = vunpack.c.l.b16 %v5003
    %v5132 = vunpack.c.l.b16 %v5004
    %v5133 = vunpack.c.l.b16 %v5005
    %v5134 = vunpack.c.l.b16 %v5006
    %v5135 = vunpack.c.l.b16 %v5007
    %v5136 = vunpack.c.l.b16 %v5008
    %v5137 = vunpack.c.l.b16 %v5009
    %v5138 = vunpack.c.l.b16 %v5010
    %v5139 = vunpack.c.l.b16 %v5011
    %v5140 = vunpack.c.l.b16 %v5012
    %v5141 = vunpack.c.l.b16 %v5013
    %v5142 = vunpack.c.l.b16 %v5014
    %v5143 = vunpack.c.l.b16 %v5015
    %v5144 = vpack.c.b16 %v5081, %v5080
    %v5145 = vpack.c.b16 %v5083, %v5082
    %v5146 = vpack.c.b16 %v5085, %v5084
    %v5147 = vpack.c.b16 %v5087, %v5086
    %v5148 = vpack.c.b16 %v5089, %v5088
    %v5149 = vpack.c.b16 %v5091, %v5090
    %v5150 = vpack.c.b16 %v5093, %v5092
    %v5151 = vpack.c.b16 %v5095, %v5094
    %v5152 = vpack.c.b16 %v5097, %v5096
    %v5153 = vpack.c.b16 %v5099, %v5098
    %v5154 = vpack.c.b16 %v5101, %v5100
    %v5155 = vpack.c.b16 %v5103, %v5102
    %v5156 = vpack.c.b16 %v5105, %v5104
    %v5157 = vpack.c.b16 %v5107, %v5106
    %v5158 = vpack.c.b16 %v5109, %v5108
    %v5159 = vpack.c.b16 %v5111, %v5110
    %v5160 = vpack.c.b16 %v5113, %v5112
    %v5161 = vpack.c.b16 %v5115, %v5114
    %v5162 = vpack.c.b16 %v5117, %v5116
    %v5163 = vpack.c.b16 %v5119, %v5118
    %v5164 = vpack.c.b16 %v5121, %v5120
    %v5165 = vpack.c.b16 %v5123, %v5122
    %v5166 = vpack.c.b16 %v5125, %v5124
    %v5167 = vpack.c.b16 %v5127, %v5126
    %v5168 = vpack.c.b16 %v5129, %v5128
    %v5169 = vpack.c.b16 %v5131, %v5130
    %v5170 = vpack.c.b16 %v5133, %v5132
    %v5171 = vpack.c.b16 %v5135, %v5134
    %v5172 = vpack.c.b16 %v5137, %v5136
    %v5173 = vpack.c.b16 %v5139, %v5138
    %v5174 = vpack.c.b16 %v5141, %v5140
    %v5175 = vpack.c.b16 %v5143, %v5142
    %5208 = vst [vmem:[#allocation13 + $0x80] sm:$0xff] %v5144
    %5209 = vst [vmem:[#allocation13 + $0x88] sm:$0xff] %v5145
    %5210 = vst [vmem:[#allocation13 + $0x90] sm:$0xff] %v5146
    %5211 = vst [vmem:[#allocation13 + $0x98] sm:$0xff] %v5147
    %5212 = vst [vmem:[#allocation13 + $0xa0] sm:$0xff] %v5148
    %5213 = vst [vmem:[#allocation13 + $0xa8] sm:$0xff] %v5149
    %5214 = vst [vmem:[#allocation13 + $0xb0] sm:$0xff] %v5150
    %5215 = vst [vmem:[#allocation13 + $0xb8] sm:$0xff] %v5151
    %5216 = vst [vmem:[#allocation13 + $0xc0] sm:$0xff] %v5152
    %5217 = vst [vmem:[#allocation13 + $0xc8] sm:$0xff] %v5153
    %5218 = vst [vmem:[#allocation13 + $0xd0] sm:$0xff] %v5154
    %5219 = vst [vmem:[#allocation13 + $0xd8] sm:$0xff] %v5155
    %5220 = vst [vmem:[#allocation13 + $0xe0] sm:$0xff] %v5156
    %5221 = vst [vmem:[#allocation13 + $0xe8] sm:$0xff] %v5157
    %5222 = vst [vmem:[#allocation13 + $0xf0] sm:$0xff] %v5158
    %5223 = vst [vmem:[#allocation13 + $0xf8] sm:$0xff] %v5159
    %5224 = vst [vmem:[#allocation13 + $0x180] sm:$0xff] %v5160
    %5225 = vst [vmem:[#allocation13 + $0x188] sm:$0xff] %v5161
    %5226 = vst [vmem:[#allocation13 + $0x190] sm:$0xff] %v5162
    %5227 = vst [vmem:[#allocation13 + $0x198] sm:$0xff] %v5163
    %5228 = vst [vmem:[#allocation13 + $0x1a0] sm:$0xff] %v5164
    %5229 = vst [vmem:[#allocation13 + $0x1a8] sm:$0xff] %v5165
    %5230 = vst [vmem:[#allocation13 + $0x1b0] sm:$0xff] %v5166
    %5231 = vst [vmem:[#allocation13 + $0x1b8] sm:$0xff] %v5167
    %5232 = vst [vmem:[#allocation13 + $0x1c0] sm:$0xff] %v5168
    %5233 = vst [vmem:[#allocation13 + $0x1c8] sm:$0xff] %v5169
    %5234 = vst [vmem:[#allocation13 + $0x1d0] sm:$0xff] %v5170
    %5235 = vst [vmem:[#allocation13 + $0x1d8] sm:$0xff] %v5171
    %5236 = vst [vmem:[#allocation13 + $0x1e0] sm:$0xff] %v5172
    %5237 = vst [vmem:[#allocation13 + $0x1e8] sm:$0xff] %v5173
    %5238 = vst [vmem:[#allocation13 + $0x1f0] sm:$0xff] %v5174
    %5239 = vst [vmem:[#allocation13 + $0x1f8] sm:$0xff] %v5175
    // Predicated region
    $region50: #{tpu_custom_call.1} parent=1 // pred_check
      _
    $region51: #{tpu_custom_call.1} parent=1 // pred_check_branch
      %5241 = sbr.rel (0) target = $region53
    $region52: #{tpu_custom_call.1} parent=1 // pred_region
      %s5243 = ssub.s32 8192, 8192
      %5244 = vsyncadd [#allocation4], %s5243
      %s5245 = sshll.u32 [#allocation13], 4
      %s5246 = int_to_ptr.vmem [resolvable:$true] %s5245
      %5251 = dma.vmem_to_hbm [thread:$0]  %s5246, 8192, %s6, [#allocation4], 2048, 2048, 128
    $region53: #{tpu_custom_call.1} parent=1 // pred_fallthru
      _
    // Predicated region
    $region54: #{tpu_custom_call.1} parent=1 // pred_check
      _
    $region55: #{tpu_custom_call.1} parent=1 // pred_check_branch
      %5253 = sbr.rel (0) target = $region57
    $region56: #{tpu_custom_call.1} parent=1 // pred_region
      %5254 = dma.done [#allocation4], 8192
    $region57: #{tpu_custom_call.1} parent=1 // pred_fallthru
      _
    %5255 = vsyncpa [#allocation3], 1
    %5256 = vsyncpa [#allocation6], 1
    %5257 = vsyncpa [#allocation9], 1
    %5258 = vsyncpa [#allocation12], 1
    %5259 = vsyncpa [#allocation4], 1

</llo_original>
